<compile_context>
chip_gen: v7x
topology: tpu7x:2x2x1
jax: 0.10.0
libtpu: 0.0.40
codegen_flags: <defaults>
</compile_context>

<pallas_src>
import numpy as np
import jax
import jax.numpy as jnp
from jax import lax
from jax.experimental import pallas as pl
from jax.experimental.pallas import tpu as pltpu

# ---------------- model dims ----------------
INPUT_SIZE = 1
HIDDEN = 50

H_PAD = 128          # hidden (50) zero-padded to one full lane group
OUT_PAD = 128        # fc output padded to a full lane group; column 0 holds the result
G_PAD = 4 * H_PAD    # packed gate width (i, f, g, o blocks of H_PAD each)


# ---------------- Pallas kernel ----------------
def lstm_kernel(x_ref,              # (T, BP, 1)      raw input, time-major, batch-padded
                w0x_ref,            # (1, G_PAD)      layer-0 input-projection row (INPUT_SIZE==1)
                b0_ref,             # (1, G_PAD)      fused b_ih0 + b_hh0
                w0h_ref,            # (H_PAD, G_PAD)  layer-0 recurrent weight
                w1x_ref,            # (H_PAD, G_PAD)  layer-1 input weight
                w1h_ref,            # (H_PAD, G_PAD)  layer-1 recurrent weight
                b1_ref,             # (1, G_PAD)      fused b_ih1 + b_hh1
                wfc_ref,            # (H_PAD, OUT_PAD)
                bfc_ref,            # (1, OUT_PAD)
                out_ref):           # (BP, OUT_PAD)
    T = x_ref.shape[0]
    BP = x_ref.shape[1]
    HP = H_PAD

    def sigmoid(v):
        # Keep the divide on the EUP slot (exp + reciprocal), off the VALU.
        return pl.reciprocal(1.0 + jnp.exp(-v), approx=False)

    def gates_to_hc(g, c):
        # PyTorch gate order: i, f, g, o.  Pad lanes of every gate block are 0,
        # so c_pad / h_pad stay exactly 0 through the recurrence
        # (sigmoid(0)=0.5 but tanh(0)=0 and c starts at 0).
        i_g = sigmoid(g[:, 0 * HP:1 * HP])
        f_g = sigmoid(g[:, 1 * HP:2 * HP])
        g_g = jnp.tanh(g[:, 2 * HP:3 * HP])
        o_g = sigmoid(g[:, 3 * HP:4 * HP])
        c_new = f_g * c + i_g * g_g
        h_new = o_g * jnp.tanh(c_new)
        return h_new, c_new

    def cell0(t, h0, c0):
        # Layer 0: input projection is a VPU broadcast-multiply (INPUT_SIZE==1),
        # single K=128 matmul for the recurrent term.
        xg = x_ref[t] * w0x_ref[...] + b0_ref[...]           # (BP,1)*(1,G) -> (BP,G)
        g = xg + jnp.dot(h0, w0h_ref[...], preferred_element_type=jnp.float32)
        return gates_to_hc(g, c0)

    def cell1(h0, h1, c1):
        # Layer 1: two K=128 dots, no per-step lane concat / VMEM copy in the
        # serial chain.  The h0 dot is off the h1->h1 critical path (wavefront).
        # TODO(synk): on v6e/v7x a fused K=256 dot fed from a persistent
        # (BP, 2*H_PAD) VMEM scratch fills the 256-deep MXU in one pass.
        g = (jnp.dot(h0, w1x_ref[...], preferred_element_type=jnp.float32)
             + jnp.dot(h1, w1h_ref[...], preferred_element_type=jnp.float32)
             + b1_ref[...])
        return gates_to_hc(g, c1)

    zeros = jnp.zeros((BP, HP), jnp.float32)

    # Wavefront pipeline: inside each iteration, layer1(t) and layer0(t+1) are
    # independent dependency chains the scheduler can interleave.
    h0, c0 = cell0(0, zeros, zeros)                          # layer 0, t = 0

    def step(t, carry):
        h0, c0, h1, c1 = carry
        h1n, c1n = cell1(h0, h1, c1)                         # layer 1, timestep t
        h0n, c0n = cell0(t + 1, h0, c0)                      # layer 0, timestep t+1
        return (h0n, c0n, h1n, c1n)

    # Full unroll only for short sequences; modest unroll for long T keeps LLO
    # visibility without bloating the instruction stream / vreg live ranges.
    unroll = True if T - 1 <= 8 else 8
    h0, c0, h1, c1 = lax.fori_loop(0, T - 1, step, (h0, c0, zeros, zeros),
                                   unroll=unroll)
    h1, _ = cell1(h0, h1, c1)                                # layer 1, final timestep

    out_ref[...] = (jnp.dot(h1, wfc_ref[...], preferred_element_type=jnp.float32)
                    + bfc_ref[...])


# ---------------- parameter construction ----------------
def init_params(key, input_size=INPUT_SIZE, hidden=HIDDEN):
    """PyTorch-style uniform(-1/sqrt(H), 1/sqrt(H)) init, deterministic."""
    bound = 1.0 / np.sqrt(hidden)
    ks = jax.random.split(key, 10)
    u = lambda k, shape: jax.random.uniform(k, shape, jnp.float32, -bound, bound)
    return {
        # layer 0
        "w_ih_l0": u(ks[0], (4 * hidden, input_size)),
        "w_hh_l0": u(ks[1], (4 * hidden, hidden)),
        "b_ih_l0": u(ks[2], (4 * hidden,)),
        "b_hh_l0": u(ks[3], (4 * hidden,)),
        # layer 1
        "w_ih_l1": u(ks[4], (4 * hidden, hidden)),
        "w_hh_l1": u(ks[5], (4 * hidden, hidden)),
        "b_ih_l1": u(ks[6], (4 * hidden,)),
        "b_hh_l1": u(ks[7], (4 * hidden,)),
        # fc
        "w_fc": u(ks[8], (1, hidden)),
        "b_fc": u(ks[9], (1,)),
    }


def _gate_cols(w, hidden):
    """(4H, in_dim) torch weight -> (in_dim, G_PAD): transposed, gate blocks lane-padded."""
    w = np.asarray(w)
    in_dim = w.shape[1]
    out = np.zeros((in_dim, G_PAD), np.float32)
    for k in range(4):
        out[:, k * H_PAD:k * H_PAD + hidden] = w[k * hidden:(k + 1) * hidden, :].T
    return out


def _gate_bias(b, hidden):
    b = np.asarray(b)
    out = np.zeros((G_PAD,), np.float32)
    for k in range(4):
        out[k * H_PAD:k * H_PAD + hidden] = b[k * hidden:(k + 1) * hidden]
    return out


def pack_params(params, hidden=HIDDEN):
    # layer 0: single input-projection row (INPUT_SIZE == 1), fused bias, recurrent weight
    w0x = np.zeros((1, G_PAD), np.float32)
    w0x[0] = _gate_cols(params["w_ih_l0"], hidden)[0]
    b0 = np.zeros((1, G_PAD), np.float32)
    b0[0] = _gate_bias(np.asarray(params["b_ih_l0"])
                       + np.asarray(params["b_hh_l0"]), hidden)
    w0h = np.zeros((H_PAD, G_PAD), np.float32)
    w0h[:hidden] = _gate_cols(params["w_hh_l0"], hidden)

    # layer 1: separate input / recurrent operands (two K=128 dots in-kernel)
    w1x = np.zeros((H_PAD, G_PAD), np.float32)
    w1x[:hidden] = _gate_cols(params["w_ih_l1"], hidden)
    w1h = np.zeros((H_PAD, G_PAD), np.float32)
    w1h[:hidden] = _gate_cols(params["w_hh_l1"], hidden)
    b1 = np.zeros((1, G_PAD), np.float32)
    b1[0] = _gate_bias(np.asarray(params["b_ih_l1"])
                       + np.asarray(params["b_hh_l1"]), hidden)

    # fc
    wfc = np.zeros((H_PAD, OUT_PAD), np.float32)
    wfc[:hidden, 0] = np.asarray(params["w_fc"])[0, :]
    bfc = np.zeros((1, OUT_PAD), np.float32)
    bfc[0, 0] = np.asarray(params["b_fc"])[0]

    return tuple(jnp.asarray(a) for a in (w0x, b0, w0h, w1x, w1h, b1, wfc, bfc))


# ---------------- wrapper ----------------
def lstm_model_forward(x, params):
    """x: (B, T, 1) float32  ->  (B, 1) float32  (matches the PyTorch module)."""
    B, T, I = x.shape
    assert I == INPUT_SIZE
    assert T >= 1, "kernel assumes at least one timestep"
    BP = ((B + 7) // 8) * 8            # pad batch to a full sublane group
    # TODO(synk): for batch > 8, raise the M tile (pad/tile batch to 128/256
    # rows per invocation) before adding grid parallelism; for large B on v7x
    # add a batch grid axis with dimension_semantics=("parallel",) so both TCs
    # work; for large T, stream x over T with a BlockSpec (pl.Buffered) instead
    # of keeping it whole in VMEM.

    packed = pack_params(params)

    # Time-major, batch-padded, COMPACT input (T, BP, 1); the layer-0 input
    # projection is done inside the kernel (no wrapper-side 512-wide tensor).
    x_tm = jnp.transpose(x, (1, 0, 2))                       # (T, B, 1)
    x_tm = jnp.pad(x_tm, ((0, 0), (0, BP - B), (0, 0)))      # (T, BP, 1)

    vmem = pl.BlockSpec(memory_space=pltpu.MemorySpace.VMEM)
    out = pl.pallas_call(
        lstm_kernel,
        out_shape=jax.ShapeDtypeStruct((BP, OUT_PAD), jnp.float32),
        in_specs=[vmem] * 9,
        out_specs=vmem,
    )(x_tm, *packed)
    return out[:B, :1]


# ---------------- pure-JAX reference ----------------
def lstm_model_ref(x, params, hidden=HIDDEN):
    B, T, _ = x.shape

    def cell(x_t, h, c, w_ih, w_hh, b_ih, b_hh):
        g = x_t @ w_ih.T + b_ih + h @ w_hh.T + b_hh
        i_g = jax.nn.sigmoid(g[:, 0 * hidden:1 * hidden])
        f_g = jax.nn.sigmoid(g[:, 1 * hidden:2 * hidden])
        g_g = jnp.tanh(g[:, 2 * hidden:3 * hidden])
        o_g = jax.nn.sigmoid(g[:, 3 * hidden:4 * hidden])
        c = f_g * c + i_g * g_g
        h = o_g * jnp.tanh(c)
        return h, c

    h0 = c0 = h1 = c1 = jnp.zeros((B, hidden), jnp.float32)
    for t in range(T):
        h0, c0 = cell(x[:, t, :], h0, c0, params["w_ih_l0"], params["w_hh_l0"],
                      params["b_ih_l0"], params["b_hh_l0"])
        h1, c1 = cell(h0, h1, c1, params["w_ih_l1"], params["w_hh_l1"],
                      params["b_ih_l1"], params["b_hh_l1"])
    return h1 @ params["w_fc"].T + params["b_fc"]


# ---------------- main ----------------
if __name__ == "__main__":
    key = jax.random.PRNGKey(0)
    k_param, k_x = jax.random.split(key)

    B, T = 2, 8
    params = init_params(k_param)
    x = jax.random.normal(k_x, (B, T, INPUT_SIZE), jnp.float32)

    out = lstm_model_forward(x, params)
    out = jax.block_until_ready(out)

    ref = lstm_model_ref(x, params)
    np.testing.assert_allclose(np.asarray(out), np.asarray(ref), atol=1e-4, rtol=1e-4)

    print("KERNEL_OK")
</pallas_src>

<mosaic_0001>
module attributes {stable_mosaic.version = 11 : i64} {
  func.func @lstm_kernel(%arg0: memref<8x8x1xf32, #tpu.memory_space<vmem>>, %arg1: memref<1x512xf32, #tpu.memory_space<vmem>>, %arg2: memref<1x512xf32, #tpu.memory_space<vmem>>, %arg3: memref<128x512xf32, #tpu.memory_space<vmem>>, %arg4: memref<128x512xf32, #tpu.memory_space<vmem>>, %arg5: memref<128x512xf32, #tpu.memory_space<vmem>>, %arg6: memref<1x512xf32, #tpu.memory_space<vmem>>, %arg7: memref<128x128xf32, #tpu.memory_space<vmem>>, %arg8: memref<1x128xf32, #tpu.memory_space<vmem>>, %arg9: memref<8x128xf32, #tpu.memory_space<vmem>>) attributes {dimension_semantics = [], scalar_prefetch = 0 : i64, scratch_operands = 0 : i64, tpu.core_type = #tpu.core_type<tc>} {
    %cst = arith.constant 0.000000e+00 : f32
    %0 = vector.broadcast %cst : f32 to vector<8x128xf32>
    %c0 = arith.constant 0 : index
    %c0_0 = arith.constant 0 : index
    %c0_1 = arith.constant 0 : index
    %1 = vector.load %arg0[%c0, %c0_0, %c0_1] : memref<8x8x1xf32, #tpu.memory_space<vmem>>, vector<1x8x1xf32>
    %2 = vector.shape_cast %1 : vector<1x8x1xf32> to vector<8x1xf32>
    %c0_2 = arith.constant 0 : index
    %c0_3 = arith.constant 0 : index
    %3 = vector.load %arg1[%c0_2, %c0_3] : memref<1x512xf32, #tpu.memory_space<vmem>>, vector<1x512xf32>
    %4 = vector.broadcast %2 : vector<8x1xf32> to vector<8x512xf32>
    %5 = vector.broadcast %3 : vector<1x512xf32> to vector<8x512xf32>
    %6 = arith.mulf %4, %5 : vector<8x512xf32>
    %c0_4 = arith.constant 0 : index
    %c0_5 = arith.constant 0 : index
    %7 = vector.load %arg2[%c0_4, %c0_5] : memref<1x512xf32, #tpu.memory_space<vmem>>, vector<1x512xf32>
    %8 = vector.broadcast %7 : vector<1x512xf32> to vector<8x512xf32>
    %9 = arith.addf %6, %8 : vector<8x512xf32>
    %c0_6 = arith.constant 0 : index
    %c0_7 = arith.constant 0 : index
    %10 = vector.load %arg3[%c0_6, %c0_7] : memref<128x512xf32, #tpu.memory_space<vmem>>, vector<128x512xf32>
    %cst_8 = arith.constant dense<0.000000e+00> : vector<8x512xf32>
    %11 = tpu.matmul %0, %10, %cst_8 {dimension_numbers = #tpu.dot_dimension_numbers<[1], [0], [0], [1], [0, 0, 1, 1], [], []>} : vector<8x128xf32>, vector<128x512xf32>, vector<8x512xf32> -> vector<8x512xf32>
    %12 = arith.addf %9, %11 : vector<8x512xf32>
    %13 = vector.extract_strided_slice %12 {offsets = [0, 0], sizes = [8, 128], strides = [1, 1]} : vector<8x512xf32> to vector<8x128xf32>
    %cst_9 = arith.constant 0.000000e+00 : f32
    %14 = vector.broadcast %cst_9 : f32 to vector<8x128xf32>
    %15 = arith.subf %14, %13 : vector<8x128xf32>
    %16 = math.exp %15 : vector<8x128xf32>
    %cst_10 = arith.constant 1.000000e+00 : f32
    %17 = vector.broadcast %cst_10 : f32 to vector<8x128xf32>
    %18 = arith.addf %17, %16 : vector<8x128xf32>
    %19 = tpu.reciprocal %18 : vector<8x128xf32> -> vector<8x128xf32>
    %20 = vector.extract_strided_slice %12 {offsets = [0, 128], sizes = [8, 128], strides = [1, 1]} : vector<8x512xf32> to vector<8x128xf32>
    %cst_11 = arith.constant 0.000000e+00 : f32
    %21 = vector.broadcast %cst_11 : f32 to vector<8x128xf32>
    %22 = arith.subf %21, %20 : vector<8x128xf32>
    %23 = math.exp %22 : vector<8x128xf32>
    %cst_12 = arith.constant 1.000000e+00 : f32
    %24 = vector.broadcast %cst_12 : f32 to vector<8x128xf32>
    %25 = arith.addf %24, %23 : vector<8x128xf32>
    %26 = tpu.reciprocal %25 : vector<8x128xf32> -> vector<8x128xf32>
    %27 = vector.extract_strided_slice %12 {offsets = [0, 256], sizes = [8, 128], strides = [1, 1]} : vector<8x512xf32> to vector<8x128xf32>
    %28 = math.tanh %27 : vector<8x128xf32>
    %29 = vector.extract_strided_slice %12 {offsets = [0, 384], sizes = [8, 128], strides = [1, 1]} : vector<8x512xf32> to vector<8x128xf32>
    %cst_13 = arith.constant 0.000000e+00 : f32
    %30 = vector.broadcast %cst_13 : f32 to vector<8x128xf32>
    %31 = arith.subf %30, %29 : vector<8x128xf32>
    %32 = math.exp %31 : vector<8x128xf32>
    %cst_14 = arith.constant 1.000000e+00 : f32
    %33 = vector.broadcast %cst_14 : f32 to vector<8x128xf32>
    %34 = arith.addf %33, %32 : vector<8x128xf32>
    %35 = tpu.reciprocal %34 : vector<8x128xf32> -> vector<8x128xf32>
    %36 = arith.mulf %26, %0 : vector<8x128xf32>
    %37 = arith.mulf %19, %28 : vector<8x128xf32>
    %38 = arith.addf %36, %37 : vector<8x128xf32>
    %39 = math.tanh %38 : vector<8x128xf32>
    %40 = arith.mulf %35, %39 : vector<8x128xf32>
    %c0_i32 = arith.constant 0 : i32
    %c0_15 = arith.constant 0 : index
    %c0_16 = arith.constant 0 : index
    %41 = vector.load %arg4[%c0_15, %c0_16] : memref<128x512xf32, #tpu.memory_space<vmem>>, vector<128x512xf32>
    %cst_17 = arith.constant dense<0.000000e+00> : vector<8x512xf32>
    %42 = tpu.matmul %40, %41, %cst_17 {dimension_numbers = #tpu.dot_dimension_numbers<[1], [0], [0], [1], [0, 0, 1, 1], [], []>} : vector<8x128xf32>, vector<128x512xf32>, vector<8x512xf32> -> vector<8x512xf32>
    %c0_18 = arith.constant 0 : index
    %c0_19 = arith.constant 0 : index
    %43 = vector.load %arg5[%c0_18, %c0_19] : memref<128x512xf32, #tpu.memory_space<vmem>>, vector<128x512xf32>
    %cst_20 = arith.constant dense<0.000000e+00> : vector<8x512xf32>
    %44 = tpu.matmul %0, %43, %cst_20 {dimension_numbers = #tpu.dot_dimension_numbers<[1], [0], [0], [1], [0, 0, 1, 1], [], []>} : vector<8x128xf32>, vector<128x512xf32>, vector<8x512xf32> -> vector<8x512xf32>
    %45 = arith.addf %42, %44 : vector<8x512xf32>
    %c0_21 = arith.constant 0 : index
    %c0_22 = arith.constant 0 : index
    %46 = vector.load %arg6[%c0_21, %c0_22] : memref<1x512xf32, #tpu.memory_space<vmem>>, vector<1x512xf32>
    %47 = vector.broadcast %46 : vector<1x512xf32> to vector<8x512xf32>
    %48 = arith.addf %45, %47 : vector<8x512xf32>
    %49 = vector.extract_strided_slice %48 {offsets = [0, 0], sizes = [8, 128], strides = [1, 1]} : vector<8x512xf32> to vector<8x128xf32>
    %cst_23 = arith.constant 0.000000e+00 : f32
    %50 = vector.broadcast %cst_23 : f32 to vector<8x128xf32>
    %51 = arith.subf %50, %49 : vector<8x128xf32>
    %52 = math.exp %51 : vector<8x128xf32>
    %cst_24 = arith.constant 1.000000e+00 : f32
    %53 = vector.broadcast %cst_24 : f32 to vector<8x128xf32>
    %54 = arith.addf %53, %52 : vector<8x128xf32>
    %55 = tpu.reciprocal %54 : vector<8x128xf32> -> vector<8x128xf32>
    %56 = vector.extract_strided_slice %48 {offsets = [0, 128], sizes = [8, 128], strides = [1, 1]} : vector<8x512xf32> to vector<8x128xf32>
    %cst_25 = arith.constant 0.000000e+00 : f32
    %57 = vector.broadcast %cst_25 : f32 to vector<8x128xf32>
    %58 = arith.subf %57, %56 : vector<8x128xf32>
    %59 = math.exp %58 : vector<8x128xf32>
    %cst_26 = arith.constant 1.000000e+00 : f32
    %60 = vector.broadcast %cst_26 : f32 to vector<8x128xf32>
    %61 = arith.addf %60, %59 : vector<8x128xf32>
    %62 = tpu.reciprocal %61 : vector<8x128xf32> -> vector<8x128xf32>
    %63 = vector.extract_strided_slice %48 {offsets = [0, 256], sizes = [8, 128], strides = [1, 1]} : vector<8x512xf32> to vector<8x128xf32>
    %64 = math.tanh %63 : vector<8x128xf32>
    %65 = vector.extract_strided_slice %48 {offsets = [0, 384], sizes = [8, 128], strides = [1, 1]} : vector<8x512xf32> to vector<8x128xf32>
    %cst_27 = arith.constant 0.000000e+00 : f32
    %66 = vector.broadcast %cst_27 : f32 to vector<8x128xf32>
    %67 = arith.subf %66, %65 : vector<8x128xf32>
    %68 = math.exp %67 : vector<8x128xf32>
    %cst_28 = arith.constant 1.000000e+00 : f32
    %69 = vector.broadcast %cst_28 : f32 to vector<8x128xf32>
    %70 = arith.addf %69, %68 : vector<8x128xf32>
    %71 = tpu.reciprocal %70 : vector<8x128xf32> -> vector<8x128xf32>
    %72 = arith.mulf %62, %0 : vector<8x128xf32>
    %73 = arith.mulf %55, %64 : vector<8x128xf32>
    %74 = arith.addf %72, %73 : vector<8x128xf32>
    %75 = math.tanh %74 : vector<8x128xf32>
    %76 = arith.mulf %71, %75 : vector<8x128xf32>
    %c1_i32 = arith.constant 1 : i32
    %77 = arith.addi %c0_i32, %c1_i32 : i32
    %78 = arith.index_cast %77 : i32 to index
    %c0_29 = arith.constant 0 : index
    %c0_30 = arith.constant 0 : index
    %79 = vector.load %arg0[%78, %c0_29, %c0_30] : memref<8x8x1xf32, #tpu.memory_space<vmem>>, vector<1x8x1xf32>
    %80 = vector.shape_cast %79 : vector<1x8x1xf32> to vector<8x1xf32>
    %c0_31 = arith.constant 0 : index
    %c0_32 = arith.constant 0 : index
    %81 = vector.load %arg1[%c0_31, %c0_32] : memref<1x512xf32, #tpu.memory_space<vmem>>, vector<1x512xf32>
    %82 = vector.broadcast %80 : vector<8x1xf32> to vector<8x512xf32>
    %83 = vector.broadcast %81 : vector<1x512xf32> to vector<8x512xf32>
    %84 = arith.mulf %82, %83 : vector<8x512xf32>
    %c0_33 = arith.constant 0 : index
    %c0_34 = arith.constant 0 : index
    %85 = vector.load %arg2[%c0_33, %c0_34] : memref<1x512xf32, #tpu.memory_space<vmem>>, vector<1x512xf32>
    %86 = vector.broadcast %85 : vector<1x512xf32> to vector<8x512xf32>
    %87 = arith.addf %84, %86 : vector<8x512xf32>
    %c0_35 = arith.constant 0 : index
    %c0_36 = arith.constant 0 : index
    %88 = vector.load %arg3[%c0_35, %c0_36] : memref<128x512xf32, #tpu.memory_space<vmem>>, vector<128x512xf32>
    %cst_37 = arith.constant dense<0.000000e+00> : vector<8x512xf32>
    %89 = tpu.matmul %40, %88, %cst_37 {dimension_numbers = #tpu.dot_dimension_numbers<[1], [0], [0], [1], [0, 0, 1, 1], [], []>} : vector<8x128xf32>, vector<128x512xf32>, vector<8x512xf32> -> vector<8x512xf32>
    %90 = arith.addf %87, %89 : vector<8x512xf32>
    %91 = vector.extract_strided_slice %90 {offsets = [0, 0], sizes = [8, 128], strides = [1, 1]} : vector<8x512xf32> to vector<8x128xf32>
    %cst_38 = arith.constant 0.000000e+00 : f32
    %92 = vector.broadcast %cst_38 : f32 to vector<8x128xf32>
    %93 = arith.subf %92, %91 : vector<8x128xf32>
    %94 = math.exp %93 : vector<8x128xf32>
    %cst_39 = arith.constant 1.000000e+00 : f32
    %95 = vector.broadcast %cst_39 : f32 to vector<8x128xf32>
    %96 = arith.addf %95, %94 : vector<8x128xf32>
    %97 = tpu.reciprocal %96 : vector<8x128xf32> -> vector<8x128xf32>
    %98 = vector.extract_strided_slice %90 {offsets = [0, 128], sizes = [8, 128], strides = [1, 1]} : vector<8x512xf32> to vector<8x128xf32>
    %cst_40 = arith.constant 0.000000e+00 : f32
    %99 = vector.broadcast %cst_40 : f32 to vector<8x128xf32>
    %100 = arith.subf %99, %98 : vector<8x128xf32>
    %101 = math.exp %100 : vector<8x128xf32>
    %cst_41 = arith.constant 1.000000e+00 : f32
    %102 = vector.broadcast %cst_41 : f32 to vector<8x128xf32>
    %103 = arith.addf %102, %101 : vector<8x128xf32>
    %104 = tpu.reciprocal %103 : vector<8x128xf32> -> vector<8x128xf32>
    %105 = vector.extract_strided_slice %90 {offsets = [0, 256], sizes = [8, 128], strides = [1, 1]} : vector<8x512xf32> to vector<8x128xf32>
    %106 = math.tanh %105 : vector<8x128xf32>
    %107 = vector.extract_strided_slice %90 {offsets = [0, 384], sizes = [8, 128], strides = [1, 1]} : vector<8x512xf32> to vector<8x128xf32>
    %cst_42 = arith.constant 0.000000e+00 : f32
    %108 = vector.broadcast %cst_42 : f32 to vector<8x128xf32>
    %109 = arith.subf %108, %107 : vector<8x128xf32>
    %110 = math.exp %109 : vector<8x128xf32>
    %cst_43 = arith.constant 1.000000e+00 : f32
    %111 = vector.broadcast %cst_43 : f32 to vector<8x128xf32>
    %112 = arith.addf %111, %110 : vector<8x128xf32>
    %113 = tpu.reciprocal %112 : vector<8x128xf32> -> vector<8x128xf32>
    %114 = arith.mulf %104, %38 : vector<8x128xf32>
    %115 = arith.mulf %97, %106 : vector<8x128xf32>
    %116 = arith.addf %114, %115 : vector<8x128xf32>
    %117 = math.tanh %116 : vector<8x128xf32>
    %118 = arith.mulf %113, %117 : vector<8x128xf32>
    %c1_i32_44 = arith.constant 1 : i32
    %c0_45 = arith.constant 0 : index
    %c0_46 = arith.constant 0 : index
    %119 = vector.load %arg4[%c0_45, %c0_46] : memref<128x512xf32, #tpu.memory_space<vmem>>, vector<128x512xf32>
    %cst_47 = arith.constant dense<0.000000e+00> : vector<8x512xf32>
    %120 = tpu.matmul %118, %119, %cst_47 {dimension_numbers = #tpu.dot_dimension_numbers<[1], [0], [0], [1], [0, 0, 1, 1], [], []>} : vector<8x128xf32>, vector<128x512xf32>, vector<8x512xf32> -> vector<8x512xf32>
    %c0_48 = arith.constant 0 : index
    %c0_49 = arith.constant 0 : index
    %121 = vector.load %arg5[%c0_48, %c0_49] : memref<128x512xf32, #tpu.memory_space<vmem>>, vector<128x512xf32>
    %cst_50 = arith.constant dense<0.000000e+00> : vector<8x512xf32>
    %122 = tpu.matmul %76, %121, %cst_50 {dimension_numbers = #tpu.dot_dimension_numbers<[1], [0], [0], [1], [0, 0, 1, 1], [], []>} : vector<8x128xf32>, vector<128x512xf32>, vector<8x512xf32> -> vector<8x512xf32>
    %123 = arith.addf %120, %122 : vector<8x512xf32>
    %c0_51 = arith.constant 0 : index
    %c0_52 = arith.constant 0 : index
    %124 = vector.load %arg6[%c0_51, %c0_52] : memref<1x512xf32, #tpu.memory_space<vmem>>, vector<1x512xf32>
    %125 = vector.broadcast %124 : vector<1x512xf32> to vector<8x512xf32>
    %126 = arith.addf %123, %125 : vector<8x512xf32>
    %127 = vector.extract_strided_slice %126 {offsets = [0, 0], sizes = [8, 128], strides = [1, 1]} : vector<8x512xf32> to vector<8x128xf32>
    %cst_53 = arith.constant 0.000000e+00 : f32
    %128 = vector.broadcast %cst_53 : f32 to vector<8x128xf32>
    %129 = arith.subf %128, %127 : vector<8x128xf32>
    %130 = math.exp %129 : vector<8x128xf32>
    %cst_54 = arith.constant 1.000000e+00 : f32
    %131 = vector.broadcast %cst_54 : f32 to vector<8x128xf32>
    %132 = arith.addf %131, %130 : vector<8x128xf32>
    %133 = tpu.reciprocal %132 : vector<8x128xf32> -> vector<8x128xf32>
    %134 = vector.extract_strided_slice %126 {offsets = [0, 128], sizes = [8, 128], strides = [1, 1]} : vector<8x512xf32> to vector<8x128xf32>
    %cst_55 = arith.constant 0.000000e+00 : f32
    %135 = vector.broadcast %cst_55 : f32 to vector<8x128xf32>
    %136 = arith.subf %135, %134 : vector<8x128xf32>
    %137 = math.exp %136 : vector<8x128xf32>
    %cst_56 = arith.constant 1.000000e+00 : f32
    %138 = vector.broadcast %cst_56 : f32 to vector<8x128xf32>
    %139 = arith.addf %138, %137 : vector<8x128xf32>
    %140 = tpu.reciprocal %139 : vector<8x128xf32> -> vector<8x128xf32>
    %141 = vector.extract_strided_slice %126 {offsets = [0, 256], sizes = [8, 128], strides = [1, 1]} : vector<8x512xf32> to vector<8x128xf32>
    %142 = math.tanh %141 : vector<8x128xf32>
    %143 = vector.extract_strided_slice %126 {offsets = [0, 384], sizes = [8, 128], strides = [1, 1]} : vector<8x512xf32> to vector<8x128xf32>
    %cst_57 = arith.constant 0.000000e+00 : f32
    %144 = vector.broadcast %cst_57 : f32 to vector<8x128xf32>
    %145 = arith.subf %144, %143 : vector<8x128xf32>
    %146 = math.exp %145 : vector<8x128xf32>
    %cst_58 = arith.constant 1.000000e+00 : f32
    %147 = vector.broadcast %cst_58 : f32 to vector<8x128xf32>
    %148 = arith.addf %147, %146 : vector<8x128xf32>
    %149 = tpu.reciprocal %148 : vector<8x128xf32> -> vector<8x128xf32>
    %150 = arith.mulf %140, %74 : vector<8x128xf32>
    %151 = arith.mulf %133, %142 : vector<8x128xf32>
    %152 = arith.addf %150, %151 : vector<8x128xf32>
    %153 = math.tanh %152 : vector<8x128xf32>
    %154 = arith.mulf %149, %153 : vector<8x128xf32>
    %c1_i32_59 = arith.constant 1 : i32
    %155 = arith.addi %c1_i32_44, %c1_i32_59 : i32
    %156 = arith.index_cast %155 : i32 to index
    %c0_60 = arith.constant 0 : index
    %c0_61 = arith.constant 0 : index
    %157 = vector.load %arg0[%156, %c0_60, %c0_61] : memref<8x8x1xf32, #tpu.memory_space<vmem>>, vector<1x8x1xf32>
    %158 = vector.shape_cast %157 : vector<1x8x1xf32> to vector<8x1xf32>
    %c0_62 = arith.constant 0 : index
    %c0_63 = arith.constant 0 : index
    %159 = vector.load %arg1[%c0_62, %c0_63] : memref<1x512xf32, #tpu.memory_space<vmem>>, vector<1x512xf32>
    %160 = vector.broadcast %158 : vector<8x1xf32> to vector<8x512xf32>
    %161 = vector.broadcast %159 : vector<1x512xf32> to vector<8x512xf32>
    %162 = arith.mulf %160, %161 : vector<8x512xf32>
    %c0_64 = arith.constant 0 : index
    %c0_65 = arith.constant 0 : index
    %163 = vector.load %arg2[%c0_64, %c0_65] : memref<1x512xf32, #tpu.memory_space<vmem>>, vector<1x512xf32>
    %164 = vector.broadcast %163 : vector<1x512xf32> to vector<8x512xf32>
    %165 = arith.addf %162, %164 : vector<8x512xf32>
    %c0_66 = arith.constant 0 : index
    %c0_67 = arith.constant 0 : index
    %166 = vector.load %arg3[%c0_66, %c0_67] : memref<128x512xf32, #tpu.memory_space<vmem>>, vector<128x512xf32>
    %cst_68 = arith.constant dense<0.000000e+00> : vector<8x512xf32>
    %167 = tpu.matmul %118, %166, %cst_68 {dimension_numbers = #tpu.dot_dimension_numbers<[1], [0], [0], [1], [0, 0, 1, 1], [], []>} : vector<8x128xf32>, vector<128x512xf32>, vector<8x512xf32> -> vector<8x512xf32>
    %168 = arith.addf %165, %167 : vector<8x512xf32>
    %169 = vector.extract_strided_slice %168 {offsets = [0, 0], sizes = [8, 128], strides = [1, 1]} : vector<8x512xf32> to vector<8x128xf32>
    %cst_69 = arith.constant 0.000000e+00 : f32
    %170 = vector.broadcast %cst_69 : f32 to vector<8x128xf32>
    %171 = arith.subf %170, %169 : vector<8x128xf32>
    %172 = math.exp %171 : vector<8x128xf32>
    %cst_70 = arith.constant 1.000000e+00 : f32
    %173 = vector.broadcast %cst_70 : f32 to vector<8x128xf32>
    %174 = arith.addf %173, %172 : vector<8x128xf32>
    %175 = tpu.reciprocal %174 : vector<8x128xf32> -> vector<8x128xf32>
    %176 = vector.extract_strided_slice %168 {offsets = [0, 128], sizes = [8, 128], strides = [1, 1]} : vector<8x512xf32> to vector<8x128xf32>
    %cst_71 = arith.constant 0.000000e+00 : f32
    %177 = vector.broadcast %cst_71 : f32 to vector<8x128xf32>
    %178 = arith.subf %177, %176 : vector<8x128xf32>
    %179 = math.exp %178 : vector<8x128xf32>
    %cst_72 = arith.constant 1.000000e+00 : f32
    %180 = vector.broadcast %cst_72 : f32 to vector<8x128xf32>
    %181 = arith.addf %180, %179 : vector<8x128xf32>
    %182 = tpu.reciprocal %181 : vector<8x128xf32> -> vector<8x128xf32>
    %183 = vector.extract_strided_slice %168 {offsets = [0, 256], sizes = [8, 128], strides = [1, 1]} : vector<8x512xf32> to vector<8x128xf32>
    %184 = math.tanh %183 : vector<8x128xf32>
    %185 = vector.extract_strided_slice %168 {offsets = [0, 384], sizes = [8, 128], strides = [1, 1]} : vector<8x512xf32> to vector<8x128xf32>
    %cst_73 = arith.constant 0.000000e+00 : f32
    %186 = vector.broadcast %cst_73 : f32 to vector<8x128xf32>
    %187 = arith.subf %186, %185 : vector<8x128xf32>
    %188 = math.exp %187 : vector<8x128xf32>
    %cst_74 = arith.constant 1.000000e+00 : f32
    %189 = vector.broadcast %cst_74 : f32 to vector<8x128xf32>
    %190 = arith.addf %189, %188 : vector<8x128xf32>
    %191 = tpu.reciprocal %190 : vector<8x128xf32> -> vector<8x128xf32>
    %192 = arith.mulf %182, %116 : vector<8x128xf32>
    %193 = arith.mulf %175, %184 : vector<8x128xf32>
    %194 = arith.addf %192, %193 : vector<8x128xf32>
    %195 = math.tanh %194 : vector<8x128xf32>
    %196 = arith.mulf %191, %195 : vector<8x128xf32>
    %c2_i32 = arith.constant 2 : i32
    %c0_75 = arith.constant 0 : index
    %c0_76 = arith.constant 0 : index
    %197 = vector.load %arg4[%c0_75, %c0_76] : memref<128x512xf32, #tpu.memory_space<vmem>>, vector<128x512xf32>
    %cst_77 = arith.constant dense<0.000000e+00> : vector<8x512xf32>
    %198 = tpu.matmul %196, %197, %cst_77 {dimension_numbers = #tpu.dot_dimension_numbers<[1], [0], [0], [1], [0, 0, 1, 1], [], []>} : vector<8x128xf32>, vector<128x512xf32>, vector<8x512xf32> -> vector<8x512xf32>
    %c0_78 = arith.constant 0 : index
    %c0_79 = arith.constant 0 : index
    %199 = vector.load %arg5[%c0_78, %c0_79] : memref<128x512xf32, #tpu.memory_space<vmem>>, vector<128x512xf32>
    %cst_80 = arith.constant dense<0.000000e+00> : vector<8x512xf32>
    %200 = tpu.matmul %154, %199, %cst_80 {dimension_numbers = #tpu.dot_dimension_numbers<[1], [0], [0], [1], [0, 0, 1, 1], [], []>} : vector<8x128xf32>, vector<128x512xf32>, vector<8x512xf32> -> vector<8x512xf32>
    %201 = arith.addf %198, %200 : vector<8x512xf32>
    %c0_81 = arith.constant 0 : index
    %c0_82 = arith.constant 0 : index
    %202 = vector.load %arg6[%c0_81, %c0_82] : memref<1x512xf32, #tpu.memory_space<vmem>>, vector<1x512xf32>
    %203 = vector.broadcast %202 : vector<1x512xf32> to vector<8x512xf32>
    %204 = arith.addf %201, %203 : vector<8x512xf32>
    %205 = vector.extract_strided_slice %204 {offsets = [0, 0], sizes = [8, 128], strides = [1, 1]} : vector<8x512xf32> to vector<8x128xf32>
    %cst_83 = arith.constant 0.000000e+00 : f32
    %206 = vector.broadcast %cst_83 : f32 to vector<8x128xf32>
    %207 = arith.subf %206, %205 : vector<8x128xf32>
    %208 = math.exp %207 : vector<8x128xf32>
    %cst_84 = arith.constant 1.000000e+00 : f32
    %209 = vector.broadcast %cst_84 : f32 to vector<8x128xf32>
    %210 = arith.addf %209, %208 : vector<8x128xf32>
    %211 = tpu.reciprocal %210 : vector<8x128xf32> -> vector<8x128xf32>
    %212 = vector.extract_strided_slice %204 {offsets = [0, 128], sizes = [8, 128], strides = [1, 1]} : vector<8x512xf32> to vector<8x128xf32>
    %cst_85 = arith.constant 0.000000e+00 : f32
    %213 = vector.broadcast %cst_85 : f32 to vector<8x128xf32>
    %214 = arith.subf %213, %212 : vector<8x128xf32>
    %215 = math.exp %214 : vector<8x128xf32>
    %cst_86 = arith.constant 1.000000e+00 : f32
    %216 = vector.broadcast %cst_86 : f32 to vector<8x128xf32>
    %217 = arith.addf %216, %215 : vector<8x128xf32>
    %218 = tpu.reciprocal %217 : vector<8x128xf32> -> vector<8x128xf32>
    %219 = vector.extract_strided_slice %204 {offsets = [0, 256], sizes = [8, 128], strides = [1, 1]} : vector<8x512xf32> to vector<8x128xf32>
    %220 = math.tanh %219 : vector<8x128xf32>
    %221 = vector.extract_strided_slice %204 {offsets = [0, 384], sizes = [8, 128], strides = [1, 1]} : vector<8x512xf32> to vector<8x128xf32>
    %cst_87 = arith.constant 0.000000e+00 : f32
    %222 = vector.broadcast %cst_87 : f32 to vector<8x128xf32>
    %223 = arith.subf %222, %221 : vector<8x128xf32>
    %224 = math.exp %223 : vector<8x128xf32>
    %cst_88 = arith.constant 1.000000e+00 : f32
    %225 = vector.broadcast %cst_88 : f32 to vector<8x128xf32>
    %226 = arith.addf %225, %224 : vector<8x128xf32>
    %227 = tpu.reciprocal %226 : vector<8x128xf32> -> vector<8x128xf32>
    %228 = arith.mulf %218, %152 : vector<8x128xf32>
    %229 = arith.mulf %211, %220 : vector<8x128xf32>
    %230 = arith.addf %228, %229 : vector<8x128xf32>
    %231 = math.tanh %230 : vector<8x128xf32>
    %232 = arith.mulf %227, %231 : vector<8x128xf32>
    %c1_i32_89 = arith.constant 1 : i32
    %233 = arith.addi %c2_i32, %c1_i32_89 : i32
    %234 = arith.index_cast %233 : i32 to index
    %c0_90 = arith.constant 0 : index
    %c0_91 = arith.constant 0 : index
    %235 = vector.load %arg0[%234, %c0_90, %c0_91] : memref<8x8x1xf32, #tpu.memory_space<vmem>>, vector<1x8x1xf32>
    %236 = vector.shape_cast %235 : vector<1x8x1xf32> to vector<8x1xf32>
    %c0_92 = arith.constant 0 : index
    %c0_93 = arith.constant 0 : index
    %237 = vector.load %arg1[%c0_92, %c0_93] : memref<1x512xf32, #tpu.memory_space<vmem>>, vector<1x512xf32>
    %238 = vector.broadcast %236 : vector<8x1xf32> to vector<8x512xf32>
    %239 = vector.broadcast %237 : vector<1x512xf32> to vector<8x512xf32>
    %240 = arith.mulf %238, %239 : vector<8x512xf32>
    %c0_94 = arith.constant 0 : index
    %c0_95 = arith.constant 0 : index
    %241 = vector.load %arg2[%c0_94, %c0_95] : memref<1x512xf32, #tpu.memory_space<vmem>>, vector<1x512xf32>
    %242 = vector.broadcast %241 : vector<1x512xf32> to vector<8x512xf32>
    %243 = arith.addf %240, %242 : vector<8x512xf32>
    %c0_96 = arith.constant 0 : index
    %c0_97 = arith.constant 0 : index
    %244 = vector.load %arg3[%c0_96, %c0_97] : memref<128x512xf32, #tpu.memory_space<vmem>>, vector<128x512xf32>
    %cst_98 = arith.constant dense<0.000000e+00> : vector<8x512xf32>
    %245 = tpu.matmul %196, %244, %cst_98 {dimension_numbers = #tpu.dot_dimension_numbers<[1], [0], [0], [1], [0, 0, 1, 1], [], []>} : vector<8x128xf32>, vector<128x512xf32>, vector<8x512xf32> -> vector<8x512xf32>
    %246 = arith.addf %243, %245 : vector<8x512xf32>
    %247 = vector.extract_strided_slice %246 {offsets = [0, 0], sizes = [8, 128], strides = [1, 1]} : vector<8x512xf32> to vector<8x128xf32>
    %cst_99 = arith.constant 0.000000e+00 : f32
    %248 = vector.broadcast %cst_99 : f32 to vector<8x128xf32>
    %249 = arith.subf %248, %247 : vector<8x128xf32>
    %250 = math.exp %249 : vector<8x128xf32>
    %cst_100 = arith.constant 1.000000e+00 : f32
    %251 = vector.broadcast %cst_100 : f32 to vector<8x128xf32>
    %252 = arith.addf %251, %250 : vector<8x128xf32>
    %253 = tpu.reciprocal %252 : vector<8x128xf32> -> vector<8x128xf32>
    %254 = vector.extract_strided_slice %246 {offsets = [0, 128], sizes = [8, 128], strides = [1, 1]} : vector<8x512xf32> to vector<8x128xf32>
    %cst_101 = arith.constant 0.000000e+00 : f32
    %255 = vector.broadcast %cst_101 : f32 to vector<8x128xf32>
    %256 = arith.subf %255, %254 : vector<8x128xf32>
    %257 = math.exp %256 : vector<8x128xf32>
    %cst_102 = arith.constant 1.000000e+00 : f32
    %258 = vector.broadcast %cst_102 : f32 to vector<8x128xf32>
    %259 = arith.addf %258, %257 : vector<8x128xf32>
    %260 = tpu.reciprocal %259 : vector<8x128xf32> -> vector<8x128xf32>
    %261 = vector.extract_strided_slice %246 {offsets = [0, 256], sizes = [8, 128], strides = [1, 1]} : vector<8x512xf32> to vector<8x128xf32>
    %262 = math.tanh %261 : vector<8x128xf32>
    %263 = vector.extract_strided_slice %246 {offsets = [0, 384], sizes = [8, 128], strides = [1, 1]} : vector<8x512xf32> to vector<8x128xf32>
    %cst_103 = arith.constant 0.000000e+00 : f32
    %264 = vector.broadcast %cst_103 : f32 to vector<8x128xf32>
    %265 = arith.subf %264, %263 : vector<8x128xf32>
    %266 = math.exp %265 : vector<8x128xf32>
    %cst_104 = arith.constant 1.000000e+00 : f32
    %267 = vector.broadcast %cst_104 : f32 to vector<8x128xf32>
    %268 = arith.addf %267, %266 : vector<8x128xf32>
    %269 = tpu.reciprocal %268 : vector<8x128xf32> -> vector<8x128xf32>
    %270 = arith.mulf %260, %194 : vector<8x128xf32>
    %271 = arith.mulf %253, %262 : vector<8x128xf32>
    %272 = arith.addf %270, %271 : vector<8x128xf32>
    %273 = math.tanh %272 : vector<8x128xf32>
    %274 = arith.mulf %269, %273 : vector<8x128xf32>
    %c3_i32 = arith.constant 3 : i32
    %c0_105 = arith.constant 0 : index
    %c0_106 = arith.constant 0 : index
    %275 = vector.load %arg4[%c0_105, %c0_106] : memref<128x512xf32, #tpu.memory_space<vmem>>, vector<128x512xf32>
    %cst_107 = arith.constant dense<0.000000e+00> : vector<8x512xf32>
    %276 = tpu.matmul %274, %275, %cst_107 {dimension_numbers = #tpu.dot_dimension_numbers<[1], [0], [0], [1], [0, 0, 1, 1], [], []>} : vector<8x128xf32>, vector<128x512xf32>, vector<8x512xf32> -> vector<8x512xf32>
    %c0_108 = arith.constant 0 : index
    %c0_109 = arith.constant 0 : index
    %277 = vector.load %arg5[%c0_108, %c0_109] : memref<128x512xf32, #tpu.memory_space<vmem>>, vector<128x512xf32>
    %cst_110 = arith.constant dense<0.000000e+00> : vector<8x512xf32>
    %278 = tpu.matmul %232, %277, %cst_110 {dimension_numbers = #tpu.dot_dimension_numbers<[1], [0], [0], [1], [0, 0, 1, 1], [], []>} : vector<8x128xf32>, vector<128x512xf32>, vector<8x512xf32> -> vector<8x512xf32>
    %279 = arith.addf %276, %278 : vector<8x512xf32>
    %c0_111 = arith.constant 0 : index
    %c0_112 = arith.constant 0 : index
    %280 = vector.load %arg6[%c0_111, %c0_112] : memref<1x512xf32, #tpu.memory_space<vmem>>, vector<1x512xf32>
    %281 = vector.broadcast %280 : vector<1x512xf32> to vector<8x512xf32>
    %282 = arith.addf %279, %281 : vector<8x512xf32>
    %283 = vector.extract_strided_slice %282 {offsets = [0, 0], sizes = [8, 128], strides = [1, 1]} : vector<8x512xf32> to vector<8x128xf32>
    %cst_113 = arith.constant 0.000000e+00 : f32
    %284 = vector.broadcast %cst_113 : f32 to vector<8x128xf32>
    %285 = arith.subf %284, %283 : vector<8x128xf32>
    %286 = math.exp %285 : vector<8x128xf32>
    %cst_114 = arith.constant 1.000000e+00 : f32
    %287 = vector.broadcast %cst_114 : f32 to vector<8x128xf32>
    %288 = arith.addf %287, %286 : vector<8x128xf32>
    %289 = tpu.reciprocal %288 : vector<8x128xf32> -> vector<8x128xf32>
    %290 = vector.extract_strided_slice %282 {offsets = [0, 128], sizes = [8, 128], strides = [1, 1]} : vector<8x512xf32> to vector<8x128xf32>
    %cst_115 = arith.constant 0.000000e+00 : f32
    %291 = vector.broadcast %cst_115 : f32 to vector<8x128xf32>
    %292 = arith.subf %291, %290 : vector<8x128xf32>
    %293 = math.exp %292 : vector<8x128xf32>
    %cst_116 = arith.constant 1.000000e+00 : f32
    %294 = vector.broadcast %cst_116 : f32 to vector<8x128xf32>
    %295 = arith.addf %294, %293 : vector<8x128xf32>
    %296 = tpu.reciprocal %295 : vector<8x128xf32> -> vector<8x128xf32>
    %297 = vector.extract_strided_slice %282 {offsets = [0, 256], sizes = [8, 128], strides = [1, 1]} : vector<8x512xf32> to vector<8x128xf32>
    %298 = math.tanh %297 : vector<8x128xf32>
    %299 = vector.extract_strided_slice %282 {offsets = [0, 384], sizes = [8, 128], strides = [1, 1]} : vector<8x512xf32> to vector<8x128xf32>
    %cst_117 = arith.constant 0.000000e+00 : f32
    %300 = vector.broadcast %cst_117 : f32 to vector<8x128xf32>
    %301 = arith.subf %300, %299 : vector<8x128xf32>
    %302 = math.exp %301 : vector<8x128xf32>
    %cst_118 = arith.constant 1.000000e+00 : f32
    %303 = vector.broadcast %cst_118 : f32 to vector<8x128xf32>
    %304 = arith.addf %303, %302 : vector<8x128xf32>
    %305 = tpu.reciprocal %304 : vector<8x128xf32> -> vector<8x128xf32>
    %306 = arith.mulf %296, %230 : vector<8x128xf32>
    %307 = arith.mulf %289, %298 : vector<8x128xf32>
    %308 = arith.addf %306, %307 : vector<8x128xf32>
    %309 = math.tanh %308 : vector<8x128xf32>
    %310 = arith.mulf %305, %309 : vector<8x128xf32>
    %c1_i32_119 = arith.constant 1 : i32
    %311 = arith.addi %c3_i32, %c1_i32_119 : i32
    %312 = arith.index_cast %311 : i32 to index
    %c0_120 = arith.constant 0 : index
    %c0_121 = arith.constant 0 : index
    %313 = vector.load %arg0[%312, %c0_120, %c0_121] : memref<8x8x1xf32, #tpu.memory_space<vmem>>, vector<1x8x1xf32>
    %314 = vector.shape_cast %313 : vector<1x8x1xf32> to vector<8x1xf32>
    %c0_122 = arith.constant 0 : index
    %c0_123 = arith.constant 0 : index
    %315 = vector.load %arg1[%c0_122, %c0_123] : memref<1x512xf32, #tpu.memory_space<vmem>>, vector<1x512xf32>
    %316 = vector.broadcast %314 : vector<8x1xf32> to vector<8x512xf32>
    %317 = vector.broadcast %315 : vector<1x512xf32> to vector<8x512xf32>
    %318 = arith.mulf %316, %317 : vector<8x512xf32>
    %c0_124 = arith.constant 0 : index
    %c0_125 = arith.constant 0 : index
    %319 = vector.load %arg2[%c0_124, %c0_125] : memref<1x512xf32, #tpu.memory_space<vmem>>, vector<1x512xf32>
    %320 = vector.broadcast %319 : vector<1x512xf32> to vector<8x512xf32>
    %321 = arith.addf %318, %320 : vector<8x512xf32>
    %c0_126 = arith.constant 0 : index
    %c0_127 = arith.constant 0 : index
    %322 = vector.load %arg3[%c0_126, %c0_127] : memref<128x512xf32, #tpu.memory_space<vmem>>, vector<128x512xf32>
    %cst_128 = arith.constant dense<0.000000e+00> : vector<8x512xf32>
    %323 = tpu.matmul %274, %322, %cst_128 {dimension_numbers = #tpu.dot_dimension_numbers<[1], [0], [0], [1], [0, 0, 1, 1], [], []>} : vector<8x128xf32>, vector<128x512xf32>, vector<8x512xf32> -> vector<8x512xf32>
    %324 = arith.addf %321, %323 : vector<8x512xf32>
    %325 = vector.extract_strided_slice %324 {offsets = [0, 0], sizes = [8, 128], strides = [1, 1]} : vector<8x512xf32> to vector<8x128xf32>
    %cst_129 = arith.constant 0.000000e+00 : f32
    %326 = vector.broadcast %cst_129 : f32 to vector<8x128xf32>
    %327 = arith.subf %326, %325 : vector<8x128xf32>
    %328 = math.exp %327 : vector<8x128xf32>
    %cst_130 = arith.constant 1.000000e+00 : f32
    %329 = vector.broadcast %cst_130 : f32 to vector<8x128xf32>
    %330 = arith.addf %329, %328 : vector<8x128xf32>
    %331 = tpu.reciprocal %330 : vector<8x128xf32> -> vector<8x128xf32>
    %332 = vector.extract_strided_slice %324 {offsets = [0, 128], sizes = [8, 128], strides = [1, 1]} : vector<8x512xf32> to vector<8x128xf32>
    %cst_131 = arith.constant 0.000000e+00 : f32
    %333 = vector.broadcast %cst_131 : f32 to vector<8x128xf32>
    %334 = arith.subf %333, %332 : vector<8x128xf32>
    %335 = math.exp %334 : vector<8x128xf32>
    %cst_132 = arith.constant 1.000000e+00 : f32
    %336 = vector.broadcast %cst_132 : f32 to vector<8x128xf32>
    %337 = arith.addf %336, %335 : vector<8x128xf32>
    %338 = tpu.reciprocal %337 : vector<8x128xf32> -> vector<8x128xf32>
    %339 = vector.extract_strided_slice %324 {offsets = [0, 256], sizes = [8, 128], strides = [1, 1]} : vector<8x512xf32> to vector<8x128xf32>
    %340 = math.tanh %339 : vector<8x128xf32>
    %341 = vector.extract_strided_slice %324 {offsets = [0, 384], sizes = [8, 128], strides = [1, 1]} : vector<8x512xf32> to vector<8x128xf32>
    %cst_133 = arith.constant 0.000000e+00 : f32
    %342 = vector.broadcast %cst_133 : f32 to vector<8x128xf32>
    %343 = arith.subf %342, %341 : vector<8x128xf32>
    %344 = math.exp %343 : vector<8x128xf32>
    %cst_134 = arith.constant 1.000000e+00 : f32
    %345 = vector.broadcast %cst_134 : f32 to vector<8x128xf32>
    %346 = arith.addf %345, %344 : vector<8x128xf32>
    %347 = tpu.reciprocal %346 : vector<8x128xf32> -> vector<8x128xf32>
    %348 = arith.mulf %338, %272 : vector<8x128xf32>
    %349 = arith.mulf %331, %340 : vector<8x128xf32>
    %350 = arith.addf %348, %349 : vector<8x128xf32>
    %351 = math.tanh %350 : vector<8x128xf32>
    %352 = arith.mulf %347, %351 : vector<8x128xf32>
    %c4_i32 = arith.constant 4 : i32
    %c0_135 = arith.constant 0 : index
    %c0_136 = arith.constant 0 : index
    %353 = vector.load %arg4[%c0_135, %c0_136] : memref<128x512xf32, #tpu.memory_space<vmem>>, vector<128x512xf32>
    %cst_137 = arith.constant dense<0.000000e+00> : vector<8x512xf32>
    %354 = tpu.matmul %352, %353, %cst_137 {dimension_numbers = #tpu.dot_dimension_numbers<[1], [0], [0], [1], [0, 0, 1, 1], [], []>} : vector<8x128xf32>, vector<128x512xf32>, vector<8x512xf32> -> vector<8x512xf32>
    %c0_138 = arith.constant 0 : index
    %c0_139 = arith.constant 0 : index
    %355 = vector.load %arg5[%c0_138, %c0_139] : memref<128x512xf32, #tpu.memory_space<vmem>>, vector<128x512xf32>
    %cst_140 = arith.constant dense<0.000000e+00> : vector<8x512xf32>
    %356 = tpu.matmul %310, %355, %cst_140 {dimension_numbers = #tpu.dot_dimension_numbers<[1], [0], [0], [1], [0, 0, 1, 1], [], []>} : vector<8x128xf32>, vector<128x512xf32>, vector<8x512xf32> -> vector<8x512xf32>
    %357 = arith.addf %354, %356 : vector<8x512xf32>
    %c0_141 = arith.constant 0 : index
    %c0_142 = arith.constant 0 : index
    %358 = vector.load %arg6[%c0_141, %c0_142] : memref<1x512xf32, #tpu.memory_space<vmem>>, vector<1x512xf32>
    %359 = vector.broadcast %358 : vector<1x512xf32> to vector<8x512xf32>
    %360 = arith.addf %357, %359 : vector<8x512xf32>
    %361 = vector.extract_strided_slice %360 {offsets = [0, 0], sizes = [8, 128], strides = [1, 1]} : vector<8x512xf32> to vector<8x128xf32>
    %cst_143 = arith.constant 0.000000e+00 : f32
    %362 = vector.broadcast %cst_143 : f32 to vector<8x128xf32>
    %363 = arith.subf %362, %361 : vector<8x128xf32>
    %364 = math.exp %363 : vector<8x128xf32>
    %cst_144 = arith.constant 1.000000e+00 : f32
    %365 = vector.broadcast %cst_144 : f32 to vector<8x128xf32>
    %366 = arith.addf %365, %364 : vector<8x128xf32>
    %367 = tpu.reciprocal %366 : vector<8x128xf32> -> vector<8x128xf32>
    %368 = vector.extract_strided_slice %360 {offsets = [0, 128], sizes = [8, 128], strides = [1, 1]} : vector<8x512xf32> to vector<8x128xf32>
    %cst_145 = arith.constant 0.000000e+00 : f32
    %369 = vector.broadcast %cst_145 : f32 to vector<8x128xf32>
    %370 = arith.subf %369, %368 : vector<8x128xf32>
    %371 = math.exp %370 : vector<8x128xf32>
    %cst_146 = arith.constant 1.000000e+00 : f32
    %372 = vector.broadcast %cst_146 : f32 to vector<8x128xf32>
    %373 = arith.addf %372, %371 : vector<8x128xf32>
    %374 = tpu.reciprocal %373 : vector<8x128xf32> -> vector<8x128xf32>
    %375 = vector.extract_strided_slice %360 {offsets = [0, 256], sizes = [8, 128], strides = [1, 1]} : vector<8x512xf32> to vector<8x128xf32>
    %376 = math.tanh %375 : vector<8x128xf32>
    %377 = vector.extract_strided_slice %360 {offsets = [0, 384], sizes = [8, 128], strides = [1, 1]} : vector<8x512xf32> to vector<8x128xf32>
    %cst_147 = arith.constant 0.000000e+00 : f32
    %378 = vector.broadcast %cst_147 : f32 to vector<8x128xf32>
    %379 = arith.subf %378, %377 : vector<8x128xf32>
    %380 = math.exp %379 : vector<8x128xf32>
    %cst_148 = arith.constant 1.000000e+00 : f32
    %381 = vector.broadcast %cst_148 : f32 to vector<8x128xf32>
    %382 = arith.addf %381, %380 : vector<8x128xf32>
    %383 = tpu.reciprocal %382 : vector<8x128xf32> -> vector<8x128xf32>
    %384 = arith.mulf %374, %308 : vector<8x128xf32>
    %385 = arith.mulf %367, %376 : vector<8x128xf32>
    %386 = arith.addf %384, %385 : vector<8x128xf32>
    %387 = math.tanh %386 : vector<8x128xf32>
    %388 = arith.mulf %383, %387 : vector<8x128xf32>
    %c1_i32_149 = arith.constant 1 : i32
    %389 = arith.addi %c4_i32, %c1_i32_149 : i32
    %390 = arith.index_cast %389 : i32 to index
    %c0_150 = arith.constant 0 : index
    %c0_151 = arith.constant 0 : index
    %391 = vector.load %arg0[%390, %c0_150, %c0_151] : memref<8x8x1xf32, #tpu.memory_space<vmem>>, vector<1x8x1xf32>
    %392 = vector.shape_cast %391 : vector<1x8x1xf32> to vector<8x1xf32>
    %c0_152 = arith.constant 0 : index
    %c0_153 = arith.constant 0 : index
    %393 = vector.load %arg1[%c0_152, %c0_153] : memref<1x512xf32, #tpu.memory_space<vmem>>, vector<1x512xf32>
    %394 = vector.broadcast %392 : vector<8x1xf32> to vector<8x512xf32>
    %395 = vector.broadcast %393 : vector<1x512xf32> to vector<8x512xf32>
    %396 = arith.mulf %394, %395 : vector<8x512xf32>
    %c0_154 = arith.constant 0 : index
    %c0_155 = arith.constant 0 : index
    %397 = vector.load %arg2[%c0_154, %c0_155] : memref<1x512xf32, #tpu.memory_space<vmem>>, vector<1x512xf32>
    %398 = vector.broadcast %397 : vector<1x512xf32> to vector<8x512xf32>
    %399 = arith.addf %396, %398 : vector<8x512xf32>
    %c0_156 = arith.constant 0 : index
    %c0_157 = arith.constant 0 : index
    %400 = vector.load %arg3[%c0_156, %c0_157] : memref<128x512xf32, #tpu.memory_space<vmem>>, vector<128x512xf32>
    %cst_158 = arith.constant dense<0.000000e+00> : vector<8x512xf32>
    %401 = tpu.matmul %352, %400, %cst_158 {dimension_numbers = #tpu.dot_dimension_numbers<[1], [0], [0], [1], [0, 0, 1, 1], [], []>} : vector<8x128xf32>, vector<128x512xf32>, vector<8x512xf32> -> vector<8x512xf32>
    %402 = arith.addf %399, %401 : vector<8x512xf32>
    %403 = vector.extract_strided_slice %402 {offsets = [0, 0], sizes = [8, 128], strides = [1, 1]} : vector<8x512xf32> to vector<8x128xf32>
    %cst_159 = arith.constant 0.000000e+00 : f32
    %404 = vector.broadcast %cst_159 : f32 to vector<8x128xf32>
    %405 = arith.subf %404, %403 : vector<8x128xf32>
    %406 = math.exp %405 : vector<8x128xf32>
    %cst_160 = arith.constant 1.000000e+00 : f32
    %407 = vector.broadcast %cst_160 : f32 to vector<8x128xf32>
    %408 = arith.addf %407, %406 : vector<8x128xf32>
    %409 = tpu.reciprocal %408 : vector<8x128xf32> -> vector<8x128xf32>
    %410 = vector.extract_strided_slice %402 {offsets = [0, 128], sizes = [8, 128], strides = [1, 1]} : vector<8x512xf32> to vector<8x128xf32>
    %cst_161 = arith.constant 0.000000e+00 : f32
    %411 = vector.broadcast %cst_161 : f32 to vector<8x128xf32>
    %412 = arith.subf %411, %410 : vector<8x128xf32>
    %413 = math.exp %412 : vector<8x128xf32>
    %cst_162 = arith.constant 1.000000e+00 : f32
    %414 = vector.broadcast %cst_162 : f32 to vector<8x128xf32>
    %415 = arith.addf %414, %413 : vector<8x128xf32>
    %416 = tpu.reciprocal %415 : vector<8x128xf32> -> vector<8x128xf32>
    %417 = vector.extract_strided_slice %402 {offsets = [0, 256], sizes = [8, 128], strides = [1, 1]} : vector<8x512xf32> to vector<8x128xf32>
    %418 = math.tanh %417 : vector<8x128xf32>
    %419 = vector.extract_strided_slice %402 {offsets = [0, 384], sizes = [8, 128], strides = [1, 1]} : vector<8x512xf32> to vector<8x128xf32>
    %cst_163 = arith.constant 0.000000e+00 : f32
    %420 = vector.broadcast %cst_163 : f32 to vector<8x128xf32>
    %421 = arith.subf %420, %419 : vector<8x128xf32>
    %422 = math.exp %421 : vector<8x128xf32>
    %cst_164 = arith.constant 1.000000e+00 : f32
    %423 = vector.broadcast %cst_164 : f32 to vector<8x128xf32>
    %424 = arith.addf %423, %422 : vector<8x128xf32>
    %425 = tpu.reciprocal %424 : vector<8x128xf32> -> vector<8x128xf32>
    %426 = arith.mulf %416, %350 : vector<8x128xf32>
    %427 = arith.mulf %409, %418 : vector<8x128xf32>
    %428 = arith.addf %426, %427 : vector<8x128xf32>
    %429 = math.tanh %428 : vector<8x128xf32>
    %430 = arith.mulf %425, %429 : vector<8x128xf32>
    %c5_i32 = arith.constant 5 : i32
    %c0_165 = arith.constant 0 : index
    %c0_166 = arith.constant 0 : index
    %431 = vector.load %arg4[%c0_165, %c0_166] : memref<128x512xf32, #tpu.memory_space<vmem>>, vector<128x512xf32>
    %cst_167 = arith.constant dense<0.000000e+00> : vector<8x512xf32>
    %432 = tpu.matmul %430, %431, %cst_167 {dimension_numbers = #tpu.dot_dimension_numbers<[1], [0], [0], [1], [0, 0, 1, 1], [], []>} : vector<8x128xf32>, vector<128x512xf32>, vector<8x512xf32> -> vector<8x512xf32>
    %c0_168 = arith.constant 0 : index
    %c0_169 = arith.constant 0 : index
    %433 = vector.load %arg5[%c0_168, %c0_169] : memref<128x512xf32, #tpu.memory_space<vmem>>, vector<128x512xf32>
    %cst_170 = arith.constant dense<0.000000e+00> : vector<8x512xf32>
    %434 = tpu.matmul %388, %433, %cst_170 {dimension_numbers = #tpu.dot_dimension_numbers<[1], [0], [0], [1], [0, 0, 1, 1], [], []>} : vector<8x128xf32>, vector<128x512xf32>, vector<8x512xf32> -> vector<8x512xf32>
    %435 = arith.addf %432, %434 : vector<8x512xf32>
    %c0_171 = arith.constant 0 : index
    %c0_172 = arith.constant 0 : index
    %436 = vector.load %arg6[%c0_171, %c0_172] : memref<1x512xf32, #tpu.memory_space<vmem>>, vector<1x512xf32>
    %437 = vector.broadcast %436 : vector<1x512xf32> to vector<8x512xf32>
    %438 = arith.addf %435, %437 : vector<8x512xf32>
    %439 = vector.extract_strided_slice %438 {offsets = [0, 0], sizes = [8, 128], strides = [1, 1]} : vector<8x512xf32> to vector<8x128xf32>
    %cst_173 = arith.constant 0.000000e+00 : f32
    %440 = vector.broadcast %cst_173 : f32 to vector<8x128xf32>
    %441 = arith.subf %440, %439 : vector<8x128xf32>
    %442 = math.exp %441 : vector<8x128xf32>
    %cst_174 = arith.constant 1.000000e+00 : f32
    %443 = vector.broadcast %cst_174 : f32 to vector<8x128xf32>
    %444 = arith.addf %443, %442 : vector<8x128xf32>
    %445 = tpu.reciprocal %444 : vector<8x128xf32> -> vector<8x128xf32>
    %446 = vector.extract_strided_slice %438 {offsets = [0, 128], sizes = [8, 128], strides = [1, 1]} : vector<8x512xf32> to vector<8x128xf32>
    %cst_175 = arith.constant 0.000000e+00 : f32
    %447 = vector.broadcast %cst_175 : f32 to vector<8x128xf32>
    %448 = arith.subf %447, %446 : vector<8x128xf32>
    %449 = math.exp %448 : vector<8x128xf32>
    %cst_176 = arith.constant 1.000000e+00 : f32
    %450 = vector.broadcast %cst_176 : f32 to vector<8x128xf32>
    %451 = arith.addf %450, %449 : vector<8x128xf32>
    %452 = tpu.reciprocal %451 : vector<8x128xf32> -> vector<8x128xf32>
    %453 = vector.extract_strided_slice %438 {offsets = [0, 256], sizes = [8, 128], strides = [1, 1]} : vector<8x512xf32> to vector<8x128xf32>
    %454 = math.tanh %453 : vector<8x128xf32>
    %455 = vector.extract_strided_slice %438 {offsets = [0, 384], sizes = [8, 128], strides = [1, 1]} : vector<8x512xf32> to vector<8x128xf32>
    %cst_177 = arith.constant 0.000000e+00 : f32
    %456 = vector.broadcast %cst_177 : f32 to vector<8x128xf32>
    %457 = arith.subf %456, %455 : vector<8x128xf32>
    %458 = math.exp %457 : vector<8x128xf32>
    %cst_178 = arith.constant 1.000000e+00 : f32
    %459 = vector.broadcast %cst_178 : f32 to vector<8x128xf32>
    %460 = arith.addf %459, %458 : vector<8x128xf32>
    %461 = tpu.reciprocal %460 : vector<8x128xf32> -> vector<8x128xf32>
    %462 = arith.mulf %452, %386 : vector<8x128xf32>
    %463 = arith.mulf %445, %454 : vector<8x128xf32>
    %464 = arith.addf %462, %463 : vector<8x128xf32>
    %465 = math.tanh %464 : vector<8x128xf32>
    %466 = arith.mulf %461, %465 : vector<8x128xf32>
    %c1_i32_179 = arith.constant 1 : i32
    %467 = arith.addi %c5_i32, %c1_i32_179 : i32
    %468 = arith.index_cast %467 : i32 to index
    %c0_180 = arith.constant 0 : index
    %c0_181 = arith.constant 0 : index
    %469 = vector.load %arg0[%468, %c0_180, %c0_181] : memref<8x8x1xf32, #tpu.memory_space<vmem>>, vector<1x8x1xf32>
    %470 = vector.shape_cast %469 : vector<1x8x1xf32> to vector<8x1xf32>
    %c0_182 = arith.constant 0 : index
    %c0_183 = arith.constant 0 : index
    %471 = vector.load %arg1[%c0_182, %c0_183] : memref<1x512xf32, #tpu.memory_space<vmem>>, vector<1x512xf32>
    %472 = vector.broadcast %470 : vector<8x1xf32> to vector<8x512xf32>
    %473 = vector.broadcast %471 : vector<1x512xf32> to vector<8x512xf32>
    %474 = arith.mulf %472, %473 : vector<8x512xf32>
    %c0_184 = arith.constant 0 : index
    %c0_185 = arith.constant 0 : index
    %475 = vector.load %arg2[%c0_184, %c0_185] : memref<1x512xf32, #tpu.memory_space<vmem>>, vector<1x512xf32>
    %476 = vector.broadcast %475 : vector<1x512xf32> to vector<8x512xf32>
    %477 = arith.addf %474, %476 : vector<8x512xf32>
    %c0_186 = arith.constant 0 : index
    %c0_187 = arith.constant 0 : index
    %478 = vector.load %arg3[%c0_186, %c0_187] : memref<128x512xf32, #tpu.memory_space<vmem>>, vector<128x512xf32>
    %cst_188 = arith.constant dense<0.000000e+00> : vector<8x512xf32>
    %479 = tpu.matmul %430, %478, %cst_188 {dimension_numbers = #tpu.dot_dimension_numbers<[1], [0], [0], [1], [0, 0, 1, 1], [], []>} : vector<8x128xf32>, vector<128x512xf32>, vector<8x512xf32> -> vector<8x512xf32>
    %480 = arith.addf %477, %479 : vector<8x512xf32>
    %481 = vector.extract_strided_slice %480 {offsets = [0, 0], sizes = [8, 128], strides = [1, 1]} : vector<8x512xf32> to vector<8x128xf32>
    %cst_189 = arith.constant 0.000000e+00 : f32
    %482 = vector.broadcast %cst_189 : f32 to vector<8x128xf32>
    %483 = arith.subf %482, %481 : vector<8x128xf32>
    %484 = math.exp %483 : vector<8x128xf32>
    %cst_190 = arith.constant 1.000000e+00 : f32
    %485 = vector.broadcast %cst_190 : f32 to vector<8x128xf32>
    %486 = arith.addf %485, %484 : vector<8x128xf32>
    %487 = tpu.reciprocal %486 : vector<8x128xf32> -> vector<8x128xf32>
    %488 = vector.extract_strided_slice %480 {offsets = [0, 128], sizes = [8, 128], strides = [1, 1]} : vector<8x512xf32> to vector<8x128xf32>
    %cst_191 = arith.constant 0.000000e+00 : f32
    %489 = vector.broadcast %cst_191 : f32 to vector<8x128xf32>
    %490 = arith.subf %489, %488 : vector<8x128xf32>
    %491 = math.exp %490 : vector<8x128xf32>
    %cst_192 = arith.constant 1.000000e+00 : f32
    %492 = vector.broadcast %cst_192 : f32 to vector<8x128xf32>
    %493 = arith.addf %492, %491 : vector<8x128xf32>
    %494 = tpu.reciprocal %493 : vector<8x128xf32> -> vector<8x128xf32>
    %495 = vector.extract_strided_slice %480 {offsets = [0, 256], sizes = [8, 128], strides = [1, 1]} : vector<8x512xf32> to vector<8x128xf32>
    %496 = math.tanh %495 : vector<8x128xf32>
    %497 = vector.extract_strided_slice %480 {offsets = [0, 384], sizes = [8, 128], strides = [1, 1]} : vector<8x512xf32> to vector<8x128xf32>
    %cst_193 = arith.constant 0.000000e+00 : f32
    %498 = vector.broadcast %cst_193 : f32 to vector<8x128xf32>
    %499 = arith.subf %498, %497 : vector<8x128xf32>
    %500 = math.exp %499 : vector<8x128xf32>
    %cst_194 = arith.constant 1.000000e+00 : f32
    %501 = vector.broadcast %cst_194 : f32 to vector<8x128xf32>
    %502 = arith.addf %501, %500 : vector<8x128xf32>
    %503 = tpu.reciprocal %502 : vector<8x128xf32> -> vector<8x128xf32>
    %504 = arith.mulf %494, %428 : vector<8x128xf32>
    %505 = arith.mulf %487, %496 : vector<8x128xf32>
    %506 = arith.addf %504, %505 : vector<8x128xf32>
    %507 = math.tanh %506 : vector<8x128xf32>
    %508 = arith.mulf %503, %507 : vector<8x128xf32>
    %c6_i32 = arith.constant 6 : i32
    %c0_195 = arith.constant 0 : index
    %c0_196 = arith.constant 0 : index
    %509 = vector.load %arg4[%c0_195, %c0_196] : memref<128x512xf32, #tpu.memory_space<vmem>>, vector<128x512xf32>
    %cst_197 = arith.constant dense<0.000000e+00> : vector<8x512xf32>
    %510 = tpu.matmul %508, %509, %cst_197 {dimension_numbers = #tpu.dot_dimension_numbers<[1], [0], [0], [1], [0, 0, 1, 1], [], []>} : vector<8x128xf32>, vector<128x512xf32>, vector<8x512xf32> -> vector<8x512xf32>
    %c0_198 = arith.constant 0 : index
    %c0_199 = arith.constant 0 : index
    %511 = vector.load %arg5[%c0_198, %c0_199] : memref<128x512xf32, #tpu.memory_space<vmem>>, vector<128x512xf32>
    %cst_200 = arith.constant dense<0.000000e+00> : vector<8x512xf32>
    %512 = tpu.matmul %466, %511, %cst_200 {dimension_numbers = #tpu.dot_dimension_numbers<[1], [0], [0], [1], [0, 0, 1, 1], [], []>} : vector<8x128xf32>, vector<128x512xf32>, vector<8x512xf32> -> vector<8x512xf32>
    %513 = arith.addf %510, %512 : vector<8x512xf32>
    %c0_201 = arith.constant 0 : index
    %c0_202 = arith.constant 0 : index
    %514 = vector.load %arg6[%c0_201, %c0_202] : memref<1x512xf32, #tpu.memory_space<vmem>>, vector<1x512xf32>
    %515 = vector.broadcast %514 : vector<1x512xf32> to vector<8x512xf32>
    %516 = arith.addf %513, %515 : vector<8x512xf32>
    %517 = vector.extract_strided_slice %516 {offsets = [0, 0], sizes = [8, 128], strides = [1, 1]} : vector<8x512xf32> to vector<8x128xf32>
    %cst_203 = arith.constant 0.000000e+00 : f32
    %518 = vector.broadcast %cst_203 : f32 to vector<8x128xf32>
    %519 = arith.subf %518, %517 : vector<8x128xf32>
    %520 = math.exp %519 : vector<8x128xf32>
    %cst_204 = arith.constant 1.000000e+00 : f32
    %521 = vector.broadcast %cst_204 : f32 to vector<8x128xf32>
    %522 = arith.addf %521, %520 : vector<8x128xf32>
    %523 = tpu.reciprocal %522 : vector<8x128xf32> -> vector<8x128xf32>
    %524 = vector.extract_strided_slice %516 {offsets = [0, 128], sizes = [8, 128], strides = [1, 1]} : vector<8x512xf32> to vector<8x128xf32>
    %cst_205 = arith.constant 0.000000e+00 : f32
    %525 = vector.broadcast %cst_205 : f32 to vector<8x128xf32>
    %526 = arith.subf %525, %524 : vector<8x128xf32>
    %527 = math.exp %526 : vector<8x128xf32>
    %cst_206 = arith.constant 1.000000e+00 : f32
    %528 = vector.broadcast %cst_206 : f32 to vector<8x128xf32>
    %529 = arith.addf %528, %527 : vector<8x128xf32>
    %530 = tpu.reciprocal %529 : vector<8x128xf32> -> vector<8x128xf32>
    %531 = vector.extract_strided_slice %516 {offsets = [0, 256], sizes = [8, 128], strides = [1, 1]} : vector<8x512xf32> to vector<8x128xf32>
    %532 = math.tanh %531 : vector<8x128xf32>
    %533 = vector.extract_strided_slice %516 {offsets = [0, 384], sizes = [8, 128], strides = [1, 1]} : vector<8x512xf32> to vector<8x128xf32>
    %cst_207 = arith.constant 0.000000e+00 : f32
    %534 = vector.broadcast %cst_207 : f32 to vector<8x128xf32>
    %535 = arith.subf %534, %533 : vector<8x128xf32>
    %536 = math.exp %535 : vector<8x128xf32>
    %cst_208 = arith.constant 1.000000e+00 : f32
    %537 = vector.broadcast %cst_208 : f32 to vector<8x128xf32>
    %538 = arith.addf %537, %536 : vector<8x128xf32>
    %539 = tpu.reciprocal %538 : vector<8x128xf32> -> vector<8x128xf32>
    %540 = arith.mulf %530, %464 : vector<8x128xf32>
    %541 = arith.mulf %523, %532 : vector<8x128xf32>
    %542 = arith.addf %540, %541 : vector<8x128xf32>
    %543 = math.tanh %542 : vector<8x128xf32>
    %544 = arith.mulf %539, %543 : vector<8x128xf32>
    %c1_i32_209 = arith.constant 1 : i32
    %545 = arith.addi %c6_i32, %c1_i32_209 : i32
    %546 = arith.index_cast %545 : i32 to index
    %c0_210 = arith.constant 0 : index
    %c0_211 = arith.constant 0 : index
    %547 = vector.load %arg0[%546, %c0_210, %c0_211] : memref<8x8x1xf32, #tpu.memory_space<vmem>>, vector<1x8x1xf32>
    %548 = vector.shape_cast %547 : vector<1x8x1xf32> to vector<8x1xf32>
    %c0_212 = arith.constant 0 : index
    %c0_213 = arith.constant 0 : index
    %549 = vector.load %arg1[%c0_212, %c0_213] : memref<1x512xf32, #tpu.memory_space<vmem>>, vector<1x512xf32>
    %550 = vector.broadcast %548 : vector<8x1xf32> to vector<8x512xf32>
    %551 = vector.broadcast %549 : vector<1x512xf32> to vector<8x512xf32>
    %552 = arith.mulf %550, %551 : vector<8x512xf32>
    %c0_214 = arith.constant 0 : index
    %c0_215 = arith.constant 0 : index
    %553 = vector.load %arg2[%c0_214, %c0_215] : memref<1x512xf32, #tpu.memory_space<vmem>>, vector<1x512xf32>
    %554 = vector.broadcast %553 : vector<1x512xf32> to vector<8x512xf32>
    %555 = arith.addf %552, %554 : vector<8x512xf32>
    %c0_216 = arith.constant 0 : index
    %c0_217 = arith.constant 0 : index
    %556 = vector.load %arg3[%c0_216, %c0_217] : memref<128x512xf32, #tpu.memory_space<vmem>>, vector<128x512xf32>
    %cst_218 = arith.constant dense<0.000000e+00> : vector<8x512xf32>
    %557 = tpu.matmul %508, %556, %cst_218 {dimension_numbers = #tpu.dot_dimension_numbers<[1], [0], [0], [1], [0, 0, 1, 1], [], []>} : vector<8x128xf32>, vector<128x512xf32>, vector<8x512xf32> -> vector<8x512xf32>
    %558 = arith.addf %555, %557 : vector<8x512xf32>
    %559 = vector.extract_strided_slice %558 {offsets = [0, 0], sizes = [8, 128], strides = [1, 1]} : vector<8x512xf32> to vector<8x128xf32>
    %cst_219 = arith.constant 0.000000e+00 : f32
    %560 = vector.broadcast %cst_219 : f32 to vector<8x128xf32>
    %561 = arith.subf %560, %559 : vector<8x128xf32>
    %562 = math.exp %561 : vector<8x128xf32>
    %cst_220 = arith.constant 1.000000e+00 : f32
    %563 = vector.broadcast %cst_220 : f32 to vector<8x128xf32>
    %564 = arith.addf %563, %562 : vector<8x128xf32>
    %565 = tpu.reciprocal %564 : vector<8x128xf32> -> vector<8x128xf32>
    %566 = vector.extract_strided_slice %558 {offsets = [0, 128], sizes = [8, 128], strides = [1, 1]} : vector<8x512xf32> to vector<8x128xf32>
    %cst_221 = arith.constant 0.000000e+00 : f32
    %567 = vector.broadcast %cst_221 : f32 to vector<8x128xf32>
    %568 = arith.subf %567, %566 : vector<8x128xf32>
    %569 = math.exp %568 : vector<8x128xf32>
    %cst_222 = arith.constant 1.000000e+00 : f32
    %570 = vector.broadcast %cst_222 : f32 to vector<8x128xf32>
    %571 = arith.addf %570, %569 : vector<8x128xf32>
    %572 = tpu.reciprocal %571 : vector<8x128xf32> -> vector<8x128xf32>
    %573 = vector.extract_strided_slice %558 {offsets = [0, 256], sizes = [8, 128], strides = [1, 1]} : vector<8x512xf32> to vector<8x128xf32>
    %574 = math.tanh %573 : vector<8x128xf32>
    %575 = vector.extract_strided_slice %558 {offsets = [0, 384], sizes = [8, 128], strides = [1, 1]} : vector<8x512xf32> to vector<8x128xf32>
    %cst_223 = arith.constant 0.000000e+00 : f32
    %576 = vector.broadcast %cst_223 : f32 to vector<8x128xf32>
    %577 = arith.subf %576, %575 : vector<8x128xf32>
    %578 = math.exp %577 : vector<8x128xf32>
    %cst_224 = arith.constant 1.000000e+00 : f32
    %579 = vector.broadcast %cst_224 : f32 to vector<8x128xf32>
    %580 = arith.addf %579, %578 : vector<8x128xf32>
    %581 = tpu.reciprocal %580 : vector<8x128xf32> -> vector<8x128xf32>
    %582 = arith.mulf %572, %506 : vector<8x128xf32>
    %583 = arith.mulf %565, %574 : vector<8x128xf32>
    %584 = arith.addf %582, %583 : vector<8x128xf32>
    %585 = math.tanh %584 : vector<8x128xf32>
    %586 = arith.mulf %581, %585 : vector<8x128xf32>
    %c7_i32 = arith.constant 7 : i32
    %c0_225 = arith.constant 0 : index
    %c0_226 = arith.constant 0 : index
    %587 = vector.load %arg4[%c0_225, %c0_226] : memref<128x512xf32, #tpu.memory_space<vmem>>, vector<128x512xf32>
    %cst_227 = arith.constant dense<0.000000e+00> : vector<8x512xf32>
    %588 = tpu.matmul %586, %587, %cst_227 {dimension_numbers = #tpu.dot_dimension_numbers<[1], [0], [0], [1], [0, 0, 1, 1], [], []>} : vector<8x128xf32>, vector<128x512xf32>, vector<8x512xf32> -> vector<8x512xf32>
    %c0_228 = arith.constant 0 : index
    %c0_229 = arith.constant 0 : index
    %589 = vector.load %arg5[%c0_228, %c0_229] : memref<128x512xf32, #tpu.memory_space<vmem>>, vector<128x512xf32>
    %cst_230 = arith.constant dense<0.000000e+00> : vector<8x512xf32>
    %590 = tpu.matmul %544, %589, %cst_230 {dimension_numbers = #tpu.dot_dimension_numbers<[1], [0], [0], [1], [0, 0, 1, 1], [], []>} : vector<8x128xf32>, vector<128x512xf32>, vector<8x512xf32> -> vector<8x512xf32>
    %591 = arith.addf %588, %590 : vector<8x512xf32>
    %c0_231 = arith.constant 0 : index
    %c0_232 = arith.constant 0 : index
    %592 = vector.load %arg6[%c0_231, %c0_232] : memref<1x512xf32, #tpu.memory_space<vmem>>, vector<1x512xf32>
    %593 = vector.broadcast %592 : vector<1x512xf32> to vector<8x512xf32>
    %594 = arith.addf %591, %593 : vector<8x512xf32>
    %595 = vector.extract_strided_slice %594 {offsets = [0, 0], sizes = [8, 128], strides = [1, 1]} : vector<8x512xf32> to vector<8x128xf32>
    %cst_233 = arith.constant 0.000000e+00 : f32
    %596 = vector.broadcast %cst_233 : f32 to vector<8x128xf32>
    %597 = arith.subf %596, %595 : vector<8x128xf32>
    %598 = math.exp %597 : vector<8x128xf32>
    %cst_234 = arith.constant 1.000000e+00 : f32
    %599 = vector.broadcast %cst_234 : f32 to vector<8x128xf32>
    %600 = arith.addf %599, %598 : vector<8x128xf32>
    %601 = tpu.reciprocal %600 : vector<8x128xf32> -> vector<8x128xf32>
    %602 = vector.extract_strided_slice %594 {offsets = [0, 128], sizes = [8, 128], strides = [1, 1]} : vector<8x512xf32> to vector<8x128xf32>
    %cst_235 = arith.constant 0.000000e+00 : f32
    %603 = vector.broadcast %cst_235 : f32 to vector<8x128xf32>
    %604 = arith.subf %603, %602 : vector<8x128xf32>
    %605 = math.exp %604 : vector<8x128xf32>
    %cst_236 = arith.constant 1.000000e+00 : f32
    %606 = vector.broadcast %cst_236 : f32 to vector<8x128xf32>
    %607 = arith.addf %606, %605 : vector<8x128xf32>
    %608 = tpu.reciprocal %607 : vector<8x128xf32> -> vector<8x128xf32>
    %609 = vector.extract_strided_slice %594 {offsets = [0, 256], sizes = [8, 128], strides = [1, 1]} : vector<8x512xf32> to vector<8x128xf32>
    %610 = math.tanh %609 : vector<8x128xf32>
    %611 = vector.extract_strided_slice %594 {offsets = [0, 384], sizes = [8, 128], strides = [1, 1]} : vector<8x512xf32> to vector<8x128xf32>
    %cst_237 = arith.constant 0.000000e+00 : f32
    %612 = vector.broadcast %cst_237 : f32 to vector<8x128xf32>
    %613 = arith.subf %612, %611 : vector<8x128xf32>
    %614 = math.exp %613 : vector<8x128xf32>
    %cst_238 = arith.constant 1.000000e+00 : f32
    %615 = vector.broadcast %cst_238 : f32 to vector<8x128xf32>
    %616 = arith.addf %615, %614 : vector<8x128xf32>
    %617 = tpu.reciprocal %616 : vector<8x128xf32> -> vector<8x128xf32>
    %618 = arith.mulf %608, %542 : vector<8x128xf32>
    %619 = arith.mulf %601, %610 : vector<8x128xf32>
    %620 = arith.addf %618, %619 : vector<8x128xf32>
    %621 = math.tanh %620 : vector<8x128xf32>
    %622 = arith.mulf %617, %621 : vector<8x128xf32>
    %c0_239 = arith.constant 0 : index
    %c0_240 = arith.constant 0 : index
    %623 = vector.load %arg7[%c0_239, %c0_240] : memref<128x128xf32, #tpu.memory_space<vmem>>, vector<128x128xf32>
    %cst_241 = arith.constant dense<0.000000e+00> : vector<8x128xf32>
    %624 = tpu.matmul %622, %623, %cst_241 {dimension_numbers = #tpu.dot_dimension_numbers<[1], [0], [0], [1], [0, 0, 1, 1], [], []>} : vector<8x128xf32>, vector<128x128xf32>, vector<8x128xf32> -> vector<8x128xf32>
    %c0_242 = arith.constant 0 : index
    %c0_243 = arith.constant 0 : index
    %625 = vector.load %arg8[%c0_242, %c0_243] : memref<1x128xf32, #tpu.memory_space<vmem>>, vector<1x128xf32>
    %626 = vector.broadcast %625 : vector<1x128xf32> to vector<8x128xf32>
    %627 = arith.addf %624, %626 : vector<8x128xf32>
    %c0_244 = arith.constant 0 : index
    %c0_245 = arith.constant 0 : index
    %628 = vector.load %arg9[%c0_244, %c0_245] : memref<8x128xf32, #tpu.memory_space<vmem>>, vector<8x128xf32>
    tpu.vector_store %arg9[%c0_244, %c0_245], %627 {strides = array<i32>} : memref<8x128xf32, #tpu.memory_space<vmem>>, vector<8x128xf32>,
    return
  }
}

</mosaic_0001>

<llo_original>
// kernel: tpu_custom_call.1
$region0: #{tpu_custom_call.1}
  #allocation0 [shape = 'u32[]', space=smem, size = 0x4, offset = 0x4, fixed_abs, tag = 'smem constant byte address 0x4 - core index']
  #allocation1 [shape = 'u32[144,128]{1,0:T(1,128)}', space=vmem, size = 0x12000, scoped, tag = 'internal scratch']
  %s0 = inlined_call_operand.vmem [shape: f32[8,8,1], index: 0, kind: input, shape index: {}]
  %s1 = inlined_call_operand.vmem [shape: f32[1,512], index: 1, kind: input, shape index: {}]
  %s2 = inlined_call_operand.vmem [shape: f32[1,512], index: 2, kind: input, shape index: {}]
  %s3 = inlined_call_operand.hbm [shape: f32[128,512], index: 3, kind: input, shape index: {}]
  %s4 = inlined_call_operand.hbm [shape: f32[128,512], index: 4, kind: input, shape index: {}]
  %s5 = inlined_call_operand.hbm [shape: f32[128,512], index: 5, kind: input, shape index: {}]
  %s6 = inlined_call_operand.vmem [shape: f32[1,512], index: 6, kind: input, shape index: {}]
  %s7 = inlined_call_operand.hbm [shape: f32[128,128], index: 7, kind: input, shape index: {}]
  %s8 = inlined_call_operand.vmem [shape: f32[1,128], index: 8, kind: input, shape index: {}]
  %s9 = inlined_call_operand.hbm [shape: f32[8,128], index: 9, kind: output, shape index: {}]
  %s10 = sld [smem:[#allocation0]]
  $region62: #{tpu_custom_call.1} parent=0
    _
  %s12 = ssub.s32 1, %s10
  %s13 = scalar_select 0, %s12, %s10
  $region1: #{tpu_custom_call.1} parent=0
    #allocation2 [shape = 'u8[262144]{0}', space=vmem, size = 0x40000, scoped, tag = 'input window, operand 3, single buffered']
    #allocation3 [shape = 's32[1]{0}', space=sflag, size = 0x4, scoped, tag = 'scoped memory for tpu_custom_call.1']
    #allocation4 [shape = 's32[1]{0}', space=sflag, size = 0x4, scoped, tag = 'scoped memory for tpu_custom_call.1']
    #allocation5 [shape = 'u8[262144]{0}', space=vmem, size = 0x40000, scoped, tag = 'input window, operand 4, single buffered']
    #allocation6 [shape = 's32[1]{0}', space=sflag, size = 0x4, scoped, tag = 'scoped memory for tpu_custom_call.1']
    #allocation7 [shape = 'u8[262144]{0}', space=vmem, size = 0x40000, scoped, tag = 'input window, operand 5, single buffered']
    #allocation8 [shape = 'u8[65536]{0}', space=vmem, size = 0x10000, scoped, tag = 'input window, operand 7, single buffered']
    #allocation9 [shape = 's32[1]{0}', space=sflag, size = 0x4, scoped, tag = 'scoped memory for tpu_custom_call.1']
    #allocation10 [shape = 'u8[4096]{0}', space=vmem, size = 0x1000, scoped, tag = 'output window, operand 0, single buffered']
    %14 = vsyncpa [#allocation3], 0
    %15 = vsyncpa [#allocation6], 0
    %16 = vsyncpa [#allocation9], 0
    %17 = vsyncpa [#allocation4], 0
    // Predicated region
    $region2: #{tpu_custom_call.1} parent=1 // pred_check
      _
    $region3: #{tpu_custom_call.1} parent=1 // pred_check_branch
      %19 = sbr.rel (0) target = $region5
    $region4: #{tpu_custom_call.1} parent=1 // pred_region
      _
    $region5: #{tpu_custom_call.1} parent=1 // pred_fallthru
      _
    // Predicated region
    $region6: #{tpu_custom_call.1} parent=1 // pred_check
      _
    $region7: #{tpu_custom_call.1} parent=1 // pred_check_branch
      %21 = sbr.rel (0) target = $region9
    $region8: #{tpu_custom_call.1} parent=1 // pred_region
      _
    $region9: #{tpu_custom_call.1} parent=1 // pred_fallthru
      _
    // Predicated region
    $region10: #{tpu_custom_call.1} parent=1 // pred_check
      _
    $region11: #{tpu_custom_call.1} parent=1 // pred_check_branch
      %23 = sbr.rel (0) target = $region13
    $region12: #{tpu_custom_call.1} parent=1 // pred_region
      _
    $region13: #{tpu_custom_call.1} parent=1 // pred_fallthru
      _
    // Predicated region
    $region14: #{tpu_custom_call.1} parent=1 // pred_check
      _
    $region15: #{tpu_custom_call.1} parent=1 // pred_check_branch
      %25 = sbr.rel (0) target = $region17
    $region16: #{tpu_custom_call.1} parent=1 // pred_region
      %s27 = ssub.s32 8192, 8192
      %28 = vsyncadd [#allocation3], %s27
      %s29 = sshll.u32 [#allocation2], 4
      %s30 = int_to_ptr.vmem [resolvable:$true] %s29
      %35 = dma.hbm_to_vmem [thread:$0]  %s3, 8192, %s30, [#allocation3], 512, 512, 32
    $region17: #{tpu_custom_call.1} parent=1 // pred_fallthru
      _
    // Predicated region
    $region18: #{tpu_custom_call.1} parent=1 // pred_check
      _
    $region19: #{tpu_custom_call.1} parent=1 // pred_check_branch
      %37 = sbr.rel (0) target = $region21
    $region20: #{tpu_custom_call.1} parent=1 // pred_region
      %s39 = ssub.s32 8192, 8192
      %40 = vsyncadd [#allocation6], %s39
      %s41 = sshll.u32 [#allocation5], 4
      %s42 = int_to_ptr.vmem [resolvable:$true] %s41
      %47 = dma.hbm_to_vmem [thread:$0]  %s4, 8192, %s42, [#allocation6], 512, 512, 32
    $region21: #{tpu_custom_call.1} parent=1 // pred_fallthru
      _
    // Predicated region
    $region22: #{tpu_custom_call.1} parent=1 // pred_check
      _
    $region23: #{tpu_custom_call.1} parent=1 // pred_check_branch
      %49 = sbr.rel (0) target = $region25
    $region24: #{tpu_custom_call.1} parent=1 // pred_region
      %s51 = ssub.s32 8192, 8192
      %52 = vsyncadd [#allocation6], %s51
      %s53 = sshll.u32 [#allocation7], 4
      %s54 = int_to_ptr.vmem [resolvable:$true] %s53
      %59 = dma.hbm_to_vmem [thread:$0]  %s5, 8192, %s54, [#allocation6], 512, 512, 32
    $region25: #{tpu_custom_call.1} parent=1 // pred_fallthru
      _
    // Predicated region
    $region26: #{tpu_custom_call.1} parent=1 // pred_check
      _
    $region27: #{tpu_custom_call.1} parent=1 // pred_check_branch
      %61 = sbr.rel (0) target = $region29
    $region28: #{tpu_custom_call.1} parent=1 // pred_region
      _
    $region29: #{tpu_custom_call.1} parent=1 // pred_fallthru
      _
    // Predicated region
    $region30: #{tpu_custom_call.1} parent=1 // pred_check
      _
    $region31: #{tpu_custom_call.1} parent=1 // pred_check_branch
      %63 = sbr.rel (0) target = $region33
    $region32: #{tpu_custom_call.1} parent=1 // pred_region
      %s65 = ssub.s32 2048, 2048
      %66 = vsyncadd [#allocation9], %s65
      %s67 = sshll.u32 [#allocation8], 4
      %s68 = int_to_ptr.vmem [resolvable:$true] %s67
      %73 = dma.hbm_to_vmem [thread:$0]  %s7, 2048, %s68, [#allocation9], 128, 128, 8
    $region33: #{tpu_custom_call.1} parent=1 // pred_fallthru
      _
    // Predicated region
    $region34: #{tpu_custom_call.1} parent=1 // pred_check
      _
    $region35: #{tpu_custom_call.1} parent=1 // pred_check_branch
      %75 = sbr.rel (0) target = $region37
    $region36: #{tpu_custom_call.1} parent=1 // pred_region
      _
    $region37: #{tpu_custom_call.1} parent=1 // pred_fallthru
      _
    // Predicated region
    $region38: #{tpu_custom_call.1} parent=1 // pred_check
      _
    $region39: #{tpu_custom_call.1} parent=1 // pred_check_branch
      %77 = sbr.rel (0) target = $region41
    $region40: #{tpu_custom_call.1} parent=1 // pred_region
      %78 = dma.done [#allocation3], 8192
    $region41: #{tpu_custom_call.1} parent=1 // pred_fallthru
      _
    // Predicated region
    $region42: #{tpu_custom_call.1} parent=1 // pred_check
      _
    $region43: #{tpu_custom_call.1} parent=1 // pred_check_branch
      %80 = sbr.rel (0) target = $region45
    $region44: #{tpu_custom_call.1} parent=1 // pred_region
      %81 = dma.done [#allocation6], 8192
    $region45: #{tpu_custom_call.1} parent=1 // pred_fallthru
      _
    // Predicated region
    $region46: #{tpu_custom_call.1} parent=1 // pred_check
      _
    $region47: #{tpu_custom_call.1} parent=1 // pred_check_branch
      %83 = sbr.rel (0) target = $region49
    $region48: #{tpu_custom_call.1} parent=1 // pred_region
      %84 = dma.done [#allocation6], 8192
    $region49: #{tpu_custom_call.1} parent=1 // pred_fallthru
      _
    // Predicated region
    $region50: #{tpu_custom_call.1} parent=1 // pred_check
      _
    $region51: #{tpu_custom_call.1} parent=1 // pred_check_branch
      %86 = sbr.rel (0) target = $region53
    $region52: #{tpu_custom_call.1} parent=1 // pred_region
      %87 = dma.done [#allocation9], 2048
    $region53: #{tpu_custom_call.1} parent=1 // pred_fallthru
      _
    %v88 = vld [vmem:[%s0] sm:$0xff]
    %v89 = vld [vmem:[%s1] sm:$0xf]
    %91 = vset.pattern.permute.xlu0 0
    %92 = vperm.xlu0 %91, %v88
    %v93 = vpop.permute.xlu0 %92
    %v96 = vlaneseq
    %v97 = vshrl.u32 %v96, 7
    %v98 = vsub.s32 0, %v97
    %v99 = vrot.slane %v89, %v98
    %v100 = vlaneseq
    %v101 = vshrl.u32 %v100, 7
    %v102 = vsub.s32 1, %v101
    %v103 = vrot.slane %v89, %v102
    %v104 = vlaneseq
    %v105 = vshrl.u32 %v104, 7
    %v106 = vsub.s32 2, %v105
    %v107 = vrot.slane %v89, %v106
    %v108 = vlaneseq
    %v109 = vshrl.u32 %v108, 7
    %v110 = vsub.s32 3, %v109
    %v111 = vrot.slane %v89, %v110
    %v116 = vmul.f32 %v93, %v99
    %v117 = vmul.f32 %v93, %v103
    %v118 = vmul.f32 %v93, %v107
    %v119 = vmul.f32 %v93, %v111
    %v120 = vld [vmem:[%s2] sm:$0xf]
    %v122 = vlaneseq
    %v123 = vshrl.u32 %v122, 7
    %v124 = vsub.s32 0, %v123
    %v125 = vrot.slane %v120, %v124
    %v126 = vlaneseq
    %v127 = vshrl.u32 %v126, 7
    %v128 = vsub.s32 1, %v127
    %v129 = vrot.slane %v120, %v128
    %v130 = vlaneseq
    %v131 = vshrl.u32 %v130, 7
    %v132 = vsub.s32 2, %v131
    %v133 = vrot.slane %v120, %v132
    %v134 = vlaneseq
    %v135 = vshrl.u32 %v134, 7
    %v136 = vsub.s32 3, %v135
    %v137 = vrot.slane %v120, %v136
    %v142 = vadd.f32 %v116, %v125
    %v143 = vadd.f32 %v117, %v129
    %v144 = vadd.f32 %v118, %v133
    %v145 = vadd.f32 %v119, %v137
    %v146 = vld [vmem:[#allocation2] sm:$0xff]
    %v147 = vld [vmem:[#allocation2 + $0x8] sm:$0xff]
    %v148 = vld [vmem:[#allocation2 + $0x10] sm:$0xff]
    %v149 = vld [vmem:[#allocation2 + $0x18] sm:$0xff]
    %v150 = vld [vmem:[#allocation2 + $0x20] sm:$0xff]
    %v151 = vld [vmem:[#allocation2 + $0x28] sm:$0xff]
    %v152 = vld [vmem:[#allocation2 + $0x30] sm:$0xff]
    %v153 = vld [vmem:[#allocation2 + $0x38] sm:$0xff]
    %v154 = vld [vmem:[#allocation2 + $0x40] sm:$0xff]
    %v155 = vld [vmem:[#allocation2 + $0x48] sm:$0xff]
    %v156 = vld [vmem:[#allocation2 + $0x50] sm:$0xff]
    %v157 = vld [vmem:[#allocation2 + $0x58] sm:$0xff]
    %v158 = vld [vmem:[#allocation2 + $0x60] sm:$0xff]
    %v159 = vld [vmem:[#allocation2 + $0x68] sm:$0xff]
    %v160 = vld [vmem:[#allocation2 + $0x70] sm:$0xff]
    %v161 = vld [vmem:[#allocation2 + $0x78] sm:$0xff]
    %v162 = vld [vmem:[#allocation2 + $0x80] sm:$0xff]
    %v163 = vld [vmem:[#allocation2 + $0x88] sm:$0xff]
    %v164 = vld [vmem:[#allocation2 + $0x90] sm:$0xff]
    %v165 = vld [vmem:[#allocation2 + $0x98] sm:$0xff]
    %v166 = vld [vmem:[#allocation2 + $0xa0] sm:$0xff]
    %v167 = vld [vmem:[#allocation2 + $0xa8] sm:$0xff]
    %v168 = vld [vmem:[#allocation2 + $0xb0] sm:$0xff]
    %v169 = vld [vmem:[#allocation2 + $0xb8] sm:$0xff]
    %v170 = vld [vmem:[#allocation2 + $0xc0] sm:$0xff]
    %v171 = vld [vmem:[#allocation2 + $0xc8] sm:$0xff]
    %v172 = vld [vmem:[#allocation2 + $0xd0] sm:$0xff]
    %v173 = vld [vmem:[#allocation2 + $0xd8] sm:$0xff]
    %v174 = vld [vmem:[#allocation2 + $0xe0] sm:$0xff]
    %v175 = vld [vmem:[#allocation2 + $0xe8] sm:$0xff]
    %v176 = vld [vmem:[#allocation2 + $0xf0] sm:$0xff]
    %v177 = vld [vmem:[#allocation2 + $0xf8] sm:$0xff]
    %v178 = vld [vmem:[#allocation2 + $0x100] sm:$0xff]
    %v179 = vld [vmem:[#allocation2 + $0x108] sm:$0xff]
    %v180 = vld [vmem:[#allocation2 + $0x110] sm:$0xff]
    %v181 = vld [vmem:[#allocation2 + $0x118] sm:$0xff]
    %v182 = vld [vmem:[#allocation2 + $0x120] sm:$0xff]
    %v183 = vld [vmem:[#allocation2 + $0x128] sm:$0xff]
    %v184 = vld [vmem:[#allocation2 + $0x130] sm:$0xff]
    %v185 = vld [vmem:[#allocation2 + $0x138] sm:$0xff]
    %v186 = vld [vmem:[#allocation2 + $0x140] sm:$0xff]
    %v187 = vld [vmem:[#allocation2 + $0x148] sm:$0xff]
    %v188 = vld [vmem:[#allocation2 + $0x150] sm:$0xff]
    %v189 = vld [vmem:[#allocation2 + $0x158] sm:$0xff]
    %v190 = vld [vmem:[#allocation2 + $0x160] sm:$0xff]
    %v191 = vld [vmem:[#allocation2 + $0x168] sm:$0xff]
    %v192 = vld [vmem:[#allocation2 + $0x170] sm:$0xff]
    %v193 = vld [vmem:[#allocation2 + $0x178] sm:$0xff]
    %v194 = vld [vmem:[#allocation2 + $0x180] sm:$0xff]
    %v195 = vld [vmem:[#allocation2 + $0x188] sm:$0xff]
    %v196 = vld [vmem:[#allocation2 + $0x190] sm:$0xff]
    %v197 = vld [vmem:[#allocation2 + $0x198] sm:$0xff]
    %v198 = vld [vmem:[#allocation2 + $0x1a0] sm:$0xff]
    %v199 = vld [vmem:[#allocation2 + $0x1a8] sm:$0xff]
    %v200 = vld [vmem:[#allocation2 + $0x1b0] sm:$0xff]
    %v201 = vld [vmem:[#allocation2 + $0x1b8] sm:$0xff]
    %v202 = vld [vmem:[#allocation2 + $0x1c0] sm:$0xff]
    %v203 = vld [vmem:[#allocation2 + $0x1c8] sm:$0xff]
    %v204 = vld [vmem:[#allocation2 + $0x1d0] sm:$0xff]
    %v205 = vld [vmem:[#allocation2 + $0x1d8] sm:$0xff]
    %v206 = vld [vmem:[#allocation2 + $0x1e0] sm:$0xff]
    %v207 = vld [vmem:[#allocation2 + $0x1e8] sm:$0xff]
    %v208 = vld [vmem:[#allocation2 + $0x1f0] sm:$0xff]
    %v209 = vld [vmem:[#allocation2 + $0x1f8] sm:$0xff]
    %210 = vmatprep.subr.mxu0 %v147
    %211 = vmatpush1.msra.mxu0 %v146
    %212 = vmatprep.subr.mxu0 %v151
    %213 = vmatpush1.msra.mxu0 %v150
    %214 = vmatprep.subr.mxu0 %v155
    %215 = vmatpush1.msra.mxu0 %v154
    %216 = vmatprep.subr.mxu0 %v159
    %217 = vmatpush1.msra.mxu0 %v158
    %218 = vmatprep.subr.mxu0 %v163
    %219 = vmatpush1.msra.mxu0 %v162
    %220 = vmatprep.subr.mxu0 %v167
    %221 = vmatpush1.msra.mxu0 %v166
    %222 = vmatprep.subr.mxu0 %v171
    %223 = vmatpush1.msra.mxu0 %v170
    %224 = vmatprep.subr.mxu0 %v175
    %225 = vmatpush1.msra.mxu0 %v174
    %226 = vmatprep.subr.mxu0 %v179
    %227 = vmatpush1.msra.mxu0 %v178
    %228 = vmatprep.subr.mxu0 %v183
    %229 = vmatpush1.msra.mxu0 %v182
    %230 = vmatprep.subr.mxu0 %v187
    %231 = vmatpush1.msra.mxu0 %v186
    %232 = vmatprep.subr.mxu0 %v191
    %233 = vmatpush1.msra.mxu0 %v190
    %234 = vmatprep.subr.mxu0 %v195
    %235 = vmatpush1.msra.mxu0 %v194
    %236 = vmatprep.subr.mxu0 %v199
    %237 = vmatpush1.msra.mxu0 %v198
    %238 = vmatprep.subr.mxu0 %v203
    %239 = vmatpush1.msra.mxu0 %v202
    %240 = vmatprep.subr.mxu0 %v207
    %241 = vmatpush1.msra.mxu0 %v206
    %242 = vmatprep.subr.mxu0 0.0
    %243 = vmatpush1.msra.mxu0 0.0
    %244 = vmatprep.subr.mxu0 0.0
    %245 = vmatpush1.msra.mxu0 0.0
    %246 = vmatprep.subr.mxu0 0.0
    %247 = vmatpush1.msra.mxu0 0.0
    %248 = vmatprep.subr.mxu0 0.0
    %249 = vmatpush1.msra.mxu0 0.0
    %250 = vmatprep.subr.mxu0 0.0
    %251 = vmatpush1.msra.mxu0 0.0
    %252 = vmatprep.subr.mxu0 0.0
    %253 = vmatpush1.msra.mxu0 0.0
    %254 = vmatprep.subr.mxu0 0.0
    %255 = vmatpush1.msra.mxu0 0.0
    %256 = vmatprep.subr.mxu0 0.0
    %257 = vmatpush1.msra.mxu0 0.0
    %258 = vmatprep.subr.mxu0 0.0
    %259 = vmatpush1.msra.mxu0 0.0
    %260 = vmatprep.subr.mxu0 0.0
    %261 = vmatpush1.msra.mxu0 0.0
    %262 = vmatprep.subr.mxu0 0.0
    %263 = vmatpush1.msra.mxu0 0.0
    %264 = vmatprep.subr.mxu0 0.0
    %265 = vmatpush1.msra.mxu0 0.0
    %266 = vmatprep.subr.mxu0 0.0
    %267 = vmatpush1.msra.mxu0 0.0
    %268 = vmatprep.subr.mxu0 0.0
    %269 = vmatpush1.msra.mxu0 0.0
    %270 = vmatprep.subr.mxu0 0.0
    %271 = vmatpush1.msra.mxu0 0.0
    %272 = vmatprep.subr.mxu0 0.0
    %273 = vmatpush1.msra.mxu0 0.0
    %274 = vmatprep.mubr.f32.mxu0 0.0
    %275 = vmatmul.mubr.f32.gmra.mrb[0].mxu0 0.0
    %v276 = vpop.f32.mrb[0].mxu0
    %v277 = vadd.f32 0.0, %v276
    %v278 = vpop.f32.mrb[0].mxu0
    %v279 = vadd.f32 0.0, %v278
    %280 = vdwg.mxu0
    %281 = vmatprep.subr.mxu0 %v149
    %282 = vmatpush1.msra.mxu0 %v148
    %283 = vmatprep.subr.mxu0 %v153
    %284 = vmatpush1.msra.mxu0 %v152
    %285 = vmatprep.subr.mxu0 %v157
    %286 = vmatpush1.msra.mxu0 %v156
    %287 = vmatprep.subr.mxu0 %v161
    %288 = vmatpush1.msra.mxu0 %v160
    %289 = vmatprep.subr.mxu0 %v165
    %290 = vmatpush1.msra.mxu0 %v164
    %291 = vmatprep.subr.mxu0 %v169
    %292 = vmatpush1.msra.mxu0 %v168
    %293 = vmatprep.subr.mxu0 %v173
    %294 = vmatpush1.msra.mxu0 %v172
    %295 = vmatprep.subr.mxu0 %v177
    %296 = vmatpush1.msra.mxu0 %v176
    %297 = vmatprep.subr.mxu0 %v181
    %298 = vmatpush1.msra.mxu0 %v180
    %299 = vmatprep.subr.mxu0 %v185
    %300 = vmatpush1.msra.mxu0 %v184
    %301 = vmatprep.subr.mxu0 %v189
    %302 = vmatpush1.msra.mxu0 %v188
    %303 = vmatprep.subr.mxu0 %v193
    %304 = vmatpush1.msra.mxu0 %v192
    %305 = vmatprep.subr.mxu0 %v197
    %306 = vmatpush1.msra.mxu0 %v196
    %307 = vmatprep.subr.mxu0 %v201
    %308 = vmatpush1.msra.mxu0 %v200
    %309 = vmatprep.subr.mxu0 %v205
    %310 = vmatpush1.msra.mxu0 %v204
    %311 = vmatprep.subr.mxu0 %v209
    %312 = vmatpush1.msra.mxu0 %v208
    %313 = vmatprep.subr.mxu0 0.0
    %314 = vmatpush1.msra.mxu0 0.0
    %315 = vmatprep.subr.mxu0 0.0
    %316 = vmatpush1.msra.mxu0 0.0
    %317 = vmatprep.subr.mxu0 0.0
    %318 = vmatpush1.msra.mxu0 0.0
    %319 = vmatprep.subr.mxu0 0.0
    %320 = vmatpush1.msra.mxu0 0.0
    %321 = vmatprep.subr.mxu0 0.0
    %322 = vmatpush1.msra.mxu0 0.0
    %323 = vmatprep.subr.mxu0 0.0
    %324 = vmatpush1.msra.mxu0 0.0
    %325 = vmatprep.subr.mxu0 0.0
    %326 = vmatpush1.msra.mxu0 0.0
    %327 = vmatprep.subr.mxu0 0.0
    %328 = vmatpush1.msra.mxu0 0.0
    %329 = vmatprep.subr.mxu0 0.0
    %330 = vmatpush1.msra.mxu0 0.0
    %331 = vmatprep.subr.mxu0 0.0
    %332 = vmatpush1.msra.mxu0 0.0
    %333 = vmatprep.subr.mxu0 0.0
    %334 = vmatpush1.msra.mxu0 0.0
    %335 = vmatprep.subr.mxu0 0.0
    %336 = vmatpush1.msra.mxu0 0.0
    %337 = vmatprep.subr.mxu0 0.0
    %338 = vmatpush1.msra.mxu0 0.0
    %339 = vmatprep.subr.mxu0 0.0
    %340 = vmatpush1.msra.mxu0 0.0
    %341 = vmatprep.subr.mxu0 0.0
    %342 = vmatpush1.msra.mxu0 0.0
    %343 = vmatprep.subr.mxu0 0.0
    %344 = vmatpush1.msra.mxu0 0.0
    %345 = vmatprep.mubr.f32.mxu0 0.0
    %346 = vmatmul.mubr.f32.gmra.mrb[0].mxu0 0.0
    %v347 = vpop.f32.mrb[0].mxu0
    %v348 = vadd.f32 0.0, %v347
    %v349 = vpop.f32.mrb[0].mxu0
    %v350 = vadd.f32 0.0, %v349
    %351 = vdwg.mxu0
    %v352 = vadd.f32 %v142, %v277
    %v353 = vadd.f32 %v143, %v279
    %v354 = vadd.f32 %v144, %v348
    %v355 = vadd.f32 %v145, %v350
    %v356 = vsub.f32 0.0, %v352
    %v357 = vmul.f32 %v356, 1.442695
    %v358 = vpow.pop %v357
    %v359 = vadd.f32 %v358, 1.0
    %v360 = vrcp.pop %v359
    %v361 = vsub.f32 0.0, %v353
    %v362 = vmul.f32 %v361, 1.442695
    %v363 = vpow.pop %v362
    %v364 = vadd.f32 %v363, 1.0
    %v365 = vrcp.pop %v364
    %v366 = vtanh.pop %v354
    %v367 = vsub.f32 0.0, %v355
    %v368 = vmul.f32 %v367, 1.442695
    %v369 = vpow.pop %v368
    %v370 = vadd.f32 %v369, 1.0
    %v371 = vrcp.pop %v370
    %v372 = vmul.f32 %v365, 0.0
    %v373 = vmul.f32 %v360, %v366
    %v374 = vadd.f32 %v372, %v373
    %v375 = vtanh.pop %v374
    %v376 = vmul.f32 %v371, %v375
    %v377 = vld [vmem:[#allocation5] sm:$0xff]
    %v378 = vld [vmem:[#allocation5 + $0x8] sm:$0xff]
    %v379 = vld [vmem:[#allocation5 + $0x10] sm:$0xff]
    %v380 = vld [vmem:[#allocation5 + $0x18] sm:$0xff]
    %v381 = vld [vmem:[#allocation5 + $0x20] sm:$0xff]
    %v382 = vld [vmem:[#allocation5 + $0x28] sm:$0xff]
    %v383 = vld [vmem:[#allocation5 + $0x30] sm:$0xff]
    %v384 = vld [vmem:[#allocation5 + $0x38] sm:$0xff]
    %v385 = vld [vmem:[#allocation5 + $0x40] sm:$0xff]
    %v386 = vld [vmem:[#allocation5 + $0x48] sm:$0xff]
    %v387 = vld [vmem:[#allocation5 + $0x50] sm:$0xff]
    %v388 = vld [vmem:[#allocation5 + $0x58] sm:$0xff]
    %v389 = vld [vmem:[#allocation5 + $0x60] sm:$0xff]
    %v390 = vld [vmem:[#allocation5 + $0x68] sm:$0xff]
    %v391 = vld [vmem:[#allocation5 + $0x70] sm:$0xff]
    %v392 = vld [vmem:[#allocation5 + $0x78] sm:$0xff]
    %v393 = vld [vmem:[#allocation5 + $0x80] sm:$0xff]
    %v394 = vld [vmem:[#allocation5 + $0x88] sm:$0xff]
    %v395 = vld [vmem:[#allocation5 + $0x90] sm:$0xff]
    %v396 = vld [vmem:[#allocation5 + $0x98] sm:$0xff]
    %v397 = vld [vmem:[#allocation5 + $0xa0] sm:$0xff]
    %v398 = vld [vmem:[#allocation5 + $0xa8] sm:$0xff]
    %v399 = vld [vmem:[#allocation5 + $0xb0] sm:$0xff]
    %v400 = vld [vmem:[#allocation5 + $0xb8] sm:$0xff]
    %v401 = vld [vmem:[#allocation5 + $0xc0] sm:$0xff]
    %v402 = vld [vmem:[#allocation5 + $0xc8] sm:$0xff]
    %v403 = vld [vmem:[#allocation5 + $0xd0] sm:$0xff]
    %v404 = vld [vmem:[#allocation5 + $0xd8] sm:$0xff]
    %v405 = vld [vmem:[#allocation5 + $0xe0] sm:$0xff]
    %v406 = vld [vmem:[#allocation5 + $0xe8] sm:$0xff]
    %v407 = vld [vmem:[#allocation5 + $0xf0] sm:$0xff]
    %v408 = vld [vmem:[#allocation5 + $0xf8] sm:$0xff]
    %v409 = vld [vmem:[#allocation5 + $0x100] sm:$0xff]
    %v410 = vld [vmem:[#allocation5 + $0x108] sm:$0xff]
    %v411 = vld [vmem:[#allocation5 + $0x110] sm:$0xff]
    %v412 = vld [vmem:[#allocation5 + $0x118] sm:$0xff]
    %v413 = vld [vmem:[#allocation5 + $0x120] sm:$0xff]
    %v414 = vld [vmem:[#allocation5 + $0x128] sm:$0xff]
    %v415 = vld [vmem:[#allocation5 + $0x130] sm:$0xff]
    %v416 = vld [vmem:[#allocation5 + $0x138] sm:$0xff]
    %v417 = vld [vmem:[#allocation5 + $0x140] sm:$0xff]
    %v418 = vld [vmem:[#allocation5 + $0x148] sm:$0xff]
    %v419 = vld [vmem:[#allocation5 + $0x150] sm:$0xff]
    %v420 = vld [vmem:[#allocation5 + $0x158] sm:$0xff]
    %v421 = vld [vmem:[#allocation5 + $0x160] sm:$0xff]
    %v422 = vld [vmem:[#allocation5 + $0x168] sm:$0xff]
    %v423 = vld [vmem:[#allocation5 + $0x170] sm:$0xff]
    %v424 = vld [vmem:[#allocation5 + $0x178] sm:$0xff]
    %v425 = vld [vmem:[#allocation5 + $0x180] sm:$0xff]
    %v426 = vld [vmem:[#allocation5 + $0x188] sm:$0xff]
    %v427 = vld [vmem:[#allocation5 + $0x190] sm:$0xff]
    %v428 = vld [vmem:[#allocation5 + $0x198] sm:$0xff]
    %v429 = vld [vmem:[#allocation5 + $0x1a0] sm:$0xff]
    %v430 = vld [vmem:[#allocation5 + $0x1a8] sm:$0xff]
    %v431 = vld [vmem:[#allocation5 + $0x1b0] sm:$0xff]
    %v432 = vld [vmem:[#allocation5 + $0x1b8] sm:$0xff]
    %v433 = vld [vmem:[#allocation5 + $0x1c0] sm:$0xff]
    %v434 = vld [vmem:[#allocation5 + $0x1c8] sm:$0xff]
    %v435 = vld [vmem:[#allocation5 + $0x1d0] sm:$0xff]
    %v436 = vld [vmem:[#allocation5 + $0x1d8] sm:$0xff]
    %v437 = vld [vmem:[#allocation5 + $0x1e0] sm:$0xff]
    %v438 = vld [vmem:[#allocation5 + $0x1e8] sm:$0xff]
    %v439 = vld [vmem:[#allocation5 + $0x1f0] sm:$0xff]
    %v440 = vld [vmem:[#allocation5 + $0x1f8] sm:$0xff]
    %v441 = vld [vmem:[#allocation7] sm:$0xff]
    %v442 = vld [vmem:[#allocation7 + $0x8] sm:$0xff]
    %v443 = vld [vmem:[#allocation7 + $0x10] sm:$0xff]
    %v444 = vld [vmem:[#allocation7 + $0x18] sm:$0xff]
    %v445 = vld [vmem:[#allocation7 + $0x20] sm:$0xff]
    %v446 = vld [vmem:[#allocation7 + $0x28] sm:$0xff]
    %v447 = vld [vmem:[#allocation7 + $0x30] sm:$0xff]
    %v448 = vld [vmem:[#allocation7 + $0x38] sm:$0xff]
    %v449 = vld [vmem:[#allocation7 + $0x40] sm:$0xff]
    %v450 = vld [vmem:[#allocation7 + $0x48] sm:$0xff]
    %v451 = vld [vmem:[#allocation7 + $0x50] sm:$0xff]
    %v452 = vld [vmem:[#allocation7 + $0x58] sm:$0xff]
    %v453 = vld [vmem:[#allocation7 + $0x60] sm:$0xff]
    %v454 = vld [vmem:[#allocation7 + $0x68] sm:$0xff]
    %v455 = vld [vmem:[#allocation7 + $0x70] sm:$0xff]
    %v456 = vld [vmem:[#allocation7 + $0x78] sm:$0xff]
    %v457 = vld [vmem:[#allocation7 + $0x80] sm:$0xff]
    %v458 = vld [vmem:[#allocation7 + $0x88] sm:$0xff]
    %v459 = vld [vmem:[#allocation7 + $0x90] sm:$0xff]
    %v460 = vld [vmem:[#allocation7 + $0x98] sm:$0xff]
    %v461 = vld [vmem:[#allocation7 + $0xa0] sm:$0xff]
    %v462 = vld [vmem:[#allocation7 + $0xa8] sm:$0xff]
    %v463 = vld [vmem:[#allocation7 + $0xb0] sm:$0xff]
    %v464 = vld [vmem:[#allocation7 + $0xb8] sm:$0xff]
    %v465 = vld [vmem:[#allocation7 + $0xc0] sm:$0xff]
    %v466 = vld [vmem:[#allocation7 + $0xc8] sm:$0xff]
    %v467 = vld [vmem:[#allocation7 + $0xd0] sm:$0xff]
    %v468 = vld [vmem:[#allocation7 + $0xd8] sm:$0xff]
    %v469 = vld [vmem:[#allocation7 + $0xe0] sm:$0xff]
    %v470 = vld [vmem:[#allocation7 + $0xe8] sm:$0xff]
    %v471 = vld [vmem:[#allocation7 + $0xf0] sm:$0xff]
    %v472 = vld [vmem:[#allocation7 + $0xf8] sm:$0xff]
    %v473 = vld [vmem:[#allocation7 + $0x100] sm:$0xff]
    %v474 = vld [vmem:[#allocation7 + $0x108] sm:$0xff]
    %v475 = vld [vmem:[#allocation7 + $0x110] sm:$0xff]
    %v476 = vld [vmem:[#allocation7 + $0x118] sm:$0xff]
    %v477 = vld [vmem:[#allocation7 + $0x120] sm:$0xff]
    %v478 = vld [vmem:[#allocation7 + $0x128] sm:$0xff]
    %v479 = vld [vmem:[#allocation7 + $0x130] sm:$0xff]
    %v480 = vld [vmem:[#allocation7 + $0x138] sm:$0xff]
    %v481 = vld [vmem:[#allocation7 + $0x140] sm:$0xff]
    %v482 = vld [vmem:[#allocation7 + $0x148] sm:$0xff]
    %v483 = vld [vmem:[#allocation7 + $0x150] sm:$0xff]
    %v484 = vld [vmem:[#allocation7 + $0x158] sm:$0xff]
    %v485 = vld [vmem:[#allocation7 + $0x160] sm:$0xff]
    %v486 = vld [vmem:[#allocation7 + $0x168] sm:$0xff]
    %v487 = vld [vmem:[#allocation7 + $0x170] sm:$0xff]
    %v488 = vld [vmem:[#allocation7 + $0x178] sm:$0xff]
    %v489 = vld [vmem:[#allocation7 + $0x180] sm:$0xff]
    %v490 = vld [vmem:[#allocation7 + $0x188] sm:$0xff]
    %v491 = vld [vmem:[#allocation7 + $0x190] sm:$0xff]
    %v492 = vld [vmem:[#allocation7 + $0x198] sm:$0xff]
    %v493 = vld [vmem:[#allocation7 + $0x1a0] sm:$0xff]
    %v494 = vld [vmem:[#allocation7 + $0x1a8] sm:$0xff]
    %v495 = vld [vmem:[#allocation7 + $0x1b0] sm:$0xff]
    %v496 = vld [vmem:[#allocation7 + $0x1b8] sm:$0xff]
    %v497 = vld [vmem:[#allocation7 + $0x1c0] sm:$0xff]
    %v498 = vld [vmem:[#allocation7 + $0x1c8] sm:$0xff]
    %v499 = vld [vmem:[#allocation7 + $0x1d0] sm:$0xff]
    %v500 = vld [vmem:[#allocation7 + $0x1d8] sm:$0xff]
    %v501 = vld [vmem:[#allocation7 + $0x1e0] sm:$0xff]
    %v502 = vld [vmem:[#allocation7 + $0x1e8] sm:$0xff]
    %v503 = vld [vmem:[#allocation7 + $0x1f0] sm:$0xff]
    %v504 = vld [vmem:[#allocation7 + $0x1f8] sm:$0xff]
    %505 = vmatprep.subr.mxu0 %v442
    %506 = vmatpush1.msra.mxu0 %v441
    %507 = vmatprep.subr.mxu0 %v446
    %508 = vmatpush1.msra.mxu0 %v445
    %509 = vmatprep.subr.mxu0 %v450
    %510 = vmatpush1.msra.mxu0 %v449
    %511 = vmatprep.subr.mxu0 %v454
    %512 = vmatpush1.msra.mxu0 %v453
    %513 = vmatprep.subr.mxu0 %v458
    %514 = vmatpush1.msra.mxu0 %v457
    %515 = vmatprep.subr.mxu0 %v462
    %516 = vmatpush1.msra.mxu0 %v461
    %517 = vmatprep.subr.mxu0 %v466
    %518 = vmatpush1.msra.mxu0 %v465
    %519 = vmatprep.subr.mxu0 %v470
    %520 = vmatpush1.msra.mxu0 %v469
    %521 = vmatprep.subr.mxu0 %v474
    %522 = vmatpush1.msra.mxu0 %v473
    %523 = vmatprep.subr.mxu0 %v478
    %524 = vmatpush1.msra.mxu0 %v477
    %525 = vmatprep.subr.mxu0 %v482
    %526 = vmatpush1.msra.mxu0 %v481
    %527 = vmatprep.subr.mxu0 %v486
    %528 = vmatpush1.msra.mxu0 %v485
    %529 = vmatprep.subr.mxu0 %v490
    %530 = vmatpush1.msra.mxu0 %v489
    %531 = vmatprep.subr.mxu0 %v494
    %532 = vmatpush1.msra.mxu0 %v493
    %533 = vmatprep.subr.mxu0 %v498
    %534 = vmatpush1.msra.mxu0 %v497
    %535 = vmatprep.subr.mxu0 %v502
    %536 = vmatpush1.msra.mxu0 %v501
    %537 = vmatprep.subr.mxu0 0.0
    %538 = vmatpush1.msra.mxu0 0.0
    %539 = vmatprep.subr.mxu0 0.0
    %540 = vmatpush1.msra.mxu0 0.0
    %541 = vmatprep.subr.mxu0 0.0
    %542 = vmatpush1.msra.mxu0 0.0
    %543 = vmatprep.subr.mxu0 0.0
    %544 = vmatpush1.msra.mxu0 0.0
    %545 = vmatprep.subr.mxu0 0.0
    %546 = vmatpush1.msra.mxu0 0.0
    %547 = vmatprep.subr.mxu0 0.0
    %548 = vmatpush1.msra.mxu0 0.0
    %549 = vmatprep.subr.mxu0 0.0
    %550 = vmatpush1.msra.mxu0 0.0
    %551 = vmatprep.subr.mxu0 0.0
    %552 = vmatpush1.msra.mxu0 0.0
    %553 = vmatprep.subr.mxu0 0.0
    %554 = vmatpush1.msra.mxu0 0.0
    %555 = vmatprep.subr.mxu0 0.0
    %556 = vmatpush1.msra.mxu0 0.0
    %557 = vmatprep.subr.mxu0 0.0
    %558 = vmatpush1.msra.mxu0 0.0
    %559 = vmatprep.subr.mxu0 0.0
    %560 = vmatpush1.msra.mxu0 0.0
    %561 = vmatprep.subr.mxu0 0.0
    %562 = vmatpush1.msra.mxu0 0.0
    %563 = vmatprep.subr.mxu0 0.0
    %564 = vmatpush1.msra.mxu0 0.0
    %565 = vmatprep.subr.mxu0 0.0
    %566 = vmatpush1.msra.mxu0 0.0
    %567 = vmatprep.subr.mxu0 0.0
    %568 = vmatpush1.msra.mxu0 0.0
    %569 = vmatprep.mubr.f32.mxu0 0.0
    %570 = vmatmul.mubr.f32.gmra.mrb[0].mxu0 0.0
    %v571 = vpop.f32.mrb[0].mxu0
    %v572 = vadd.f32 0.0, %v571
    %v573 = vpop.f32.mrb[0].mxu0
    %v574 = vadd.f32 0.0, %v573
    %575 = vdwg.mxu0
    %576 = vmatprep.subr.mxu0 %v444
    %577 = vmatpush1.msra.mxu0 %v443
    %578 = vmatprep.subr.mxu0 %v448
    %579 = vmatpush1.msra.mxu0 %v447
    %580 = vmatprep.subr.mxu0 %v452
    %581 = vmatpush1.msra.mxu0 %v451
    %582 = vmatprep.subr.mxu0 %v456
    %583 = vmatpush1.msra.mxu0 %v455
    %584 = vmatprep.subr.mxu0 %v460
    %585 = vmatpush1.msra.mxu0 %v459
    %586 = vmatprep.subr.mxu0 %v464
    %587 = vmatpush1.msra.mxu0 %v463
    %588 = vmatprep.subr.mxu0 %v468
    %589 = vmatpush1.msra.mxu0 %v467
    %590 = vmatprep.subr.mxu0 %v472
    %591 = vmatpush1.msra.mxu0 %v471
    %592 = vmatprep.subr.mxu0 %v476
    %593 = vmatpush1.msra.mxu0 %v475
    %594 = vmatprep.subr.mxu0 %v480
    %595 = vmatpush1.msra.mxu0 %v479
    %596 = vmatprep.subr.mxu0 %v484
    %597 = vmatpush1.msra.mxu0 %v483
    %598 = vmatprep.subr.mxu0 %v488
    %599 = vmatpush1.msra.mxu0 %v487
    %600 = vmatprep.subr.mxu0 %v492
    %601 = vmatpush1.msra.mxu0 %v491
    %602 = vmatprep.subr.mxu0 %v496
    %603 = vmatpush1.msra.mxu0 %v495
    %604 = vmatprep.subr.mxu0 %v500
    %605 = vmatpush1.msra.mxu0 %v499
    %606 = vmatprep.subr.mxu0 %v504
    %607 = vmatpush1.msra.mxu0 %v503
    %608 = vmatprep.subr.mxu0 0.0
    %609 = vmatpush1.msra.mxu0 0.0
    %610 = vmatprep.subr.mxu0 0.0
    %611 = vmatpush1.msra.mxu0 0.0
    %612 = vmatprep.subr.mxu0 0.0
    %613 = vmatpush1.msra.mxu0 0.0
    %614 = vmatprep.subr.mxu0 0.0
    %615 = vmatpush1.msra.mxu0 0.0
    %616 = vmatprep.subr.mxu0 0.0
    %617 = vmatpush1.msra.mxu0 0.0
    %618 = vmatprep.subr.mxu0 0.0
    %619 = vmatpush1.msra.mxu0 0.0
    %620 = vmatprep.subr.mxu0 0.0
    %621 = vmatpush1.msra.mxu0 0.0
    %622 = vmatprep.subr.mxu0 0.0
    %623 = vmatpush1.msra.mxu0 0.0
    %624 = vmatprep.subr.mxu0 0.0
    %625 = vmatpush1.msra.mxu0 0.0
    %626 = vmatprep.subr.mxu0 0.0
    %627 = vmatpush1.msra.mxu0 0.0
    %628 = vmatprep.subr.mxu0 0.0
    %629 = vmatpush1.msra.mxu0 0.0
    %630 = vmatprep.subr.mxu0 0.0
    %631 = vmatpush1.msra.mxu0 0.0
    %632 = vmatprep.subr.mxu0 0.0
    %633 = vmatpush1.msra.mxu0 0.0
    %634 = vmatprep.subr.mxu0 0.0
    %635 = vmatpush1.msra.mxu0 0.0
    %636 = vmatprep.subr.mxu0 0.0
    %637 = vmatpush1.msra.mxu0 0.0
    %638 = vmatprep.subr.mxu0 0.0
    %639 = vmatpush1.msra.mxu0 0.0
    %640 = vmatprep.mubr.f32.mxu0 0.0
    %641 = vmatmul.mubr.f32.gmra.mrb[0].mxu0 0.0
    %v642 = vpop.f32.mrb[0].mxu0
    %v643 = vadd.f32 0.0, %v642
    %v644 = vpop.f32.mrb[0].mxu0
    %v645 = vadd.f32 0.0, %v644
    %646 = vdwg.mxu0
    %647 = vmatprep.subr.mxu0 %v378
    %648 = vmatpush1.msra.mxu0 %v377
    %649 = vmatprep.subr.mxu0 %v382
    %650 = vmatpush1.msra.mxu0 %v381
    %651 = vmatprep.subr.mxu0 %v386
    %652 = vmatpush1.msra.mxu0 %v385
    %653 = vmatprep.subr.mxu0 %v390
    %654 = vmatpush1.msra.mxu0 %v389
    %655 = vmatprep.subr.mxu0 %v394
    %656 = vmatpush1.msra.mxu0 %v393
    %657 = vmatprep.subr.mxu0 %v398
    %658 = vmatpush1.msra.mxu0 %v397
    %659 = vmatprep.subr.mxu0 %v402
    %660 = vmatpush1.msra.mxu0 %v401
    %661 = vmatprep.subr.mxu0 %v406
    %662 = vmatpush1.msra.mxu0 %v405
    %663 = vmatprep.subr.mxu0 %v410
    %664 = vmatpush1.msra.mxu0 %v409
    %665 = vmatprep.subr.mxu0 %v414
    %666 = vmatpush1.msra.mxu0 %v413
    %667 = vmatprep.subr.mxu0 %v418
    %668 = vmatpush1.msra.mxu0 %v417
    %669 = vmatprep.subr.mxu0 %v422
    %670 = vmatpush1.msra.mxu0 %v421
    %671 = vmatprep.subr.mxu0 %v426
    %672 = vmatpush1.msra.mxu0 %v425
    %673 = vmatprep.subr.mxu0 %v430
    %674 = vmatpush1.msra.mxu0 %v429
    %675 = vmatprep.subr.mxu0 %v434
    %676 = vmatpush1.msra.mxu0 %v433
    %677 = vmatprep.subr.mxu0 %v438
    %678 = vmatpush1.msra.mxu0 %v437
    %679 = vmatprep.subr.mxu0 0.0
    %680 = vmatpush1.msra.mxu0 0.0
    %681 = vmatprep.subr.mxu0 0.0
    %682 = vmatpush1.msra.mxu0 0.0
    %683 = vmatprep.subr.mxu0 0.0
    %684 = vmatpush1.msra.mxu0 0.0
    %685 = vmatprep.subr.mxu0 0.0
    %686 = vmatpush1.msra.mxu0 0.0
    %687 = vmatprep.subr.mxu0 0.0
    %688 = vmatpush1.msra.mxu0 0.0
    %689 = vmatprep.subr.mxu0 0.0
    %690 = vmatpush1.msra.mxu0 0.0
    %691 = vmatprep.subr.mxu0 0.0
    %692 = vmatpush1.msra.mxu0 0.0
    %693 = vmatprep.subr.mxu0 0.0
    %694 = vmatpush1.msra.mxu0 0.0
    %695 = vmatprep.subr.mxu0 0.0
    %696 = vmatpush1.msra.mxu0 0.0
    %697 = vmatprep.subr.mxu0 0.0
    %698 = vmatpush1.msra.mxu0 0.0
    %699 = vmatprep.subr.mxu0 0.0
    %700 = vmatpush1.msra.mxu0 0.0
    %701 = vmatprep.subr.mxu0 0.0
    %702 = vmatpush1.msra.mxu0 0.0
    %703 = vmatprep.subr.mxu0 0.0
    %704 = vmatpush1.msra.mxu0 0.0
    %705 = vmatprep.subr.mxu0 0.0
    %706 = vmatpush1.msra.mxu0 0.0
    %707 = vmatprep.subr.mxu0 0.0
    %708 = vmatpush1.msra.mxu0 0.0
    %709 = vmatprep.subr.mxu0 0.0
    %710 = vmatpush1.msra.mxu0 0.0
    %711 = vmatprep.mubr.f32.mxu0 0.0
    %712 = vmatmul.mubr.f32.gmra.mrb[0].mxu0 %v376
    %v713 = vpop.f32.mrb[0].mxu0
    %v714 = vadd.f32 %v572, %v713
    %v715 = vpop.f32.mrb[0].mxu0
    %v716 = vadd.f32 %v574, %v715
    %717 = vdwg.mxu0
    %718 = vmatprep.subr.mxu0 %v380
    %719 = vmatpush1.msra.mxu0 %v379
    %720 = vmatprep.subr.mxu0 %v384
    %721 = vmatpush1.msra.mxu0 %v383
    %722 = vmatprep.subr.mxu0 %v388
    %723 = vmatpush1.msra.mxu0 %v387
    %724 = vmatprep.subr.mxu0 %v392
    %725 = vmatpush1.msra.mxu0 %v391
    %726 = vmatprep.subr.mxu0 %v396
    %727 = vmatpush1.msra.mxu0 %v395
    %728 = vmatprep.subr.mxu0 %v400
    %729 = vmatpush1.msra.mxu0 %v399
    %730 = vmatprep.subr.mxu0 %v404
    %731 = vmatpush1.msra.mxu0 %v403
    %732 = vmatprep.subr.mxu0 %v408
    %733 = vmatpush1.msra.mxu0 %v407
    %734 = vmatprep.subr.mxu0 %v412
    %735 = vmatpush1.msra.mxu0 %v411
    %736 = vmatprep.subr.mxu0 %v416
    %737 = vmatpush1.msra.mxu0 %v415
    %738 = vmatprep.subr.mxu0 %v420
    %739 = vmatpush1.msra.mxu0 %v419
    %740 = vmatprep.subr.mxu0 %v424
    %741 = vmatpush1.msra.mxu0 %v423
    %742 = vmatprep.subr.mxu0 %v428
    %743 = vmatpush1.msra.mxu0 %v427
    %744 = vmatprep.subr.mxu0 %v432
    %745 = vmatpush1.msra.mxu0 %v431
    %746 = vmatprep.subr.mxu0 %v436
    %747 = vmatpush1.msra.mxu0 %v435
    %748 = vmatprep.subr.mxu0 %v440
    %749 = vmatpush1.msra.mxu0 %v439
    %750 = vmatprep.subr.mxu0 0.0
    %751 = vmatpush1.msra.mxu0 0.0
    %752 = vmatprep.subr.mxu0 0.0
    %753 = vmatpush1.msra.mxu0 0.0
    %754 = vmatprep.subr.mxu0 0.0
    %755 = vmatpush1.msra.mxu0 0.0
    %756 = vmatprep.subr.mxu0 0.0
    %757 = vmatpush1.msra.mxu0 0.0
    %758 = vmatprep.subr.mxu0 0.0
    %759 = vmatpush1.msra.mxu0 0.0
    %760 = vmatprep.subr.mxu0 0.0
    %761 = vmatpush1.msra.mxu0 0.0
    %762 = vmatprep.subr.mxu0 0.0
    %763 = vmatpush1.msra.mxu0 0.0
    %764 = vmatprep.subr.mxu0 0.0
    %765 = vmatpush1.msra.mxu0 0.0
    %766 = vmatprep.subr.mxu0 0.0
    %767 = vmatpush1.msra.mxu0 0.0
    %768 = vmatprep.subr.mxu0 0.0
    %769 = vmatpush1.msra.mxu0 0.0
    %770 = vmatprep.subr.mxu0 0.0
    %771 = vmatpush1.msra.mxu0 0.0
    %772 = vmatprep.subr.mxu0 0.0
    %773 = vmatpush1.msra.mxu0 0.0
    %774 = vmatprep.subr.mxu0 0.0
    %775 = vmatpush1.msra.mxu0 0.0
    %776 = vmatprep.subr.mxu0 0.0
    %777 = vmatpush1.msra.mxu0 0.0
    %778 = vmatprep.subr.mxu0 0.0
    %779 = vmatpush1.msra.mxu0 0.0
    %780 = vmatprep.subr.mxu0 0.0
    %781 = vmatpush1.msra.mxu0 0.0
    %782 = vmatprep.mubr.f32.mxu0 0.0
    %783 = vmatmul.mubr.f32.gmra.mrb[0].mxu0 %v376
    %v784 = vpop.f32.mrb[0].mxu0
    %v785 = vadd.f32 %v643, %v784
    %v786 = vpop.f32.mrb[0].mxu0
    %v787 = vadd.f32 %v645, %v786
    %788 = vdwg.mxu0
    %v789 = vld [vmem:[%s6] sm:$0xf]
    %v791 = vlaneseq
    %v792 = vshrl.u32 %v791, 7
    %v793 = vsub.s32 0, %v792
    %v794 = vrot.slane %v789, %v793
    %v795 = vlaneseq
    %v796 = vshrl.u32 %v795, 7
    %v797 = vsub.s32 1, %v796
    %v798 = vrot.slane %v789, %v797
    %v799 = vlaneseq
    %v800 = vshrl.u32 %v799, 7
    %v801 = vsub.s32 2, %v800
    %v802 = vrot.slane %v789, %v801
    %v803 = vlaneseq
    %v804 = vshrl.u32 %v803, 7
    %v805 = vsub.s32 3, %v804
    %v806 = vrot.slane %v789, %v805
    %v811 = vadd.f32 %v714, %v794
    %v812 = vadd.f32 %v716, %v798
    %v813 = vadd.f32 %v785, %v802
    %v814 = vadd.f32 %v787, %v806
    %v815 = vsub.f32 0.0, %v811
    %v816 = vmul.f32 %v815, 1.442695
    %v817 = vpow.pop %v816
    %v818 = vadd.f32 %v817, 1.0
    %v819 = vrcp.pop %v818
    %v820 = vsub.f32 0.0, %v812
    %v821 = vmul.f32 %v820, 1.442695
    %v822 = vpow.pop %v821
    %v823 = vadd.f32 %v822, 1.0
    %v824 = vrcp.pop %v823
    %v825 = vtanh.pop %v813
    %v826 = vsub.f32 0.0, %v814
    %v827 = vmul.f32 %v826, 1.442695
    %v828 = vpow.pop %v827
    %v829 = vadd.f32 %v828, 1.0
    %v830 = vrcp.pop %v829
    %v831 = vmul.f32 %v824, 0.0
    %v832 = vmul.f32 %v819, %v825
    %v833 = vadd.f32 %v831, %v832
    %v834 = vtanh.pop %v833
    %v835 = vmul.f32 %v830, %v834
    %s836 = scalar_lea.vmem %s0, 8
    %v837 = vld [vmem:[%s836] sm:$0xff]
    %839 = vset.pattern.permute.xlu0 0
    %840 = vperm.xlu0 %839, %v837
    %v841 = vpop.permute.xlu0 %840
    %v843 = vmul.f32 %v841, %v99
    %v844 = vmul.f32 %v841, %v103
    %v845 = vmul.f32 %v841, %v107
    %v846 = vmul.f32 %v841, %v111
    %v847 = vadd.f32 %v843, %v125
    %v848 = vadd.f32 %v844, %v129
    %v849 = vadd.f32 %v845, %v133
    %v850 = vadd.f32 %v846, %v137
    %851 = vmatprep.subr.mxu0 %v147
    %852 = vmatpush1.msra.mxu0 %v146
    %853 = vmatprep.subr.mxu0 %v151
    %854 = vmatpush1.msra.mxu0 %v150
    %855 = vmatprep.subr.mxu0 %v155
    %856 = vmatpush1.msra.mxu0 %v154
    %857 = vmatprep.subr.mxu0 %v159
    %858 = vmatpush1.msra.mxu0 %v158
    %859 = vmatprep.subr.mxu0 %v163
    %860 = vmatpush1.msra.mxu0 %v162
    %861 = vmatprep.subr.mxu0 %v167
    %862 = vmatpush1.msra.mxu0 %v166
    %863 = vmatprep.subr.mxu0 %v171
    %864 = vmatpush1.msra.mxu0 %v170
    %865 = vmatprep.subr.mxu0 %v175
    %866 = vmatpush1.msra.mxu0 %v174
    %867 = vmatprep.subr.mxu0 %v179
    %868 = vmatpush1.msra.mxu0 %v178
    %869 = vmatprep.subr.mxu0 %v183
    %870 = vmatpush1.msra.mxu0 %v182
    %871 = vmatprep.subr.mxu0 %v187
    %872 = vmatpush1.msra.mxu0 %v186
    %873 = vmatprep.subr.mxu0 %v191
    %874 = vmatpush1.msra.mxu0 %v190
    %875 = vmatprep.subr.mxu0 %v195
    %876 = vmatpush1.msra.mxu0 %v194
    %877 = vmatprep.subr.mxu0 %v199
    %878 = vmatpush1.msra.mxu0 %v198
    %879 = vmatprep.subr.mxu0 %v203
    %880 = vmatpush1.msra.mxu0 %v202
    %881 = vmatprep.subr.mxu0 %v207
    %882 = vmatpush1.msra.mxu0 %v206
    %883 = vmatprep.subr.mxu0 0.0
    %884 = vmatpush1.msra.mxu0 0.0
    %885 = vmatprep.subr.mxu0 0.0
    %886 = vmatpush1.msra.mxu0 0.0
    %887 = vmatprep.subr.mxu0 0.0
    %888 = vmatpush1.msra.mxu0 0.0
    %889 = vmatprep.subr.mxu0 0.0
    %890 = vmatpush1.msra.mxu0 0.0
    %891 = vmatprep.subr.mxu0 0.0
    %892 = vmatpush1.msra.mxu0 0.0
    %893 = vmatprep.subr.mxu0 0.0
    %894 = vmatpush1.msra.mxu0 0.0
    %895 = vmatprep.subr.mxu0 0.0
    %896 = vmatpush1.msra.mxu0 0.0
    %897 = vmatprep.subr.mxu0 0.0
    %898 = vmatpush1.msra.mxu0 0.0
    %899 = vmatprep.subr.mxu0 0.0
    %900 = vmatpush1.msra.mxu0 0.0
    %901 = vmatprep.subr.mxu0 0.0
    %902 = vmatpush1.msra.mxu0 0.0
    %903 = vmatprep.subr.mxu0 0.0
    %904 = vmatpush1.msra.mxu0 0.0
    %905 = vmatprep.subr.mxu0 0.0
    %906 = vmatpush1.msra.mxu0 0.0
    %907 = vmatprep.subr.mxu0 0.0
    %908 = vmatpush1.msra.mxu0 0.0
    %909 = vmatprep.subr.mxu0 0.0
    %910 = vmatpush1.msra.mxu0 0.0
    %911 = vmatprep.subr.mxu0 0.0
    %912 = vmatpush1.msra.mxu0 0.0
    %913 = vmatprep.subr.mxu0 0.0
    %914 = vmatpush1.msra.mxu0 0.0
    %915 = vmatprep.mubr.f32.mxu0 0.0
    %916 = vmatmul.mubr.f32.gmra.mrb[0].mxu0 %v376
    %v917 = vpop.f32.mrb[0].mxu0
    %v918 = vadd.f32 0.0, %v917
    %v919 = vpop.f32.mrb[0].mxu0
    %v920 = vadd.f32 0.0, %v919
    %921 = vdwg.mxu0
    %922 = vmatprep.subr.mxu0 %v149
    %923 = vmatpush1.msra.mxu0 %v148
    %924 = vmatprep.subr.mxu0 %v153
    %925 = vmatpush1.msra.mxu0 %v152
    %926 = vmatprep.subr.mxu0 %v157
    %927 = vmatpush1.msra.mxu0 %v156
    %928 = vmatprep.subr.mxu0 %v161
    %929 = vmatpush1.msra.mxu0 %v160
    %930 = vmatprep.subr.mxu0 %v165
    %931 = vmatpush1.msra.mxu0 %v164
    %932 = vmatprep.subr.mxu0 %v169
    %933 = vmatpush1.msra.mxu0 %v168
    %934 = vmatprep.subr.mxu0 %v173
    %935 = vmatpush1.msra.mxu0 %v172
    %936 = vmatprep.subr.mxu0 %v177
    %937 = vmatpush1.msra.mxu0 %v176
    %938 = vmatprep.subr.mxu0 %v181
    %939 = vmatpush1.msra.mxu0 %v180
    %940 = vmatprep.subr.mxu0 %v185
    %941 = vmatpush1.msra.mxu0 %v184
    %942 = vmatprep.subr.mxu0 %v189
    %943 = vmatpush1.msra.mxu0 %v188
    %944 = vmatprep.subr.mxu0 %v193
    %945 = vmatpush1.msra.mxu0 %v192
    %946 = vmatprep.subr.mxu0 %v197
    %947 = vmatpush1.msra.mxu0 %v196
    %948 = vmatprep.subr.mxu0 %v201
    %949 = vmatpush1.msra.mxu0 %v200
    %950 = vmatprep.subr.mxu0 %v205
    %951 = vmatpush1.msra.mxu0 %v204
    %952 = vmatprep.subr.mxu0 %v209
    %953 = vmatpush1.msra.mxu0 %v208
    %954 = vmatprep.subr.mxu0 0.0
    %955 = vmatpush1.msra.mxu0 0.0
    %956 = vmatprep.subr.mxu0 0.0
    %957 = vmatpush1.msra.mxu0 0.0
    %958 = vmatprep.subr.mxu0 0.0
    %959 = vmatpush1.msra.mxu0 0.0
    %960 = vmatprep.subr.mxu0 0.0
    %961 = vmatpush1.msra.mxu0 0.0
    %962 = vmatprep.subr.mxu0 0.0
    %963 = vmatpush1.msra.mxu0 0.0
    %964 = vmatprep.subr.mxu0 0.0
    %965 = vmatpush1.msra.mxu0 0.0
    %966 = vmatprep.subr.mxu0 0.0
    %967 = vmatpush1.msra.mxu0 0.0
    %968 = vmatprep.subr.mxu0 0.0
    %969 = vmatpush1.msra.mxu0 0.0
    %970 = vmatprep.subr.mxu0 0.0
    %971 = vmatpush1.msra.mxu0 0.0
    %972 = vmatprep.subr.mxu0 0.0
    %973 = vmatpush1.msra.mxu0 0.0
    %974 = vmatprep.subr.mxu0 0.0
    %975 = vmatpush1.msra.mxu0 0.0
    %976 = vmatprep.subr.mxu0 0.0
    %977 = vmatpush1.msra.mxu0 0.0
    %978 = vmatprep.subr.mxu0 0.0
    %979 = vmatpush1.msra.mxu0 0.0
    %980 = vmatprep.subr.mxu0 0.0
    %981 = vmatpush1.msra.mxu0 0.0
    %982 = vmatprep.subr.mxu0 0.0
    %983 = vmatpush1.msra.mxu0 0.0
    %984 = vmatprep.subr.mxu0 0.0
    %985 = vmatpush1.msra.mxu0 0.0
    %986 = vmatprep.mubr.f32.mxu0 0.0
    %987 = vmatmul.mubr.f32.gmra.mrb[0].mxu0 %v376
    %v988 = vpop.f32.mrb[0].mxu0
    %v989 = vadd.f32 0.0, %v988
    %v990 = vpop.f32.mrb[0].mxu0
    %v991 = vadd.f32 0.0, %v990
    %992 = vdwg.mxu0
    %v993 = vadd.f32 %v847, %v918
    %v994 = vadd.f32 %v848, %v920
    %v995 = vadd.f32 %v849, %v989
    %v996 = vadd.f32 %v850, %v991
    %v997 = vsub.f32 0.0, %v993
    %v998 = vmul.f32 %v997, 1.442695
    %v999 = vpow.pop %v998
    %v1000 = vadd.f32 %v999, 1.0
    %v1001 = vrcp.pop %v1000
    %v1002 = vsub.f32 0.0, %v994
    %v1003 = vmul.f32 %v1002, 1.442695
    %v1004 = vpow.pop %v1003
    %v1005 = vadd.f32 %v1004, 1.0
    %v1006 = vrcp.pop %v1005
    %v1007 = vtanh.pop %v995
    %v1008 = vsub.f32 0.0, %v996
    %v1009 = vmul.f32 %v1008, 1.442695
    %v1010 = vpow.pop %v1009
    %v1011 = vadd.f32 %v1010, 1.0
    %v1012 = vrcp.pop %v1011
    %v1013 = vmul.f32 %v1006, %v374
    %v1014 = vmul.f32 %v1001, %v1007
    %v1015 = vadd.f32 %v1013, %v1014
    %v1016 = vtanh.pop %v1015
    %v1017 = vmul.f32 %v1012, %v1016
    %1018 = vmatprep.subr.mxu0 %v442
    %1019 = vmatpush1.msra.mxu0 %v441
    %1020 = vmatprep.subr.mxu0 %v446
    %1021 = vmatpush1.msra.mxu0 %v445
    %1022 = vmatprep.subr.mxu0 %v450
    %1023 = vmatpush1.msra.mxu0 %v449
    %1024 = vmatprep.subr.mxu0 %v454
    %1025 = vmatpush1.msra.mxu0 %v453
    %1026 = vmatprep.subr.mxu0 %v458
    %1027 = vmatpush1.msra.mxu0 %v457
    %1028 = vmatprep.subr.mxu0 %v462
    %1029 = vmatpush1.msra.mxu0 %v461
    %1030 = vmatprep.subr.mxu0 %v466
    %1031 = vmatpush1.msra.mxu0 %v465
    %1032 = vmatprep.subr.mxu0 %v470
    %1033 = vmatpush1.msra.mxu0 %v469
    %1034 = vmatprep.subr.mxu0 %v474
    %1035 = vmatpush1.msra.mxu0 %v473
    %1036 = vmatprep.subr.mxu0 %v478
    %1037 = vmatpush1.msra.mxu0 %v477
    %1038 = vmatprep.subr.mxu0 %v482
    %1039 = vmatpush1.msra.mxu0 %v481
    %1040 = vmatprep.subr.mxu0 %v486
    %1041 = vmatpush1.msra.mxu0 %v485
    %1042 = vmatprep.subr.mxu0 %v490
    %1043 = vmatpush1.msra.mxu0 %v489
    %1044 = vmatprep.subr.mxu0 %v494
    %1045 = vmatpush1.msra.mxu0 %v493
    %1046 = vmatprep.subr.mxu0 %v498
    %1047 = vmatpush1.msra.mxu0 %v497
    %1048 = vmatprep.subr.mxu0 %v502
    %1049 = vmatpush1.msra.mxu0 %v501
    %1050 = vmatprep.subr.mxu0 0.0
    %1051 = vmatpush1.msra.mxu0 0.0
    %1052 = vmatprep.subr.mxu0 0.0
    %1053 = vmatpush1.msra.mxu0 0.0
    %1054 = vmatprep.subr.mxu0 0.0
    %1055 = vmatpush1.msra.mxu0 0.0
    %1056 = vmatprep.subr.mxu0 0.0
    %1057 = vmatpush1.msra.mxu0 0.0
    %1058 = vmatprep.subr.mxu0 0.0
    %1059 = vmatpush1.msra.mxu0 0.0
    %1060 = vmatprep.subr.mxu0 0.0
    %1061 = vmatpush1.msra.mxu0 0.0
    %1062 = vmatprep.subr.mxu0 0.0
    %1063 = vmatpush1.msra.mxu0 0.0
    %1064 = vmatprep.subr.mxu0 0.0
    %1065 = vmatpush1.msra.mxu0 0.0
    %1066 = vmatprep.subr.mxu0 0.0
    %1067 = vmatpush1.msra.mxu0 0.0
    %1068 = vmatprep.subr.mxu0 0.0
    %1069 = vmatpush1.msra.mxu0 0.0
    %1070 = vmatprep.subr.mxu0 0.0
    %1071 = vmatpush1.msra.mxu0 0.0
    %1072 = vmatprep.subr.mxu0 0.0
    %1073 = vmatpush1.msra.mxu0 0.0
    %1074 = vmatprep.subr.mxu0 0.0
    %1075 = vmatpush1.msra.mxu0 0.0
    %1076 = vmatprep.subr.mxu0 0.0
    %1077 = vmatpush1.msra.mxu0 0.0
    %1078 = vmatprep.subr.mxu0 0.0
    %1079 = vmatpush1.msra.mxu0 0.0
    %1080 = vmatprep.subr.mxu0 0.0
    %1081 = vmatpush1.msra.mxu0 0.0
    %1082 = vmatprep.mubr.f32.mxu0 0.0
    %1083 = vmatmul.mubr.f32.gmra.mrb[0].mxu0 %v835
    %v1084 = vpop.f32.mrb[0].mxu0
    %v1085 = vadd.f32 0.0, %v1084
    %v1086 = vpop.f32.mrb[0].mxu0
    %v1087 = vadd.f32 0.0, %v1086
    %1088 = vdwg.mxu0
    %1089 = vmatprep.subr.mxu0 %v444
    %1090 = vmatpush1.msra.mxu0 %v443
    %1091 = vmatprep.subr.mxu0 %v448
    %1092 = vmatpush1.msra.mxu0 %v447
    %1093 = vmatprep.subr.mxu0 %v452
    %1094 = vmatpush1.msra.mxu0 %v451
    %1095 = vmatprep.subr.mxu0 %v456
    %1096 = vmatpush1.msra.mxu0 %v455
    %1097 = vmatprep.subr.mxu0 %v460
    %1098 = vmatpush1.msra.mxu0 %v459
    %1099 = vmatprep.subr.mxu0 %v464
    %1100 = vmatpush1.msra.mxu0 %v463
    %1101 = vmatprep.subr.mxu0 %v468
    %1102 = vmatpush1.msra.mxu0 %v467
    %1103 = vmatprep.subr.mxu0 %v472
    %1104 = vmatpush1.msra.mxu0 %v471
    %1105 = vmatprep.subr.mxu0 %v476
    %1106 = vmatpush1.msra.mxu0 %v475
    %1107 = vmatprep.subr.mxu0 %v480
    %1108 = vmatpush1.msra.mxu0 %v479
    %1109 = vmatprep.subr.mxu0 %v484
    %1110 = vmatpush1.msra.mxu0 %v483
    %1111 = vmatprep.subr.mxu0 %v488
    %1112 = vmatpush1.msra.mxu0 %v487
    %1113 = vmatprep.subr.mxu0 %v492
    %1114 = vmatpush1.msra.mxu0 %v491
    %1115 = vmatprep.subr.mxu0 %v496
    %1116 = vmatpush1.msra.mxu0 %v495
    %1117 = vmatprep.subr.mxu0 %v500
    %1118 = vmatpush1.msra.mxu0 %v499
    %1119 = vmatprep.subr.mxu0 %v504
    %1120 = vmatpush1.msra.mxu0 %v503
    %1121 = vmatprep.subr.mxu0 0.0
    %1122 = vmatpush1.msra.mxu0 0.0
    %1123 = vmatprep.subr.mxu0 0.0
    %1124 = vmatpush1.msra.mxu0 0.0
    %1125 = vmatprep.subr.mxu0 0.0
    %1126 = vmatpush1.msra.mxu0 0.0
    %1127 = vmatprep.subr.mxu0 0.0
    %1128 = vmatpush1.msra.mxu0 0.0
    %1129 = vmatprep.subr.mxu0 0.0
    %1130 = vmatpush1.msra.mxu0 0.0
    %1131 = vmatprep.subr.mxu0 0.0
    %1132 = vmatpush1.msra.mxu0 0.0
    %1133 = vmatprep.subr.mxu0 0.0
    %1134 = vmatpush1.msra.mxu0 0.0
    %1135 = vmatprep.subr.mxu0 0.0
    %1136 = vmatpush1.msra.mxu0 0.0
    %1137 = vmatprep.subr.mxu0 0.0
    %1138 = vmatpush1.msra.mxu0 0.0
    %1139 = vmatprep.subr.mxu0 0.0
    %1140 = vmatpush1.msra.mxu0 0.0
    %1141 = vmatprep.subr.mxu0 0.0
    %1142 = vmatpush1.msra.mxu0 0.0
    %1143 = vmatprep.subr.mxu0 0.0
    %1144 = vmatpush1.msra.mxu0 0.0
    %1145 = vmatprep.subr.mxu0 0.0
    %1146 = vmatpush1.msra.mxu0 0.0
    %1147 = vmatprep.subr.mxu0 0.0
    %1148 = vmatpush1.msra.mxu0 0.0
    %1149 = vmatprep.subr.mxu0 0.0
    %1150 = vmatpush1.msra.mxu0 0.0
    %1151 = vmatprep.subr.mxu0 0.0
    %1152 = vmatpush1.msra.mxu0 0.0
    %1153 = vmatprep.mubr.f32.mxu0 0.0
    %1154 = vmatmul.mubr.f32.gmra.mrb[0].mxu0 %v835
    %v1155 = vpop.f32.mrb[0].mxu0
    %v1156 = vadd.f32 0.0, %v1155
    %v1157 = vpop.f32.mrb[0].mxu0
    %v1158 = vadd.f32 0.0, %v1157
    %1159 = vdwg.mxu0
    %1160 = vmatprep.subr.mxu0 %v378
    %1161 = vmatpush1.msra.mxu0 %v377
    %1162 = vmatprep.subr.mxu0 %v382
    %1163 = vmatpush1.msra.mxu0 %v381
    %1164 = vmatprep.subr.mxu0 %v386
    %1165 = vmatpush1.msra.mxu0 %v385
    %1166 = vmatprep.subr.mxu0 %v390
    %1167 = vmatpush1.msra.mxu0 %v389
    %1168 = vmatprep.subr.mxu0 %v394
    %1169 = vmatpush1.msra.mxu0 %v393
    %1170 = vmatprep.subr.mxu0 %v398
    %1171 = vmatpush1.msra.mxu0 %v397
    %1172 = vmatprep.subr.mxu0 %v402
    %1173 = vmatpush1.msra.mxu0 %v401
    %1174 = vmatprep.subr.mxu0 %v406
    %1175 = vmatpush1.msra.mxu0 %v405
    %1176 = vmatprep.subr.mxu0 %v410
    %1177 = vmatpush1.msra.mxu0 %v409
    %1178 = vmatprep.subr.mxu0 %v414
    %1179 = vmatpush1.msra.mxu0 %v413
    %1180 = vmatprep.subr.mxu0 %v418
    %1181 = vmatpush1.msra.mxu0 %v417
    %1182 = vmatprep.subr.mxu0 %v422
    %1183 = vmatpush1.msra.mxu0 %v421
    %1184 = vmatprep.subr.mxu0 %v426
    %1185 = vmatpush1.msra.mxu0 %v425
    %1186 = vmatprep.subr.mxu0 %v430
    %1187 = vmatpush1.msra.mxu0 %v429
    %1188 = vmatprep.subr.mxu0 %v434
    %1189 = vmatpush1.msra.mxu0 %v433
    %1190 = vmatprep.subr.mxu0 %v438
    %1191 = vmatpush1.msra.mxu0 %v437
    %1192 = vmatprep.subr.mxu0 0.0
    %1193 = vmatpush1.msra.mxu0 0.0
    %1194 = vmatprep.subr.mxu0 0.0
    %1195 = vmatpush1.msra.mxu0 0.0
    %1196 = vmatprep.subr.mxu0 0.0
    %1197 = vmatpush1.msra.mxu0 0.0
    %1198 = vmatprep.subr.mxu0 0.0
    %1199 = vmatpush1.msra.mxu0 0.0
    %1200 = vmatprep.subr.mxu0 0.0
    %1201 = vmatpush1.msra.mxu0 0.0
    %1202 = vmatprep.subr.mxu0 0.0
    %1203 = vmatpush1.msra.mxu0 0.0
    %1204 = vmatprep.subr.mxu0 0.0
    %1205 = vmatpush1.msra.mxu0 0.0
    %1206 = vmatprep.subr.mxu0 0.0
    %1207 = vmatpush1.msra.mxu0 0.0
    %1208 = vmatprep.subr.mxu0 0.0
    %1209 = vmatpush1.msra.mxu0 0.0
    %1210 = vmatprep.subr.mxu0 0.0
    %1211 = vmatpush1.msra.mxu0 0.0
    %1212 = vmatprep.subr.mxu0 0.0
    %1213 = vmatpush1.msra.mxu0 0.0
    %1214 = vmatprep.subr.mxu0 0.0
    %1215 = vmatpush1.msra.mxu0 0.0
    %1216 = vmatprep.subr.mxu0 0.0
    %1217 = vmatpush1.msra.mxu0 0.0
    %1218 = vmatprep.subr.mxu0 0.0
    %1219 = vmatpush1.msra.mxu0 0.0
    %1220 = vmatprep.subr.mxu0 0.0
    %1221 = vmatpush1.msra.mxu0 0.0
    %1222 = vmatprep.subr.mxu0 0.0
    %1223 = vmatpush1.msra.mxu0 0.0
    %1224 = vmatprep.mubr.f32.mxu0 0.0
    %1225 = vmatmul.mubr.f32.gmra.mrb[0].mxu0 %v1017
    %v1226 = vpop.f32.mrb[0].mxu0
    %v1227 = vadd.f32 %v1085, %v1226
    %v1228 = vpop.f32.mrb[0].mxu0
    %v1229 = vadd.f32 %v1087, %v1228
    %1230 = vdwg.mxu0
    %1231 = vmatprep.subr.mxu0 %v380
    %1232 = vmatpush1.msra.mxu0 %v379
    %1233 = vmatprep.subr.mxu0 %v384
    %1234 = vmatpush1.msra.mxu0 %v383
    %1235 = vmatprep.subr.mxu0 %v388
    %1236 = vmatpush1.msra.mxu0 %v387
    %1237 = vmatprep.subr.mxu0 %v392
    %1238 = vmatpush1.msra.mxu0 %v391
    %1239 = vmatprep.subr.mxu0 %v396
    %1240 = vmatpush1.msra.mxu0 %v395
    %1241 = vmatprep.subr.mxu0 %v400
    %1242 = vmatpush1.msra.mxu0 %v399
    %1243 = vmatprep.subr.mxu0 %v404
    %1244 = vmatpush1.msra.mxu0 %v403
    %1245 = vmatprep.subr.mxu0 %v408
    %1246 = vmatpush1.msra.mxu0 %v407
    %1247 = vmatprep.subr.mxu0 %v412
    %1248 = vmatpush1.msra.mxu0 %v411
    %1249 = vmatprep.subr.mxu0 %v416
    %1250 = vmatpush1.msra.mxu0 %v415
    %1251 = vmatprep.subr.mxu0 %v420
    %1252 = vmatpush1.msra.mxu0 %v419
    %1253 = vmatprep.subr.mxu0 %v424
    %1254 = vmatpush1.msra.mxu0 %v423
    %1255 = vmatprep.subr.mxu0 %v428
    %1256 = vmatpush1.msra.mxu0 %v427
    %1257 = vmatprep.subr.mxu0 %v432
    %1258 = vmatpush1.msra.mxu0 %v431
    %1259 = vmatprep.subr.mxu0 %v436
    %1260 = vmatpush1.msra.mxu0 %v435
    %1261 = vmatprep.subr.mxu0 %v440
    %1262 = vmatpush1.msra.mxu0 %v439
    %1263 = vmatprep.subr.mxu0 0.0
    %1264 = vmatpush1.msra.mxu0 0.0
    %1265 = vmatprep.subr.mxu0 0.0
    %1266 = vmatpush1.msra.mxu0 0.0
    %1267 = vmatprep.subr.mxu0 0.0
    %1268 = vmatpush1.msra.mxu0 0.0
    %1269 = vmatprep.subr.mxu0 0.0
    %1270 = vmatpush1.msra.mxu0 0.0
    %1271 = vmatprep.subr.mxu0 0.0
    %1272 = vmatpush1.msra.mxu0 0.0
    %1273 = vmatprep.subr.mxu0 0.0
    %1274 = vmatpush1.msra.mxu0 0.0
    %1275 = vmatprep.subr.mxu0 0.0
    %1276 = vmatpush1.msra.mxu0 0.0
    %1277 = vmatprep.subr.mxu0 0.0
    %1278 = vmatpush1.msra.mxu0 0.0
    %1279 = vmatprep.subr.mxu0 0.0
    %1280 = vmatpush1.msra.mxu0 0.0
    %1281 = vmatprep.subr.mxu0 0.0
    %1282 = vmatpush1.msra.mxu0 0.0
    %1283 = vmatprep.subr.mxu0 0.0
    %1284 = vmatpush1.msra.mxu0 0.0
    %1285 = vmatprep.subr.mxu0 0.0
    %1286 = vmatpush1.msra.mxu0 0.0
    %1287 = vmatprep.subr.mxu0 0.0
    %1288 = vmatpush1.msra.mxu0 0.0
    %1289 = vmatprep.subr.mxu0 0.0
    %1290 = vmatpush1.msra.mxu0 0.0
    %1291 = vmatprep.subr.mxu0 0.0
    %1292 = vmatpush1.msra.mxu0 0.0
    %1293 = vmatprep.subr.mxu0 0.0
    %1294 = vmatpush1.msra.mxu0 0.0
    %1295 = vmatprep.mubr.f32.mxu0 0.0
    %1296 = vmatmul.mubr.f32.gmra.mrb[0].mxu0 %v1017
    %v1297 = vpop.f32.mrb[0].mxu0
    %v1298 = vadd.f32 %v1156, %v1297
    %v1299 = vpop.f32.mrb[0].mxu0
    %v1300 = vadd.f32 %v1158, %v1299
    %1301 = vdwg.mxu0
    %v1302 = vadd.f32 %v1227, %v794
    %v1303 = vadd.f32 %v1229, %v798
    %v1304 = vadd.f32 %v1298, %v802
    %v1305 = vadd.f32 %v1300, %v806
    %v1306 = vsub.f32 0.0, %v1302
    %v1307 = vmul.f32 %v1306, 1.442695
    %v1308 = vpow.pop %v1307
    %v1309 = vadd.f32 %v1308, 1.0
    %v1310 = vrcp.pop %v1309
    %v1311 = vsub.f32 0.0, %v1303
    %v1312 = vmul.f32 %v1311, 1.442695
    %v1313 = vpow.pop %v1312
    %v1314 = vadd.f32 %v1313, 1.0
    %v1315 = vrcp.pop %v1314
    %v1316 = vtanh.pop %v1304
    %v1317 = vsub.f32 0.0, %v1305
    %v1318 = vmul.f32 %v1317, 1.442695
    %v1319 = vpow.pop %v1318
    %v1320 = vadd.f32 %v1319, 1.0
    %v1321 = vrcp.pop %v1320
    %v1322 = vmul.f32 %v1315, %v833
    %v1323 = vmul.f32 %v1310, %v1316
    %v1324 = vadd.f32 %v1322, %v1323
    %v1325 = vtanh.pop %v1324
    %v1326 = vmul.f32 %v1321, %v1325
    %s1327 = scalar_lea.vmem %s0, 16
    %v1328 = vld [vmem:[%s1327] sm:$0xff]
    %1330 = vset.pattern.permute.xlu0 0
    %1331 = vperm.xlu0 %1330, %v1328
    %v1332 = vpop.permute.xlu0 %1331
    %v1334 = vmul.f32 %v1332, %v99
    %v1335 = vmul.f32 %v1332, %v103
    %v1336 = vmul.f32 %v1332, %v107
    %v1337 = vmul.f32 %v1332, %v111
    %v1338 = vadd.f32 %v1334, %v125
    %v1339 = vadd.f32 %v1335, %v129
    %v1340 = vadd.f32 %v1336, %v133
    %v1341 = vadd.f32 %v1337, %v137
    %1342 = vmatprep.subr.mxu0 %v147
    %1343 = vmatpush1.msra.mxu0 %v146
    %1344 = vmatprep.subr.mxu0 %v151
    %1345 = vmatpush1.msra.mxu0 %v150
    %1346 = vmatprep.subr.mxu0 %v155
    %1347 = vmatpush1.msra.mxu0 %v154
    %1348 = vmatprep.subr.mxu0 %v159
    %1349 = vmatpush1.msra.mxu0 %v158
    %1350 = vmatprep.subr.mxu0 %v163
    %1351 = vmatpush1.msra.mxu0 %v162
    %1352 = vmatprep.subr.mxu0 %v167
    %1353 = vmatpush1.msra.mxu0 %v166
    %1354 = vmatprep.subr.mxu0 %v171
    %1355 = vmatpush1.msra.mxu0 %v170
    %1356 = vmatprep.subr.mxu0 %v175
    %1357 = vmatpush1.msra.mxu0 %v174
    %1358 = vmatprep.subr.mxu0 %v179
    %1359 = vmatpush1.msra.mxu0 %v178
    %1360 = vmatprep.subr.mxu0 %v183
    %1361 = vmatpush1.msra.mxu0 %v182
    %1362 = vmatprep.subr.mxu0 %v187
    %1363 = vmatpush1.msra.mxu0 %v186
    %1364 = vmatprep.subr.mxu0 %v191
    %1365 = vmatpush1.msra.mxu0 %v190
    %1366 = vmatprep.subr.mxu0 %v195
    %1367 = vmatpush1.msra.mxu0 %v194
    %1368 = vmatprep.subr.mxu0 %v199
    %1369 = vmatpush1.msra.mxu0 %v198
    %1370 = vmatprep.subr.mxu0 %v203
    %1371 = vmatpush1.msra.mxu0 %v202
    %1372 = vmatprep.subr.mxu0 %v207
    %1373 = vmatpush1.msra.mxu0 %v206
    %1374 = vmatprep.subr.mxu0 0.0
    %1375 = vmatpush1.msra.mxu0 0.0
    %1376 = vmatprep.subr.mxu0 0.0
    %1377 = vmatpush1.msra.mxu0 0.0
    %1378 = vmatprep.subr.mxu0 0.0
    %1379 = vmatpush1.msra.mxu0 0.0
    %1380 = vmatprep.subr.mxu0 0.0
    %1381 = vmatpush1.msra.mxu0 0.0
    %1382 = vmatprep.subr.mxu0 0.0
    %1383 = vmatpush1.msra.mxu0 0.0
    %1384 = vmatprep.subr.mxu0 0.0
    %1385 = vmatpush1.msra.mxu0 0.0
    %1386 = vmatprep.subr.mxu0 0.0
    %1387 = vmatpush1.msra.mxu0 0.0
    %1388 = vmatprep.subr.mxu0 0.0
    %1389 = vmatpush1.msra.mxu0 0.0
    %1390 = vmatprep.subr.mxu0 0.0
    %1391 = vmatpush1.msra.mxu0 0.0
    %1392 = vmatprep.subr.mxu0 0.0
    %1393 = vmatpush1.msra.mxu0 0.0
    %1394 = vmatprep.subr.mxu0 0.0
    %1395 = vmatpush1.msra.mxu0 0.0
    %1396 = vmatprep.subr.mxu0 0.0
    %1397 = vmatpush1.msra.mxu0 0.0
    %1398 = vmatprep.subr.mxu0 0.0
    %1399 = vmatpush1.msra.mxu0 0.0
    %1400 = vmatprep.subr.mxu0 0.0
    %1401 = vmatpush1.msra.mxu0 0.0
    %1402 = vmatprep.subr.mxu0 0.0
    %1403 = vmatpush1.msra.mxu0 0.0
    %1404 = vmatprep.subr.mxu0 0.0
    %1405 = vmatpush1.msra.mxu0 0.0
    %1406 = vmatprep.mubr.f32.mxu0 0.0
    %1407 = vmatmul.mubr.f32.gmra.mrb[0].mxu0 %v1017
    %v1408 = vpop.f32.mrb[0].mxu0
    %v1409 = vadd.f32 0.0, %v1408
    %v1410 = vpop.f32.mrb[0].mxu0
    %v1411 = vadd.f32 0.0, %v1410
    %1412 = vdwg.mxu0
    %1413 = vmatprep.subr.mxu0 %v149
    %1414 = vmatpush1.msra.mxu0 %v148
    %1415 = vmatprep.subr.mxu0 %v153
    %1416 = vmatpush1.msra.mxu0 %v152
    %1417 = vmatprep.subr.mxu0 %v157
    %1418 = vmatpush1.msra.mxu0 %v156
    %1419 = vmatprep.subr.mxu0 %v161
    %1420 = vmatpush1.msra.mxu0 %v160
    %1421 = vmatprep.subr.mxu0 %v165
    %1422 = vmatpush1.msra.mxu0 %v164
    %1423 = vmatprep.subr.mxu0 %v169
    %1424 = vmatpush1.msra.mxu0 %v168
    %1425 = vmatprep.subr.mxu0 %v173
    %1426 = vmatpush1.msra.mxu0 %v172
    %1427 = vmatprep.subr.mxu0 %v177
    %1428 = vmatpush1.msra.mxu0 %v176
    %1429 = vmatprep.subr.mxu0 %v181
    %1430 = vmatpush1.msra.mxu0 %v180
    %1431 = vmatprep.subr.mxu0 %v185
    %1432 = vmatpush1.msra.mxu0 %v184
    %1433 = vmatprep.subr.mxu0 %v189
    %1434 = vmatpush1.msra.mxu0 %v188
    %1435 = vmatprep.subr.mxu0 %v193
    %1436 = vmatpush1.msra.mxu0 %v192
    %1437 = vmatprep.subr.mxu0 %v197
    %1438 = vmatpush1.msra.mxu0 %v196
    %1439 = vmatprep.subr.mxu0 %v201
    %1440 = vmatpush1.msra.mxu0 %v200
    %1441 = vmatprep.subr.mxu0 %v205
    %1442 = vmatpush1.msra.mxu0 %v204
    %1443 = vmatprep.subr.mxu0 %v209
    %1444 = vmatpush1.msra.mxu0 %v208
    %1445 = vmatprep.subr.mxu0 0.0
    %1446 = vmatpush1.msra.mxu0 0.0
    %1447 = vmatprep.subr.mxu0 0.0
    %1448 = vmatpush1.msra.mxu0 0.0
    %1449 = vmatprep.subr.mxu0 0.0
    %1450 = vmatpush1.msra.mxu0 0.0
    %1451 = vmatprep.subr.mxu0 0.0
    %1452 = vmatpush1.msra.mxu0 0.0
    %1453 = vmatprep.subr.mxu0 0.0
    %1454 = vmatpush1.msra.mxu0 0.0
    %1455 = vmatprep.subr.mxu0 0.0
    %1456 = vmatpush1.msra.mxu0 0.0
    %1457 = vmatprep.subr.mxu0 0.0
    %1458 = vmatpush1.msra.mxu0 0.0
    %1459 = vmatprep.subr.mxu0 0.0
    %1460 = vmatpush1.msra.mxu0 0.0
    %1461 = vmatprep.subr.mxu0 0.0
    %1462 = vmatpush1.msra.mxu0 0.0
    %1463 = vmatprep.subr.mxu0 0.0
    %1464 = vmatpush1.msra.mxu0 0.0
    %1465 = vmatprep.subr.mxu0 0.0
    %1466 = vmatpush1.msra.mxu0 0.0
    %1467 = vmatprep.subr.mxu0 0.0
    %1468 = vmatpush1.msra.mxu0 0.0
    %1469 = vmatprep.subr.mxu0 0.0
    %1470 = vmatpush1.msra.mxu0 0.0
    %1471 = vmatprep.subr.mxu0 0.0
    %1472 = vmatpush1.msra.mxu0 0.0
    %1473 = vmatprep.subr.mxu0 0.0
    %1474 = vmatpush1.msra.mxu0 0.0
    %1475 = vmatprep.subr.mxu0 0.0
    %1476 = vmatpush1.msra.mxu0 0.0
    %1477 = vmatprep.mubr.f32.mxu0 0.0
    %1478 = vmatmul.mubr.f32.gmra.mrb[0].mxu0 %v1017
    %v1479 = vpop.f32.mrb[0].mxu0
    %v1480 = vadd.f32 0.0, %v1479
    %v1481 = vpop.f32.mrb[0].mxu0
    %v1482 = vadd.f32 0.0, %v1481
    %1483 = vdwg.mxu0
    %v1484 = vadd.f32 %v1338, %v1409
    %v1485 = vadd.f32 %v1339, %v1411
    %v1486 = vadd.f32 %v1340, %v1480
    %v1487 = vadd.f32 %v1341, %v1482
    %v1488 = vsub.f32 0.0, %v1484
    %v1489 = vmul.f32 %v1488, 1.442695
    %v1490 = vpow.pop %v1489
    %v1491 = vadd.f32 %v1490, 1.0
    %v1492 = vrcp.pop %v1491
    %v1493 = vsub.f32 0.0, %v1485
    %v1494 = vmul.f32 %v1493, 1.442695
    %v1495 = vpow.pop %v1494
    %v1496 = vadd.f32 %v1495, 1.0
    %v1497 = vrcp.pop %v1496
    %v1498 = vtanh.pop %v1486
    %v1499 = vsub.f32 0.0, %v1487
    %v1500 = vmul.f32 %v1499, 1.442695
    %v1501 = vpow.pop %v1500
    %v1502 = vadd.f32 %v1501, 1.0
    %v1503 = vrcp.pop %v1502
    %v1504 = vmul.f32 %v1497, %v1015
    %v1505 = vmul.f32 %v1492, %v1498
    %v1506 = vadd.f32 %v1504, %v1505
    %v1507 = vtanh.pop %v1506
    %v1508 = vmul.f32 %v1503, %v1507
    %1509 = vmatprep.subr.mxu0 %v442
    %1510 = vmatpush1.msra.mxu0 %v441
    %1511 = vmatprep.subr.mxu0 %v446
    %1512 = vmatpush1.msra.mxu0 %v445
    %1513 = vmatprep.subr.mxu0 %v450
    %1514 = vmatpush1.msra.mxu0 %v449
    %1515 = vmatprep.subr.mxu0 %v454
    %1516 = vmatpush1.msra.mxu0 %v453
    %1517 = vmatprep.subr.mxu0 %v458
    %1518 = vmatpush1.msra.mxu0 %v457
    %1519 = vmatprep.subr.mxu0 %v462
    %1520 = vmatpush1.msra.mxu0 %v461
    %1521 = vmatprep.subr.mxu0 %v466
    %1522 = vmatpush1.msra.mxu0 %v465
    %1523 = vmatprep.subr.mxu0 %v470
    %1524 = vmatpush1.msra.mxu0 %v469
    %1525 = vmatprep.subr.mxu0 %v474
    %1526 = vmatpush1.msra.mxu0 %v473
    %1527 = vmatprep.subr.mxu0 %v478
    %1528 = vmatpush1.msra.mxu0 %v477
    %1529 = vmatprep.subr.mxu0 %v482
    %1530 = vmatpush1.msra.mxu0 %v481
    %1531 = vmatprep.subr.mxu0 %v486
    %1532 = vmatpush1.msra.mxu0 %v485
    %1533 = vmatprep.subr.mxu0 %v490
    %1534 = vmatpush1.msra.mxu0 %v489
    %1535 = vmatprep.subr.mxu0 %v494
    %1536 = vmatpush1.msra.mxu0 %v493
    %1537 = vmatprep.subr.mxu0 %v498
    %1538 = vmatpush1.msra.mxu0 %v497
    %1539 = vmatprep.subr.mxu0 %v502
    %1540 = vmatpush1.msra.mxu0 %v501
    %1541 = vmatprep.subr.mxu0 0.0
    %1542 = vmatpush1.msra.mxu0 0.0
    %1543 = vmatprep.subr.mxu0 0.0
    %1544 = vmatpush1.msra.mxu0 0.0
    %1545 = vmatprep.subr.mxu0 0.0
    %1546 = vmatpush1.msra.mxu0 0.0
    %1547 = vmatprep.subr.mxu0 0.0
    %1548 = vmatpush1.msra.mxu0 0.0
    %1549 = vmatprep.subr.mxu0 0.0
    %1550 = vmatpush1.msra.mxu0 0.0
    %1551 = vmatprep.subr.mxu0 0.0
    %1552 = vmatpush1.msra.mxu0 0.0
    %1553 = vmatprep.subr.mxu0 0.0
    %1554 = vmatpush1.msra.mxu0 0.0
    %1555 = vmatprep.subr.mxu0 0.0
    %1556 = vmatpush1.msra.mxu0 0.0
    %1557 = vmatprep.subr.mxu0 0.0
    %1558 = vmatpush1.msra.mxu0 0.0
    %1559 = vmatprep.subr.mxu0 0.0
    %1560 = vmatpush1.msra.mxu0 0.0
    %1561 = vmatprep.subr.mxu0 0.0
    %1562 = vmatpush1.msra.mxu0 0.0
    %1563 = vmatprep.subr.mxu0 0.0
    %1564 = vmatpush1.msra.mxu0 0.0
    %1565 = vmatprep.subr.mxu0 0.0
    %1566 = vmatpush1.msra.mxu0 0.0
    %1567 = vmatprep.subr.mxu0 0.0
    %1568 = vmatpush1.msra.mxu0 0.0
    %1569 = vmatprep.subr.mxu0 0.0
    %1570 = vmatpush1.msra.mxu0 0.0
    %1571 = vmatprep.subr.mxu0 0.0
    %1572 = vmatpush1.msra.mxu0 0.0
    %1573 = vmatprep.mubr.f32.mxu0 0.0
    %1574 = vmatmul.mubr.f32.gmra.mrb[0].mxu0 %v1326
    %v1575 = vpop.f32.mrb[0].mxu0
    %v1576 = vadd.f32 0.0, %v1575
    %v1577 = vpop.f32.mrb[0].mxu0
    %v1578 = vadd.f32 0.0, %v1577
    %1579 = vdwg.mxu0
    %1580 = vmatprep.subr.mxu0 %v444
    %1581 = vmatpush1.msra.mxu0 %v443
    %1582 = vmatprep.subr.mxu0 %v448
    %1583 = vmatpush1.msra.mxu0 %v447
    %1584 = vmatprep.subr.mxu0 %v452
    %1585 = vmatpush1.msra.mxu0 %v451
    %1586 = vmatprep.subr.mxu0 %v456
    %1587 = vmatpush1.msra.mxu0 %v455
    %1588 = vmatprep.subr.mxu0 %v460
    %1589 = vmatpush1.msra.mxu0 %v459
    %1590 = vmatprep.subr.mxu0 %v464
    %1591 = vmatpush1.msra.mxu0 %v463
    %1592 = vmatprep.subr.mxu0 %v468
    %1593 = vmatpush1.msra.mxu0 %v467
    %1594 = vmatprep.subr.mxu0 %v472
    %1595 = vmatpush1.msra.mxu0 %v471
    %1596 = vmatprep.subr.mxu0 %v476
    %1597 = vmatpush1.msra.mxu0 %v475
    %1598 = vmatprep.subr.mxu0 %v480
    %1599 = vmatpush1.msra.mxu0 %v479
    %1600 = vmatprep.subr.mxu0 %v484
    %1601 = vmatpush1.msra.mxu0 %v483
    %1602 = vmatprep.subr.mxu0 %v488
    %1603 = vmatpush1.msra.mxu0 %v487
    %1604 = vmatprep.subr.mxu0 %v492
    %1605 = vmatpush1.msra.mxu0 %v491
    %1606 = vmatprep.subr.mxu0 %v496
    %1607 = vmatpush1.msra.mxu0 %v495
    %1608 = vmatprep.subr.mxu0 %v500
    %1609 = vmatpush1.msra.mxu0 %v499
    %1610 = vmatprep.subr.mxu0 %v504
    %1611 = vmatpush1.msra.mxu0 %v503
    %1612 = vmatprep.subr.mxu0 0.0
    %1613 = vmatpush1.msra.mxu0 0.0
    %1614 = vmatprep.subr.mxu0 0.0
    %1615 = vmatpush1.msra.mxu0 0.0
    %1616 = vmatprep.subr.mxu0 0.0
    %1617 = vmatpush1.msra.mxu0 0.0
    %1618 = vmatprep.subr.mxu0 0.0
    %1619 = vmatpush1.msra.mxu0 0.0
    %1620 = vmatprep.subr.mxu0 0.0
    %1621 = vmatpush1.msra.mxu0 0.0
    %1622 = vmatprep.subr.mxu0 0.0
    %1623 = vmatpush1.msra.mxu0 0.0
    %1624 = vmatprep.subr.mxu0 0.0
    %1625 = vmatpush1.msra.mxu0 0.0
    %1626 = vmatprep.subr.mxu0 0.0
    %1627 = vmatpush1.msra.mxu0 0.0
    %1628 = vmatprep.subr.mxu0 0.0
    %1629 = vmatpush1.msra.mxu0 0.0
    %1630 = vmatprep.subr.mxu0 0.0
    %1631 = vmatpush1.msra.mxu0 0.0
    %1632 = vmatprep.subr.mxu0 0.0
    %1633 = vmatpush1.msra.mxu0 0.0
    %1634 = vmatprep.subr.mxu0 0.0
    %1635 = vmatpush1.msra.mxu0 0.0
    %1636 = vmatprep.subr.mxu0 0.0
    %1637 = vmatpush1.msra.mxu0 0.0
    %1638 = vmatprep.subr.mxu0 0.0
    %1639 = vmatpush1.msra.mxu0 0.0
    %1640 = vmatprep.subr.mxu0 0.0
    %1641 = vmatpush1.msra.mxu0 0.0
    %1642 = vmatprep.subr.mxu0 0.0
    %1643 = vmatpush1.msra.mxu0 0.0
    %1644 = vmatprep.mubr.f32.mxu0 0.0
    %1645 = vmatmul.mubr.f32.gmra.mrb[0].mxu0 %v1326
    %v1646 = vpop.f32.mrb[0].mxu0
    %v1647 = vadd.f32 0.0, %v1646
    %v1648 = vpop.f32.mrb[0].mxu0
    %v1649 = vadd.f32 0.0, %v1648
    %1650 = vdwg.mxu0
    %1651 = vmatprep.subr.mxu0 %v378
    %1652 = vmatpush1.msra.mxu0 %v377
    %1653 = vmatprep.subr.mxu0 %v382
    %1654 = vmatpush1.msra.mxu0 %v381
    %1655 = vmatprep.subr.mxu0 %v386
    %1656 = vmatpush1.msra.mxu0 %v385
    %1657 = vmatprep.subr.mxu0 %v390
    %1658 = vmatpush1.msra.mxu0 %v389
    %1659 = vmatprep.subr.mxu0 %v394
    %1660 = vmatpush1.msra.mxu0 %v393
    %1661 = vmatprep.subr.mxu0 %v398
    %1662 = vmatpush1.msra.mxu0 %v397
    %1663 = vmatprep.subr.mxu0 %v402
    %1664 = vmatpush1.msra.mxu0 %v401
    %1665 = vmatprep.subr.mxu0 %v406
    %1666 = vmatpush1.msra.mxu0 %v405
    %1667 = vmatprep.subr.mxu0 %v410
    %1668 = vmatpush1.msra.mxu0 %v409
    %1669 = vmatprep.subr.mxu0 %v414
    %1670 = vmatpush1.msra.mxu0 %v413
    %1671 = vmatprep.subr.mxu0 %v418
    %1672 = vmatpush1.msra.mxu0 %v417
    %1673 = vmatprep.subr.mxu0 %v422
    %1674 = vmatpush1.msra.mxu0 %v421
    %1675 = vmatprep.subr.mxu0 %v426
    %1676 = vmatpush1.msra.mxu0 %v425
    %1677 = vmatprep.subr.mxu0 %v430
    %1678 = vmatpush1.msra.mxu0 %v429
    %1679 = vmatprep.subr.mxu0 %v434
    %1680 = vmatpush1.msra.mxu0 %v433
    %1681 = vmatprep.subr.mxu0 %v438
    %1682 = vmatpush1.msra.mxu0 %v437
    %1683 = vmatprep.subr.mxu0 0.0
    %1684 = vmatpush1.msra.mxu0 0.0
    %1685 = vmatprep.subr.mxu0 0.0
    %1686 = vmatpush1.msra.mxu0 0.0
    %1687 = vmatprep.subr.mxu0 0.0
    %1688 = vmatpush1.msra.mxu0 0.0
    %1689 = vmatprep.subr.mxu0 0.0
    %1690 = vmatpush1.msra.mxu0 0.0
    %1691 = vmatprep.subr.mxu0 0.0
    %1692 = vmatpush1.msra.mxu0 0.0
    %1693 = vmatprep.subr.mxu0 0.0
    %1694 = vmatpush1.msra.mxu0 0.0
    %1695 = vmatprep.subr.mxu0 0.0
    %1696 = vmatpush1.msra.mxu0 0.0
    %1697 = vmatprep.subr.mxu0 0.0
    %1698 = vmatpush1.msra.mxu0 0.0
    %1699 = vmatprep.subr.mxu0 0.0
    %1700 = vmatpush1.msra.mxu0 0.0
    %1701 = vmatprep.subr.mxu0 0.0
    %1702 = vmatpush1.msra.mxu0 0.0
    %1703 = vmatprep.subr.mxu0 0.0
    %1704 = vmatpush1.msra.mxu0 0.0
    %1705 = vmatprep.subr.mxu0 0.0
    %1706 = vmatpush1.msra.mxu0 0.0
    %1707 = vmatprep.subr.mxu0 0.0
    %1708 = vmatpush1.msra.mxu0 0.0
    %1709 = vmatprep.subr.mxu0 0.0
    %1710 = vmatpush1.msra.mxu0 0.0
    %1711 = vmatprep.subr.mxu0 0.0
    %1712 = vmatpush1.msra.mxu0 0.0
    %1713 = vmatprep.subr.mxu0 0.0
    %1714 = vmatpush1.msra.mxu0 0.0
    %1715 = vmatprep.mubr.f32.mxu0 0.0
    %1716 = vmatmul.mubr.f32.gmra.mrb[0].mxu0 %v1508
    %v1717 = vpop.f32.mrb[0].mxu0
    %v1718 = vadd.f32 %v1576, %v1717
    %v1719 = vpop.f32.mrb[0].mxu0
    %v1720 = vadd.f32 %v1578, %v1719
    %1721 = vdwg.mxu0
    %1722 = vmatprep.subr.mxu0 %v380
    %1723 = vmatpush1.msra.mxu0 %v379
    %1724 = vmatprep.subr.mxu0 %v384
    %1725 = vmatpush1.msra.mxu0 %v383
    %1726 = vmatprep.subr.mxu0 %v388
    %1727 = vmatpush1.msra.mxu0 %v387
    %1728 = vmatprep.subr.mxu0 %v392
    %1729 = vmatpush1.msra.mxu0 %v391
    %1730 = vmatprep.subr.mxu0 %v396
    %1731 = vmatpush1.msra.mxu0 %v395
    %1732 = vmatprep.subr.mxu0 %v400
    %1733 = vmatpush1.msra.mxu0 %v399
    %1734 = vmatprep.subr.mxu0 %v404
    %1735 = vmatpush1.msra.mxu0 %v403
    %1736 = vmatprep.subr.mxu0 %v408
    %1737 = vmatpush1.msra.mxu0 %v407
    %1738 = vmatprep.subr.mxu0 %v412
    %1739 = vmatpush1.msra.mxu0 %v411
    %1740 = vmatprep.subr.mxu0 %v416
    %1741 = vmatpush1.msra.mxu0 %v415
    %1742 = vmatprep.subr.mxu0 %v420
    %1743 = vmatpush1.msra.mxu0 %v419
    %1744 = vmatprep.subr.mxu0 %v424
    %1745 = vmatpush1.msra.mxu0 %v423
    %1746 = vmatprep.subr.mxu0 %v428
    %1747 = vmatpush1.msra.mxu0 %v427
    %1748 = vmatprep.subr.mxu0 %v432
    %1749 = vmatpush1.msra.mxu0 %v431
    %1750 = vmatprep.subr.mxu0 %v436
    %1751 = vmatpush1.msra.mxu0 %v435
    %1752 = vmatprep.subr.mxu0 %v440
    %1753 = vmatpush1.msra.mxu0 %v439
    %1754 = vmatprep.subr.mxu0 0.0
    %1755 = vmatpush1.msra.mxu0 0.0
    %1756 = vmatprep.subr.mxu0 0.0
    %1757 = vmatpush1.msra.mxu0 0.0
    %1758 = vmatprep.subr.mxu0 0.0
    %1759 = vmatpush1.msra.mxu0 0.0
    %1760 = vmatprep.subr.mxu0 0.0
    %1761 = vmatpush1.msra.mxu0 0.0
    %1762 = vmatprep.subr.mxu0 0.0
    %1763 = vmatpush1.msra.mxu0 0.0
    %1764 = vmatprep.subr.mxu0 0.0
    %1765 = vmatpush1.msra.mxu0 0.0
    %1766 = vmatprep.subr.mxu0 0.0
    %1767 = vmatpush1.msra.mxu0 0.0
    %1768 = vmatprep.subr.mxu0 0.0
    %1769 = vmatpush1.msra.mxu0 0.0
    %1770 = vmatprep.subr.mxu0 0.0
    %1771 = vmatpush1.msra.mxu0 0.0
    %1772 = vmatprep.subr.mxu0 0.0
    %1773 = vmatpush1.msra.mxu0 0.0
    %1774 = vmatprep.subr.mxu0 0.0
    %1775 = vmatpush1.msra.mxu0 0.0
    %1776 = vmatprep.subr.mxu0 0.0
    %1777 = vmatpush1.msra.mxu0 0.0
    %1778 = vmatprep.subr.mxu0 0.0
    %1779 = vmatpush1.msra.mxu0 0.0
    %1780 = vmatprep.subr.mxu0 0.0
    %1781 = vmatpush1.msra.mxu0 0.0
    %1782 = vmatprep.subr.mxu0 0.0
    %1783 = vmatpush1.msra.mxu0 0.0
    %1784 = vmatprep.subr.mxu0 0.0
    %1785 = vmatpush1.msra.mxu0 0.0
    %1786 = vmatprep.mubr.f32.mxu0 0.0
    %1787 = vmatmul.mubr.f32.gmra.mrb[0].mxu0 %v1508
    %v1788 = vpop.f32.mrb[0].mxu0
    %v1789 = vadd.f32 %v1647, %v1788
    %v1790 = vpop.f32.mrb[0].mxu0
    %v1791 = vadd.f32 %v1649, %v1790
    %1792 = vdwg.mxu0
    %v1793 = vadd.f32 %v1718, %v794
    %v1794 = vadd.f32 %v1720, %v798
    %v1795 = vadd.f32 %v1789, %v802
    %v1796 = vadd.f32 %v1791, %v806
    %v1797 = vsub.f32 0.0, %v1793
    %v1798 = vmul.f32 %v1797, 1.442695
    %v1799 = vpow.pop %v1798
    %v1800 = vadd.f32 %v1799, 1.0
    %v1801 = vrcp.pop %v1800
    %v1802 = vsub.f32 0.0, %v1794
    %v1803 = vmul.f32 %v1802, 1.442695
    %v1804 = vpow.pop %v1803
    %v1805 = vadd.f32 %v1804, 1.0
    %v1806 = vrcp.pop %v1805
    %v1807 = vtanh.pop %v1795
    %v1808 = vsub.f32 0.0, %v1796
    %v1809 = vmul.f32 %v1808, 1.442695
    %v1810 = vpow.pop %v1809
    %v1811 = vadd.f32 %v1810, 1.0
    %v1812 = vrcp.pop %v1811
    %v1813 = vmul.f32 %v1806, %v1324
    %v1814 = vmul.f32 %v1801, %v1807
    %v1815 = vadd.f32 %v1813, %v1814
    %v1816 = vtanh.pop %v1815
    %v1817 = vmul.f32 %v1812, %v1816
    %s1818 = scalar_lea.vmem %s0, 24
    %v1819 = vld [vmem:[%s1818] sm:$0xff]
    %1821 = vset.pattern.permute.xlu0 0
    %1822 = vperm.xlu0 %1821, %v1819
    %v1823 = vpop.permute.xlu0 %1822
    %v1825 = vmul.f32 %v1823, %v99
    %v1826 = vmul.f32 %v1823, %v103
    %v1827 = vmul.f32 %v1823, %v107
    %v1828 = vmul.f32 %v1823, %v111
    %v1829 = vadd.f32 %v1825, %v125
    %v1830 = vadd.f32 %v1826, %v129
    %v1831 = vadd.f32 %v1827, %v133
    %v1832 = vadd.f32 %v1828, %v137
    %1833 = vmatprep.subr.mxu0 %v147
    %1834 = vmatpush1.msra.mxu0 %v146
    %1835 = vmatprep.subr.mxu0 %v151
    %1836 = vmatpush1.msra.mxu0 %v150
    %1837 = vmatprep.subr.mxu0 %v155
    %1838 = vmatpush1.msra.mxu0 %v154
    %1839 = vmatprep.subr.mxu0 %v159
    %1840 = vmatpush1.msra.mxu0 %v158
    %1841 = vmatprep.subr.mxu0 %v163
    %1842 = vmatpush1.msra.mxu0 %v162
    %1843 = vmatprep.subr.mxu0 %v167
    %1844 = vmatpush1.msra.mxu0 %v166
    %1845 = vmatprep.subr.mxu0 %v171
    %1846 = vmatpush1.msra.mxu0 %v170
    %1847 = vmatprep.subr.mxu0 %v175
    %1848 = vmatpush1.msra.mxu0 %v174
    %1849 = vmatprep.subr.mxu0 %v179
    %1850 = vmatpush1.msra.mxu0 %v178
    %1851 = vmatprep.subr.mxu0 %v183
    %1852 = vmatpush1.msra.mxu0 %v182
    %1853 = vmatprep.subr.mxu0 %v187
    %1854 = vmatpush1.msra.mxu0 %v186
    %1855 = vmatprep.subr.mxu0 %v191
    %1856 = vmatpush1.msra.mxu0 %v190
    %1857 = vmatprep.subr.mxu0 %v195
    %1858 = vmatpush1.msra.mxu0 %v194
    %1859 = vmatprep.subr.mxu0 %v199
    %1860 = vmatpush1.msra.mxu0 %v198
    %1861 = vmatprep.subr.mxu0 %v203
    %1862 = vmatpush1.msra.mxu0 %v202
    %1863 = vmatprep.subr.mxu0 %v207
    %1864 = vmatpush1.msra.mxu0 %v206
    %1865 = vmatprep.subr.mxu0 0.0
    %1866 = vmatpush1.msra.mxu0 0.0
    %1867 = vmatprep.subr.mxu0 0.0
    %1868 = vmatpush1.msra.mxu0 0.0
    %1869 = vmatprep.subr.mxu0 0.0
    %1870 = vmatpush1.msra.mxu0 0.0
    %1871 = vmatprep.subr.mxu0 0.0
    %1872 = vmatpush1.msra.mxu0 0.0
    %1873 = vmatprep.subr.mxu0 0.0
    %1874 = vmatpush1.msra.mxu0 0.0
    %1875 = vmatprep.subr.mxu0 0.0
    %1876 = vmatpush1.msra.mxu0 0.0
    %1877 = vmatprep.subr.mxu0 0.0
    %1878 = vmatpush1.msra.mxu0 0.0
    %1879 = vmatprep.subr.mxu0 0.0
    %1880 = vmatpush1.msra.mxu0 0.0
    %1881 = vmatprep.subr.mxu0 0.0
    %1882 = vmatpush1.msra.mxu0 0.0
    %1883 = vmatprep.subr.mxu0 0.0
    %1884 = vmatpush1.msra.mxu0 0.0
    %1885 = vmatprep.subr.mxu0 0.0
    %1886 = vmatpush1.msra.mxu0 0.0
    %1887 = vmatprep.subr.mxu0 0.0
    %1888 = vmatpush1.msra.mxu0 0.0
    %1889 = vmatprep.subr.mxu0 0.0
    %1890 = vmatpush1.msra.mxu0 0.0
    %1891 = vmatprep.subr.mxu0 0.0
    %1892 = vmatpush1.msra.mxu0 0.0
    %1893 = vmatprep.subr.mxu0 0.0
    %1894 = vmatpush1.msra.mxu0 0.0
    %1895 = vmatprep.subr.mxu0 0.0
    %1896 = vmatpush1.msra.mxu0 0.0
    %1897 = vmatprep.mubr.f32.mxu0 0.0
    %1898 = vmatmul.mubr.f32.gmra.mrb[0].mxu0 %v1508
    %v1899 = vpop.f32.mrb[0].mxu0
    %v1900 = vadd.f32 0.0, %v1899
    %v1901 = vpop.f32.mrb[0].mxu0
    %v1902 = vadd.f32 0.0, %v1901
    %1903 = vdwg.mxu0
    %1904 = vmatprep.subr.mxu0 %v149
    %1905 = vmatpush1.msra.mxu0 %v148
    %1906 = vmatprep.subr.mxu0 %v153
    %1907 = vmatpush1.msra.mxu0 %v152
    %1908 = vmatprep.subr.mxu0 %v157
    %1909 = vmatpush1.msra.mxu0 %v156
    %1910 = vmatprep.subr.mxu0 %v161
    %1911 = vmatpush1.msra.mxu0 %v160
    %1912 = vmatprep.subr.mxu0 %v165
    %1913 = vmatpush1.msra.mxu0 %v164
    %1914 = vmatprep.subr.mxu0 %v169
    %1915 = vmatpush1.msra.mxu0 %v168
    %1916 = vmatprep.subr.mxu0 %v173
    %1917 = vmatpush1.msra.mxu0 %v172
    %1918 = vmatprep.subr.mxu0 %v177
    %1919 = vmatpush1.msra.mxu0 %v176
    %1920 = vmatprep.subr.mxu0 %v181
    %1921 = vmatpush1.msra.mxu0 %v180
    %1922 = vmatprep.subr.mxu0 %v185
    %1923 = vmatpush1.msra.mxu0 %v184
    %1924 = vmatprep.subr.mxu0 %v189
    %1925 = vmatpush1.msra.mxu0 %v188
    %1926 = vmatprep.subr.mxu0 %v193
    %1927 = vmatpush1.msra.mxu0 %v192
    %1928 = vmatprep.subr.mxu0 %v197
    %1929 = vmatpush1.msra.mxu0 %v196
    %1930 = vmatprep.subr.mxu0 %v201
    %1931 = vmatpush1.msra.mxu0 %v200
    %1932 = vmatprep.subr.mxu0 %v205
    %1933 = vmatpush1.msra.mxu0 %v204
    %1934 = vmatprep.subr.mxu0 %v209
    %1935 = vmatpush1.msra.mxu0 %v208
    %1936 = vmatprep.subr.mxu0 0.0
    %1937 = vmatpush1.msra.mxu0 0.0
    %1938 = vmatprep.subr.mxu0 0.0
    %1939 = vmatpush1.msra.mxu0 0.0
    %1940 = vmatprep.subr.mxu0 0.0
    %1941 = vmatpush1.msra.mxu0 0.0
    %1942 = vmatprep.subr.mxu0 0.0
    %1943 = vmatpush1.msra.mxu0 0.0
    %1944 = vmatprep.subr.mxu0 0.0
    %1945 = vmatpush1.msra.mxu0 0.0
    %1946 = vmatprep.subr.mxu0 0.0
    %1947 = vmatpush1.msra.mxu0 0.0
    %1948 = vmatprep.subr.mxu0 0.0
    %1949 = vmatpush1.msra.mxu0 0.0
    %1950 = vmatprep.subr.mxu0 0.0
    %1951 = vmatpush1.msra.mxu0 0.0
    %1952 = vmatprep.subr.mxu0 0.0
    %1953 = vmatpush1.msra.mxu0 0.0
    %1954 = vmatprep.subr.mxu0 0.0
    %1955 = vmatpush1.msra.mxu0 0.0
    %1956 = vmatprep.subr.mxu0 0.0
    %1957 = vmatpush1.msra.mxu0 0.0
    %1958 = vmatprep.subr.mxu0 0.0
    %1959 = vmatpush1.msra.mxu0 0.0
    %1960 = vmatprep.subr.mxu0 0.0
    %1961 = vmatpush1.msra.mxu0 0.0
    %1962 = vmatprep.subr.mxu0 0.0
    %1963 = vmatpush1.msra.mxu0 0.0
    %1964 = vmatprep.subr.mxu0 0.0
    %1965 = vmatpush1.msra.mxu0 0.0
    %1966 = vmatprep.subr.mxu0 0.0
    %1967 = vmatpush1.msra.mxu0 0.0
    %1968 = vmatprep.mubr.f32.mxu0 0.0
    %1969 = vmatmul.mubr.f32.gmra.mrb[0].mxu0 %v1508
    %v1970 = vpop.f32.mrb[0].mxu0
    %v1971 = vadd.f32 0.0, %v1970
    %v1972 = vpop.f32.mrb[0].mxu0
    %v1973 = vadd.f32 0.0, %v1972
    %1974 = vdwg.mxu0
    %v1975 = vadd.f32 %v1829, %v1900
    %v1976 = vadd.f32 %v1830, %v1902
    %v1977 = vadd.f32 %v1831, %v1971
    %v1978 = vadd.f32 %v1832, %v1973
    %v1979 = vsub.f32 0.0, %v1975
    %v1980 = vmul.f32 %v1979, 1.442695
    %v1981 = vpow.pop %v1980
    %v1982 = vadd.f32 %v1981, 1.0
    %v1983 = vrcp.pop %v1982
    %v1984 = vsub.f32 0.0, %v1976
    %v1985 = vmul.f32 %v1984, 1.442695
    %v1986 = vpow.pop %v1985
    %v1987 = vadd.f32 %v1986, 1.0
    %v1988 = vrcp.pop %v1987
    %v1989 = vtanh.pop %v1977
    %v1990 = vsub.f32 0.0, %v1978
    %v1991 = vmul.f32 %v1990, 1.442695
    %v1992 = vpow.pop %v1991
    %v1993 = vadd.f32 %v1992, 1.0
    %v1994 = vrcp.pop %v1993
    %v1995 = vmul.f32 %v1988, %v1506
    %v1996 = vmul.f32 %v1983, %v1989
    %v1997 = vadd.f32 %v1995, %v1996
    %v1998 = vtanh.pop %v1997
    %v1999 = vmul.f32 %v1994, %v1998
    %2000 = vmatprep.subr.mxu0 %v442
    %2001 = vmatpush1.msra.mxu0 %v441
    %2002 = vmatprep.subr.mxu0 %v446
    %2003 = vmatpush1.msra.mxu0 %v445
    %2004 = vmatprep.subr.mxu0 %v450
    %2005 = vmatpush1.msra.mxu0 %v449
    %2006 = vmatprep.subr.mxu0 %v454
    %2007 = vmatpush1.msra.mxu0 %v453
    %2008 = vmatprep.subr.mxu0 %v458
    %2009 = vmatpush1.msra.mxu0 %v457
    %2010 = vmatprep.subr.mxu0 %v462
    %2011 = vmatpush1.msra.mxu0 %v461
    %2012 = vmatprep.subr.mxu0 %v466
    %2013 = vmatpush1.msra.mxu0 %v465
    %2014 = vmatprep.subr.mxu0 %v470
    %2015 = vmatpush1.msra.mxu0 %v469
    %2016 = vmatprep.subr.mxu0 %v474
    %2017 = vmatpush1.msra.mxu0 %v473
    %2018 = vmatprep.subr.mxu0 %v478
    %2019 = vmatpush1.msra.mxu0 %v477
    %2020 = vmatprep.subr.mxu0 %v482
    %2021 = vmatpush1.msra.mxu0 %v481
    %2022 = vmatprep.subr.mxu0 %v486
    %2023 = vmatpush1.msra.mxu0 %v485
    %2024 = vmatprep.subr.mxu0 %v490
    %2025 = vmatpush1.msra.mxu0 %v489
    %2026 = vmatprep.subr.mxu0 %v494
    %2027 = vmatpush1.msra.mxu0 %v493
    %2028 = vmatprep.subr.mxu0 %v498
    %2029 = vmatpush1.msra.mxu0 %v497
    %2030 = vmatprep.subr.mxu0 %v502
    %2031 = vmatpush1.msra.mxu0 %v501
    %2032 = vmatprep.subr.mxu0 0.0
    %2033 = vmatpush1.msra.mxu0 0.0
    %2034 = vmatprep.subr.mxu0 0.0
    %2035 = vmatpush1.msra.mxu0 0.0
    %2036 = vmatprep.subr.mxu0 0.0
    %2037 = vmatpush1.msra.mxu0 0.0
    %2038 = vmatprep.subr.mxu0 0.0
    %2039 = vmatpush1.msra.mxu0 0.0
    %2040 = vmatprep.subr.mxu0 0.0
    %2041 = vmatpush1.msra.mxu0 0.0
    %2042 = vmatprep.subr.mxu0 0.0
    %2043 = vmatpush1.msra.mxu0 0.0
    %2044 = vmatprep.subr.mxu0 0.0
    %2045 = vmatpush1.msra.mxu0 0.0
    %2046 = vmatprep.subr.mxu0 0.0
    %2047 = vmatpush1.msra.mxu0 0.0
    %2048 = vmatprep.subr.mxu0 0.0
    %2049 = vmatpush1.msra.mxu0 0.0
    %2050 = vmatprep.subr.mxu0 0.0
    %2051 = vmatpush1.msra.mxu0 0.0
    %2052 = vmatprep.subr.mxu0 0.0
    %2053 = vmatpush1.msra.mxu0 0.0
    %2054 = vmatprep.subr.mxu0 0.0
    %2055 = vmatpush1.msra.mxu0 0.0
    %2056 = vmatprep.subr.mxu0 0.0
    %2057 = vmatpush1.msra.mxu0 0.0
    %2058 = vmatprep.subr.mxu0 0.0
    %2059 = vmatpush1.msra.mxu0 0.0
    %2060 = vmatprep.subr.mxu0 0.0
    %2061 = vmatpush1.msra.mxu0 0.0
    %2062 = vmatprep.subr.mxu0 0.0
    %2063 = vmatpush1.msra.mxu0 0.0
    %2064 = vmatprep.mubr.f32.mxu0 0.0
    %2065 = vmatmul.mubr.f32.gmra.mrb[0].mxu0 %v1817
    %v2066 = vpop.f32.mrb[0].mxu0
    %v2067 = vadd.f32 0.0, %v2066
    %v2068 = vpop.f32.mrb[0].mxu0
    %v2069 = vadd.f32 0.0, %v2068
    %2070 = vdwg.mxu0
    %2071 = vmatprep.subr.mxu0 %v444
    %2072 = vmatpush1.msra.mxu0 %v443
    %2073 = vmatprep.subr.mxu0 %v448
    %2074 = vmatpush1.msra.mxu0 %v447
    %2075 = vmatprep.subr.mxu0 %v452
    %2076 = vmatpush1.msra.mxu0 %v451
    %2077 = vmatprep.subr.mxu0 %v456
    %2078 = vmatpush1.msra.mxu0 %v455
    %2079 = vmatprep.subr.mxu0 %v460
    %2080 = vmatpush1.msra.mxu0 %v459
    %2081 = vmatprep.subr.mxu0 %v464
    %2082 = vmatpush1.msra.mxu0 %v463
    %2083 = vmatprep.subr.mxu0 %v468
    %2084 = vmatpush1.msra.mxu0 %v467
    %2085 = vmatprep.subr.mxu0 %v472
    %2086 = vmatpush1.msra.mxu0 %v471
    %2087 = vmatprep.subr.mxu0 %v476
    %2088 = vmatpush1.msra.mxu0 %v475
    %2089 = vmatprep.subr.mxu0 %v480
    %2090 = vmatpush1.msra.mxu0 %v479
    %2091 = vmatprep.subr.mxu0 %v484
    %2092 = vmatpush1.msra.mxu0 %v483
    %2093 = vmatprep.subr.mxu0 %v488
    %2094 = vmatpush1.msra.mxu0 %v487
    %2095 = vmatprep.subr.mxu0 %v492
    %2096 = vmatpush1.msra.mxu0 %v491
    %2097 = vmatprep.subr.mxu0 %v496
    %2098 = vmatpush1.msra.mxu0 %v495
    %2099 = vmatprep.subr.mxu0 %v500
    %2100 = vmatpush1.msra.mxu0 %v499
    %2101 = vmatprep.subr.mxu0 %v504
    %2102 = vmatpush1.msra.mxu0 %v503
    %2103 = vmatprep.subr.mxu0 0.0
    %2104 = vmatpush1.msra.mxu0 0.0
    %2105 = vmatprep.subr.mxu0 0.0
    %2106 = vmatpush1.msra.mxu0 0.0
    %2107 = vmatprep.subr.mxu0 0.0
    %2108 = vmatpush1.msra.mxu0 0.0
    %2109 = vmatprep.subr.mxu0 0.0
    %2110 = vmatpush1.msra.mxu0 0.0
    %2111 = vmatprep.subr.mxu0 0.0
    %2112 = vmatpush1.msra.mxu0 0.0
    %2113 = vmatprep.subr.mxu0 0.0
    %2114 = vmatpush1.msra.mxu0 0.0
    %2115 = vmatprep.subr.mxu0 0.0
    %2116 = vmatpush1.msra.mxu0 0.0
    %2117 = vmatprep.subr.mxu0 0.0
    %2118 = vmatpush1.msra.mxu0 0.0
    %2119 = vmatprep.subr.mxu0 0.0
    %2120 = vmatpush1.msra.mxu0 0.0
    %2121 = vmatprep.subr.mxu0 0.0
    %2122 = vmatpush1.msra.mxu0 0.0
    %2123 = vmatprep.subr.mxu0 0.0
    %2124 = vmatpush1.msra.mxu0 0.0
    %2125 = vmatprep.subr.mxu0 0.0
    %2126 = vmatpush1.msra.mxu0 0.0
    %2127 = vmatprep.subr.mxu0 0.0
    %2128 = vmatpush1.msra.mxu0 0.0
    %2129 = vmatprep.subr.mxu0 0.0
    %2130 = vmatpush1.msra.mxu0 0.0
    %2131 = vmatprep.subr.mxu0 0.0
    %2132 = vmatpush1.msra.mxu0 0.0
    %2133 = vmatprep.subr.mxu0 0.0
    %2134 = vmatpush1.msra.mxu0 0.0
    %2135 = vmatprep.mubr.f32.mxu0 0.0
    %2136 = vmatmul.mubr.f32.gmra.mrb[0].mxu0 %v1817
    %v2137 = vpop.f32.mrb[0].mxu0
    %v2138 = vadd.f32 0.0, %v2137
    %v2139 = vpop.f32.mrb[0].mxu0
    %v2140 = vadd.f32 0.0, %v2139
    %2141 = vdwg.mxu0
    %2142 = vmatprep.subr.mxu0 %v378
    %2143 = vmatpush1.msra.mxu0 %v377
    %2144 = vmatprep.subr.mxu0 %v382
    %2145 = vmatpush1.msra.mxu0 %v381
    %2146 = vmatprep.subr.mxu0 %v386
    %2147 = vmatpush1.msra.mxu0 %v385
    %2148 = vmatprep.subr.mxu0 %v390
    %2149 = vmatpush1.msra.mxu0 %v389
    %2150 = vmatprep.subr.mxu0 %v394
    %2151 = vmatpush1.msra.mxu0 %v393
    %2152 = vmatprep.subr.mxu0 %v398
    %2153 = vmatpush1.msra.mxu0 %v397
    %2154 = vmatprep.subr.mxu0 %v402
    %2155 = vmatpush1.msra.mxu0 %v401
    %2156 = vmatprep.subr.mxu0 %v406
    %2157 = vmatpush1.msra.mxu0 %v405
    %2158 = vmatprep.subr.mxu0 %v410
    %2159 = vmatpush1.msra.mxu0 %v409
    %2160 = vmatprep.subr.mxu0 %v414
    %2161 = vmatpush1.msra.mxu0 %v413
    %2162 = vmatprep.subr.mxu0 %v418
    %2163 = vmatpush1.msra.mxu0 %v417
    %2164 = vmatprep.subr.mxu0 %v422
    %2165 = vmatpush1.msra.mxu0 %v421
    %2166 = vmatprep.subr.mxu0 %v426
    %2167 = vmatpush1.msra.mxu0 %v425
    %2168 = vmatprep.subr.mxu0 %v430
    %2169 = vmatpush1.msra.mxu0 %v429
    %2170 = vmatprep.subr.mxu0 %v434
    %2171 = vmatpush1.msra.mxu0 %v433
    %2172 = vmatprep.subr.mxu0 %v438
    %2173 = vmatpush1.msra.mxu0 %v437
    %2174 = vmatprep.subr.mxu0 0.0
    %2175 = vmatpush1.msra.mxu0 0.0
    %2176 = vmatprep.subr.mxu0 0.0
    %2177 = vmatpush1.msra.mxu0 0.0
    %2178 = vmatprep.subr.mxu0 0.0
    %2179 = vmatpush1.msra.mxu0 0.0
    %2180 = vmatprep.subr.mxu0 0.0
    %2181 = vmatpush1.msra.mxu0 0.0
    %2182 = vmatprep.subr.mxu0 0.0
    %2183 = vmatpush1.msra.mxu0 0.0
    %2184 = vmatprep.subr.mxu0 0.0
    %2185 = vmatpush1.msra.mxu0 0.0
    %2186 = vmatprep.subr.mxu0 0.0
    %2187 = vmatpush1.msra.mxu0 0.0
    %2188 = vmatprep.subr.mxu0 0.0
    %2189 = vmatpush1.msra.mxu0 0.0
    %2190 = vmatprep.subr.mxu0 0.0
    %2191 = vmatpush1.msra.mxu0 0.0
    %2192 = vmatprep.subr.mxu0 0.0
    %2193 = vmatpush1.msra.mxu0 0.0
    %2194 = vmatprep.subr.mxu0 0.0
    %2195 = vmatpush1.msra.mxu0 0.0
    %2196 = vmatprep.subr.mxu0 0.0
    %2197 = vmatpush1.msra.mxu0 0.0
    %2198 = vmatprep.subr.mxu0 0.0
    %2199 = vmatpush1.msra.mxu0 0.0
    %2200 = vmatprep.subr.mxu0 0.0
    %2201 = vmatpush1.msra.mxu0 0.0
    %2202 = vmatprep.subr.mxu0 0.0
    %2203 = vmatpush1.msra.mxu0 0.0
    %2204 = vmatprep.subr.mxu0 0.0
    %2205 = vmatpush1.msra.mxu0 0.0
    %2206 = vmatprep.mubr.f32.mxu0 0.0
    %2207 = vmatmul.mubr.f32.gmra.mrb[0].mxu0 %v1999
    %v2208 = vpop.f32.mrb[0].mxu0
    %v2209 = vadd.f32 %v2067, %v2208
    %v2210 = vpop.f32.mrb[0].mxu0
    %v2211 = vadd.f32 %v2069, %v2210
    %2212 = vdwg.mxu0
    %2213 = vmatprep.subr.mxu0 %v380
    %2214 = vmatpush1.msra.mxu0 %v379
    %2215 = vmatprep.subr.mxu0 %v384
    %2216 = vmatpush1.msra.mxu0 %v383
    %2217 = vmatprep.subr.mxu0 %v388
    %2218 = vmatpush1.msra.mxu0 %v387
    %2219 = vmatprep.subr.mxu0 %v392
    %2220 = vmatpush1.msra.mxu0 %v391
    %2221 = vmatprep.subr.mxu0 %v396
    %2222 = vmatpush1.msra.mxu0 %v395
    %2223 = vmatprep.subr.mxu0 %v400
    %2224 = vmatpush1.msra.mxu0 %v399
    %2225 = vmatprep.subr.mxu0 %v404
    %2226 = vmatpush1.msra.mxu0 %v403
    %2227 = vmatprep.subr.mxu0 %v408
    %2228 = vmatpush1.msra.mxu0 %v407
    %2229 = vmatprep.subr.mxu0 %v412
    %2230 = vmatpush1.msra.mxu0 %v411
    %2231 = vmatprep.subr.mxu0 %v416
    %2232 = vmatpush1.msra.mxu0 %v415
    %2233 = vmatprep.subr.mxu0 %v420
    %2234 = vmatpush1.msra.mxu0 %v419
    %2235 = vmatprep.subr.mxu0 %v424
    %2236 = vmatpush1.msra.mxu0 %v423
    %2237 = vmatprep.subr.mxu0 %v428
    %2238 = vmatpush1.msra.mxu0 %v427
    %2239 = vmatprep.subr.mxu0 %v432
    %2240 = vmatpush1.msra.mxu0 %v431
    %2241 = vmatprep.subr.mxu0 %v436
    %2242 = vmatpush1.msra.mxu0 %v435
    %2243 = vmatprep.subr.mxu0 %v440
    %2244 = vmatpush1.msra.mxu0 %v439
    %2245 = vmatprep.subr.mxu0 0.0
    %2246 = vmatpush1.msra.mxu0 0.0
    %2247 = vmatprep.subr.mxu0 0.0
    %2248 = vmatpush1.msra.mxu0 0.0
    %2249 = vmatprep.subr.mxu0 0.0
    %2250 = vmatpush1.msra.mxu0 0.0
    %2251 = vmatprep.subr.mxu0 0.0
    %2252 = vmatpush1.msra.mxu0 0.0
    %2253 = vmatprep.subr.mxu0 0.0
    %2254 = vmatpush1.msra.mxu0 0.0
    %2255 = vmatprep.subr.mxu0 0.0
    %2256 = vmatpush1.msra.mxu0 0.0
    %2257 = vmatprep.subr.mxu0 0.0
    %2258 = vmatpush1.msra.mxu0 0.0
    %2259 = vmatprep.subr.mxu0 0.0
    %2260 = vmatpush1.msra.mxu0 0.0
    %2261 = vmatprep.subr.mxu0 0.0
    %2262 = vmatpush1.msra.mxu0 0.0
    %2263 = vmatprep.subr.mxu0 0.0
    %2264 = vmatpush1.msra.mxu0 0.0
    %2265 = vmatprep.subr.mxu0 0.0
    %2266 = vmatpush1.msra.mxu0 0.0
    %2267 = vmatprep.subr.mxu0 0.0
    %2268 = vmatpush1.msra.mxu0 0.0
    %2269 = vmatprep.subr.mxu0 0.0
    %2270 = vmatpush1.msra.mxu0 0.0
    %2271 = vmatprep.subr.mxu0 0.0
    %2272 = vmatpush1.msra.mxu0 0.0
    %2273 = vmatprep.subr.mxu0 0.0
    %2274 = vmatpush1.msra.mxu0 0.0
    %2275 = vmatprep.subr.mxu0 0.0
    %2276 = vmatpush1.msra.mxu0 0.0
    %2277 = vmatprep.mubr.f32.mxu0 0.0
    %2278 = vmatmul.mubr.f32.gmra.mrb[0].mxu0 %v1999
    %v2279 = vpop.f32.mrb[0].mxu0
    %v2280 = vadd.f32 %v2138, %v2279
    %v2281 = vpop.f32.mrb[0].mxu0
    %v2282 = vadd.f32 %v2140, %v2281
    %2283 = vdwg.mxu0
    %v2284 = vadd.f32 %v2209, %v794
    %v2285 = vadd.f32 %v2211, %v798
    %v2286 = vadd.f32 %v2280, %v802
    %v2287 = vadd.f32 %v2282, %v806
    %v2288 = vsub.f32 0.0, %v2284
    %v2289 = vmul.f32 %v2288, 1.442695
    %v2290 = vpow.pop %v2289
    %v2291 = vadd.f32 %v2290, 1.0
    %v2292 = vrcp.pop %v2291
    %v2293 = vsub.f32 0.0, %v2285
    %v2294 = vmul.f32 %v2293, 1.442695
    %v2295 = vpow.pop %v2294
    %v2296 = vadd.f32 %v2295, 1.0
    %v2297 = vrcp.pop %v2296
    %v2298 = vtanh.pop %v2286
    %v2299 = vsub.f32 0.0, %v2287
    %v2300 = vmul.f32 %v2299, 1.442695
    %v2301 = vpow.pop %v2300
    %v2302 = vadd.f32 %v2301, 1.0
    %v2303 = vrcp.pop %v2302
    %v2304 = vmul.f32 %v2297, %v1815
    %v2305 = vmul.f32 %v2292, %v2298
    %v2306 = vadd.f32 %v2304, %v2305
    %v2307 = vtanh.pop %v2306
    %v2308 = vmul.f32 %v2303, %v2307
    %s2309 = scalar_lea.vmem %s0, 32
    %v2310 = vld [vmem:[%s2309] sm:$0xff]
    %2312 = vset.pattern.permute.xlu0 0
    %2313 = vperm.xlu0 %2312, %v2310
    %v2314 = vpop.permute.xlu0 %2313
    %v2316 = vmul.f32 %v2314, %v99
    %v2317 = vmul.f32 %v2314, %v103
    %v2318 = vmul.f32 %v2314, %v107
    %v2319 = vmul.f32 %v2314, %v111
    %v2320 = vadd.f32 %v2316, %v125
    %v2321 = vadd.f32 %v2317, %v129
    %v2322 = vadd.f32 %v2318, %v133
    %v2323 = vadd.f32 %v2319, %v137
    %2324 = vmatprep.subr.mxu0 %v147
    %2325 = vmatpush1.msra.mxu0 %v146
    %2326 = vmatprep.subr.mxu0 %v151
    %2327 = vmatpush1.msra.mxu0 %v150
    %2328 = vmatprep.subr.mxu0 %v155
    %2329 = vmatpush1.msra.mxu0 %v154
    %2330 = vmatprep.subr.mxu0 %v159
    %2331 = vmatpush1.msra.mxu0 %v158
    %2332 = vmatprep.subr.mxu0 %v163
    %2333 = vmatpush1.msra.mxu0 %v162
    %2334 = vmatprep.subr.mxu0 %v167
    %2335 = vmatpush1.msra.mxu0 %v166
    %2336 = vmatprep.subr.mxu0 %v171
    %2337 = vmatpush1.msra.mxu0 %v170
    %2338 = vmatprep.subr.mxu0 %v175
    %2339 = vmatpush1.msra.mxu0 %v174
    %2340 = vmatprep.subr.mxu0 %v179
    %2341 = vmatpush1.msra.mxu0 %v178
    %2342 = vmatprep.subr.mxu0 %v183
    %2343 = vmatpush1.msra.mxu0 %v182
    %2344 = vmatprep.subr.mxu0 %v187
    %2345 = vmatpush1.msra.mxu0 %v186
    %2346 = vmatprep.subr.mxu0 %v191
    %2347 = vmatpush1.msra.mxu0 %v190
    %2348 = vmatprep.subr.mxu0 %v195
    %2349 = vmatpush1.msra.mxu0 %v194
    %2350 = vmatprep.subr.mxu0 %v199
    %2351 = vmatpush1.msra.mxu0 %v198
    %2352 = vmatprep.subr.mxu0 %v203
    %2353 = vmatpush1.msra.mxu0 %v202
    %2354 = vmatprep.subr.mxu0 %v207
    %2355 = vmatpush1.msra.mxu0 %v206
    %2356 = vmatprep.subr.mxu0 0.0
    %2357 = vmatpush1.msra.mxu0 0.0
    %2358 = vmatprep.subr.mxu0 0.0
    %2359 = vmatpush1.msra.mxu0 0.0
    %2360 = vmatprep.subr.mxu0 0.0
    %2361 = vmatpush1.msra.mxu0 0.0
    %2362 = vmatprep.subr.mxu0 0.0
    %2363 = vmatpush1.msra.mxu0 0.0
    %2364 = vmatprep.subr.mxu0 0.0
    %2365 = vmatpush1.msra.mxu0 0.0
    %2366 = vmatprep.subr.mxu0 0.0
    %2367 = vmatpush1.msra.mxu0 0.0
    %2368 = vmatprep.subr.mxu0 0.0
    %2369 = vmatpush1.msra.mxu0 0.0
    %2370 = vmatprep.subr.mxu0 0.0
    %2371 = vmatpush1.msra.mxu0 0.0
    %2372 = vmatprep.subr.mxu0 0.0
    %2373 = vmatpush1.msra.mxu0 0.0
    %2374 = vmatprep.subr.mxu0 0.0
    %2375 = vmatpush1.msra.mxu0 0.0
    %2376 = vmatprep.subr.mxu0 0.0
    %2377 = vmatpush1.msra.mxu0 0.0
    %2378 = vmatprep.subr.mxu0 0.0
    %2379 = vmatpush1.msra.mxu0 0.0
    %2380 = vmatprep.subr.mxu0 0.0
    %2381 = vmatpush1.msra.mxu0 0.0
    %2382 = vmatprep.subr.mxu0 0.0
    %2383 = vmatpush1.msra.mxu0 0.0
    %2384 = vmatprep.subr.mxu0 0.0
    %2385 = vmatpush1.msra.mxu0 0.0
    %2386 = vmatprep.subr.mxu0 0.0
    %2387 = vmatpush1.msra.mxu0 0.0
    %2388 = vmatprep.mubr.f32.mxu0 0.0
    %2389 = vmatmul.mubr.f32.gmra.mrb[0].mxu0 %v1999
    %v2390 = vpop.f32.mrb[0].mxu0
    %v2391 = vadd.f32 0.0, %v2390
    %v2392 = vpop.f32.mrb[0].mxu0
    %v2393 = vadd.f32 0.0, %v2392
    %2394 = vdwg.mxu0
    %2395 = vmatprep.subr.mxu0 %v149
    %2396 = vmatpush1.msra.mxu0 %v148
    %2397 = vmatprep.subr.mxu0 %v153
    %2398 = vmatpush1.msra.mxu0 %v152
    %2399 = vmatprep.subr.mxu0 %v157
    %2400 = vmatpush1.msra.mxu0 %v156
    %2401 = vmatprep.subr.mxu0 %v161
    %2402 = vmatpush1.msra.mxu0 %v160
    %2403 = vmatprep.subr.mxu0 %v165
    %2404 = vmatpush1.msra.mxu0 %v164
    %2405 = vmatprep.subr.mxu0 %v169
    %2406 = vmatpush1.msra.mxu0 %v168
    %2407 = vmatprep.subr.mxu0 %v173
    %2408 = vmatpush1.msra.mxu0 %v172
    %2409 = vmatprep.subr.mxu0 %v177
    %2410 = vmatpush1.msra.mxu0 %v176
    %2411 = vmatprep.subr.mxu0 %v181
    %2412 = vmatpush1.msra.mxu0 %v180
    %2413 = vmatprep.subr.mxu0 %v185
    %2414 = vmatpush1.msra.mxu0 %v184
    %2415 = vmatprep.subr.mxu0 %v189
    %2416 = vmatpush1.msra.mxu0 %v188
    %2417 = vmatprep.subr.mxu0 %v193
    %2418 = vmatpush1.msra.mxu0 %v192
    %2419 = vmatprep.subr.mxu0 %v197
    %2420 = vmatpush1.msra.mxu0 %v196
    %2421 = vmatprep.subr.mxu0 %v201
    %2422 = vmatpush1.msra.mxu0 %v200
    %2423 = vmatprep.subr.mxu0 %v205
    %2424 = vmatpush1.msra.mxu0 %v204
    %2425 = vmatprep.subr.mxu0 %v209
    %2426 = vmatpush1.msra.mxu0 %v208
    %2427 = vmatprep.subr.mxu0 0.0
    %2428 = vmatpush1.msra.mxu0 0.0
    %2429 = vmatprep.subr.mxu0 0.0
    %2430 = vmatpush1.msra.mxu0 0.0
    %2431 = vmatprep.subr.mxu0 0.0
    %2432 = vmatpush1.msra.mxu0 0.0
    %2433 = vmatprep.subr.mxu0 0.0
    %2434 = vmatpush1.msra.mxu0 0.0
    %2435 = vmatprep.subr.mxu0 0.0
    %2436 = vmatpush1.msra.mxu0 0.0
    %2437 = vmatprep.subr.mxu0 0.0
    %2438 = vmatpush1.msra.mxu0 0.0
    %2439 = vmatprep.subr.mxu0 0.0
    %2440 = vmatpush1.msra.mxu0 0.0
    %2441 = vmatprep.subr.mxu0 0.0
    %2442 = vmatpush1.msra.mxu0 0.0
    %2443 = vmatprep.subr.mxu0 0.0
    %2444 = vmatpush1.msra.mxu0 0.0
    %2445 = vmatprep.subr.mxu0 0.0
    %2446 = vmatpush1.msra.mxu0 0.0
    %2447 = vmatprep.subr.mxu0 0.0
    %2448 = vmatpush1.msra.mxu0 0.0
    %2449 = vmatprep.subr.mxu0 0.0
    %2450 = vmatpush1.msra.mxu0 0.0
    %2451 = vmatprep.subr.mxu0 0.0
    %2452 = vmatpush1.msra.mxu0 0.0
    %2453 = vmatprep.subr.mxu0 0.0
    %2454 = vmatpush1.msra.mxu0 0.0
    %2455 = vmatprep.subr.mxu0 0.0
    %2456 = vmatpush1.msra.mxu0 0.0
    %2457 = vmatprep.subr.mxu0 0.0
    %2458 = vmatpush1.msra.mxu0 0.0
    %2459 = vmatprep.mubr.f32.mxu0 0.0
    %2460 = vmatmul.mubr.f32.gmra.mrb[0].mxu0 %v1999
    %v2461 = vpop.f32.mrb[0].mxu0
    %v2462 = vadd.f32 0.0, %v2461
    %v2463 = vpop.f32.mrb[0].mxu0
    %v2464 = vadd.f32 0.0, %v2463
    %2465 = vdwg.mxu0
    %v2466 = vadd.f32 %v2320, %v2391
    %v2467 = vadd.f32 %v2321, %v2393
    %v2468 = vadd.f32 %v2322, %v2462
    %v2469 = vadd.f32 %v2323, %v2464
    %v2470 = vsub.f32 0.0, %v2466
    %v2471 = vmul.f32 %v2470, 1.442695
    %v2472 = vpow.pop %v2471
    %v2473 = vadd.f32 %v2472, 1.0
    %v2474 = vrcp.pop %v2473
    %v2475 = vsub.f32 0.0, %v2467
    %v2476 = vmul.f32 %v2475, 1.442695
    %v2477 = vpow.pop %v2476
    %v2478 = vadd.f32 %v2477, 1.0
    %v2479 = vrcp.pop %v2478
    %v2480 = vtanh.pop %v2468
    %v2481 = vsub.f32 0.0, %v2469
    %v2482 = vmul.f32 %v2481, 1.442695
    %v2483 = vpow.pop %v2482
    %v2484 = vadd.f32 %v2483, 1.0
    %v2485 = vrcp.pop %v2484
    %v2486 = vmul.f32 %v2479, %v1997
    %v2487 = vmul.f32 %v2474, %v2480
    %v2488 = vadd.f32 %v2486, %v2487
    %v2489 = vtanh.pop %v2488
    %v2490 = vmul.f32 %v2485, %v2489
    %2491 = vmatprep.subr.mxu0 %v442
    %2492 = vmatpush1.msra.mxu0 %v441
    %2493 = vmatprep.subr.mxu0 %v446
    %2494 = vmatpush1.msra.mxu0 %v445
    %2495 = vmatprep.subr.mxu0 %v450
    %2496 = vmatpush1.msra.mxu0 %v449
    %2497 = vmatprep.subr.mxu0 %v454
    %2498 = vmatpush1.msra.mxu0 %v453
    %2499 = vmatprep.subr.mxu0 %v458
    %2500 = vmatpush1.msra.mxu0 %v457
    %2501 = vmatprep.subr.mxu0 %v462
    %2502 = vmatpush1.msra.mxu0 %v461
    %2503 = vmatprep.subr.mxu0 %v466
    %2504 = vmatpush1.msra.mxu0 %v465
    %2505 = vmatprep.subr.mxu0 %v470
    %2506 = vmatpush1.msra.mxu0 %v469
    %2507 = vmatprep.subr.mxu0 %v474
    %2508 = vmatpush1.msra.mxu0 %v473
    %2509 = vmatprep.subr.mxu0 %v478
    %2510 = vmatpush1.msra.mxu0 %v477
    %2511 = vmatprep.subr.mxu0 %v482
    %2512 = vmatpush1.msra.mxu0 %v481
    %2513 = vmatprep.subr.mxu0 %v486
    %2514 = vmatpush1.msra.mxu0 %v485
    %2515 = vmatprep.subr.mxu0 %v490
    %2516 = vmatpush1.msra.mxu0 %v489
    %2517 = vmatprep.subr.mxu0 %v494
    %2518 = vmatpush1.msra.mxu0 %v493
    %2519 = vmatprep.subr.mxu0 %v498
    %2520 = vmatpush1.msra.mxu0 %v497
    %2521 = vmatprep.subr.mxu0 %v502
    %2522 = vmatpush1.msra.mxu0 %v501
    %2523 = vmatprep.subr.mxu0 0.0
    %2524 = vmatpush1.msra.mxu0 0.0
    %2525 = vmatprep.subr.mxu0 0.0
    %2526 = vmatpush1.msra.mxu0 0.0
    %2527 = vmatprep.subr.mxu0 0.0
    %2528 = vmatpush1.msra.mxu0 0.0
    %2529 = vmatprep.subr.mxu0 0.0
    %2530 = vmatpush1.msra.mxu0 0.0
    %2531 = vmatprep.subr.mxu0 0.0
    %2532 = vmatpush1.msra.mxu0 0.0
    %2533 = vmatprep.subr.mxu0 0.0
    %2534 = vmatpush1.msra.mxu0 0.0
    %2535 = vmatprep.subr.mxu0 0.0
    %2536 = vmatpush1.msra.mxu0 0.0
    %2537 = vmatprep.subr.mxu0 0.0
    %2538 = vmatpush1.msra.mxu0 0.0
    %2539 = vmatprep.subr.mxu0 0.0
    %2540 = vmatpush1.msra.mxu0 0.0
    %2541 = vmatprep.subr.mxu0 0.0
    %2542 = vmatpush1.msra.mxu0 0.0
    %2543 = vmatprep.subr.mxu0 0.0
    %2544 = vmatpush1.msra.mxu0 0.0
    %2545 = vmatprep.subr.mxu0 0.0
    %2546 = vmatpush1.msra.mxu0 0.0
    %2547 = vmatprep.subr.mxu0 0.0
    %2548 = vmatpush1.msra.mxu0 0.0
    %2549 = vmatprep.subr.mxu0 0.0
    %2550 = vmatpush1.msra.mxu0 0.0
    %2551 = vmatprep.subr.mxu0 0.0
    %2552 = vmatpush1.msra.mxu0 0.0
    %2553 = vmatprep.subr.mxu0 0.0
    %2554 = vmatpush1.msra.mxu0 0.0
    %2555 = vmatprep.mubr.f32.mxu0 0.0
    %2556 = vmatmul.mubr.f32.gmra.mrb[0].mxu0 %v2308
    %v2557 = vpop.f32.mrb[0].mxu0
    %v2558 = vadd.f32 0.0, %v2557
    %v2559 = vpop.f32.mrb[0].mxu0
    %v2560 = vadd.f32 0.0, %v2559
    %2561 = vdwg.mxu0
    %2562 = vmatprep.subr.mxu0 %v444
    %2563 = vmatpush1.msra.mxu0 %v443
    %2564 = vmatprep.subr.mxu0 %v448
    %2565 = vmatpush1.msra.mxu0 %v447
    %2566 = vmatprep.subr.mxu0 %v452
    %2567 = vmatpush1.msra.mxu0 %v451
    %2568 = vmatprep.subr.mxu0 %v456
    %2569 = vmatpush1.msra.mxu0 %v455
    %2570 = vmatprep.subr.mxu0 %v460
    %2571 = vmatpush1.msra.mxu0 %v459
    %2572 = vmatprep.subr.mxu0 %v464
    %2573 = vmatpush1.msra.mxu0 %v463
    %2574 = vmatprep.subr.mxu0 %v468
    %2575 = vmatpush1.msra.mxu0 %v467
    %2576 = vmatprep.subr.mxu0 %v472
    %2577 = vmatpush1.msra.mxu0 %v471
    %2578 = vmatprep.subr.mxu0 %v476
    %2579 = vmatpush1.msra.mxu0 %v475
    %2580 = vmatprep.subr.mxu0 %v480
    %2581 = vmatpush1.msra.mxu0 %v479
    %2582 = vmatprep.subr.mxu0 %v484
    %2583 = vmatpush1.msra.mxu0 %v483
    %2584 = vmatprep.subr.mxu0 %v488
    %2585 = vmatpush1.msra.mxu0 %v487
    %2586 = vmatprep.subr.mxu0 %v492
    %2587 = vmatpush1.msra.mxu0 %v491
    %2588 = vmatprep.subr.mxu0 %v496
    %2589 = vmatpush1.msra.mxu0 %v495
    %2590 = vmatprep.subr.mxu0 %v500
    %2591 = vmatpush1.msra.mxu0 %v499
    %2592 = vmatprep.subr.mxu0 %v504
    %2593 = vmatpush1.msra.mxu0 %v503
    %2594 = vmatprep.subr.mxu0 0.0
    %2595 = vmatpush1.msra.mxu0 0.0
    %2596 = vmatprep.subr.mxu0 0.0
    %2597 = vmatpush1.msra.mxu0 0.0
    %2598 = vmatprep.subr.mxu0 0.0
    %2599 = vmatpush1.msra.mxu0 0.0
    %2600 = vmatprep.subr.mxu0 0.0
    %2601 = vmatpush1.msra.mxu0 0.0
    %2602 = vmatprep.subr.mxu0 0.0
    %2603 = vmatpush1.msra.mxu0 0.0
    %2604 = vmatprep.subr.mxu0 0.0
    %2605 = vmatpush1.msra.mxu0 0.0
    %2606 = vmatprep.subr.mxu0 0.0
    %2607 = vmatpush1.msra.mxu0 0.0
    %2608 = vmatprep.subr.mxu0 0.0
    %2609 = vmatpush1.msra.mxu0 0.0
    %2610 = vmatprep.subr.mxu0 0.0
    %2611 = vmatpush1.msra.mxu0 0.0
    %2612 = vmatprep.subr.mxu0 0.0
    %2613 = vmatpush1.msra.mxu0 0.0
    %2614 = vmatprep.subr.mxu0 0.0
    %2615 = vmatpush1.msra.mxu0 0.0
    %2616 = vmatprep.subr.mxu0 0.0
    %2617 = vmatpush1.msra.mxu0 0.0
    %2618 = vmatprep.subr.mxu0 0.0
    %2619 = vmatpush1.msra.mxu0 0.0
    %2620 = vmatprep.subr.mxu0 0.0
    %2621 = vmatpush1.msra.mxu0 0.0
    %2622 = vmatprep.subr.mxu0 0.0
    %2623 = vmatpush1.msra.mxu0 0.0
    %2624 = vmatprep.subr.mxu0 0.0
    %2625 = vmatpush1.msra.mxu0 0.0
    %2626 = vmatprep.mubr.f32.mxu0 0.0
    %2627 = vmatmul.mubr.f32.gmra.mrb[0].mxu0 %v2308
    %v2628 = vpop.f32.mrb[0].mxu0
    %v2629 = vadd.f32 0.0, %v2628
    %v2630 = vpop.f32.mrb[0].mxu0
    %v2631 = vadd.f32 0.0, %v2630
    %2632 = vdwg.mxu0
    %2633 = vmatprep.subr.mxu0 %v378
    %2634 = vmatpush1.msra.mxu0 %v377
    %2635 = vmatprep.subr.mxu0 %v382
    %2636 = vmatpush1.msra.mxu0 %v381
    %2637 = vmatprep.subr.mxu0 %v386
    %2638 = vmatpush1.msra.mxu0 %v385
    %2639 = vmatprep.subr.mxu0 %v390
    %2640 = vmatpush1.msra.mxu0 %v389
    %2641 = vmatprep.subr.mxu0 %v394
    %2642 = vmatpush1.msra.mxu0 %v393
    %2643 = vmatprep.subr.mxu0 %v398
    %2644 = vmatpush1.msra.mxu0 %v397
    %2645 = vmatprep.subr.mxu0 %v402
    %2646 = vmatpush1.msra.mxu0 %v401
    %2647 = vmatprep.subr.mxu0 %v406
    %2648 = vmatpush1.msra.mxu0 %v405
    %2649 = vmatprep.subr.mxu0 %v410
    %2650 = vmatpush1.msra.mxu0 %v409
    %2651 = vmatprep.subr.mxu0 %v414
    %2652 = vmatpush1.msra.mxu0 %v413
    %2653 = vmatprep.subr.mxu0 %v418
    %2654 = vmatpush1.msra.mxu0 %v417
    %2655 = vmatprep.subr.mxu0 %v422
    %2656 = vmatpush1.msra.mxu0 %v421
    %2657 = vmatprep.subr.mxu0 %v426
    %2658 = vmatpush1.msra.mxu0 %v425
    %2659 = vmatprep.subr.mxu0 %v430
    %2660 = vmatpush1.msra.mxu0 %v429
    %2661 = vmatprep.subr.mxu0 %v434
    %2662 = vmatpush1.msra.mxu0 %v433
    %2663 = vmatprep.subr.mxu0 %v438
    %2664 = vmatpush1.msra.mxu0 %v437
    %2665 = vmatprep.subr.mxu0 0.0
    %2666 = vmatpush1.msra.mxu0 0.0
    %2667 = vmatprep.subr.mxu0 0.0
    %2668 = vmatpush1.msra.mxu0 0.0
    %2669 = vmatprep.subr.mxu0 0.0
    %2670 = vmatpush1.msra.mxu0 0.0
    %2671 = vmatprep.subr.mxu0 0.0
    %2672 = vmatpush1.msra.mxu0 0.0
    %2673 = vmatprep.subr.mxu0 0.0
    %2674 = vmatpush1.msra.mxu0 0.0
    %2675 = vmatprep.subr.mxu0 0.0
    %2676 = vmatpush1.msra.mxu0 0.0
    %2677 = vmatprep.subr.mxu0 0.0
    %2678 = vmatpush1.msra.mxu0 0.0
    %2679 = vmatprep.subr.mxu0 0.0
    %2680 = vmatpush1.msra.mxu0 0.0
    %2681 = vmatprep.subr.mxu0 0.0
    %2682 = vmatpush1.msra.mxu0 0.0
    %2683 = vmatprep.subr.mxu0 0.0
    %2684 = vmatpush1.msra.mxu0 0.0
    %2685 = vmatprep.subr.mxu0 0.0
    %2686 = vmatpush1.msra.mxu0 0.0
    %2687 = vmatprep.subr.mxu0 0.0
    %2688 = vmatpush1.msra.mxu0 0.0
    %2689 = vmatprep.subr.mxu0 0.0
    %2690 = vmatpush1.msra.mxu0 0.0
    %2691 = vmatprep.subr.mxu0 0.0
    %2692 = vmatpush1.msra.mxu0 0.0
    %2693 = vmatprep.subr.mxu0 0.0
    %2694 = vmatpush1.msra.mxu0 0.0
    %2695 = vmatprep.subr.mxu0 0.0
    %2696 = vmatpush1.msra.mxu0 0.0
    %2697 = vmatprep.mubr.f32.mxu0 0.0
    %2698 = vmatmul.mubr.f32.gmra.mrb[0].mxu0 %v2490
    %v2699 = vpop.f32.mrb[0].mxu0
    %v2700 = vadd.f32 %v2558, %v2699
    %v2701 = vpop.f32.mrb[0].mxu0
    %v2702 = vadd.f32 %v2560, %v2701
    %2703 = vdwg.mxu0
    %2704 = vmatprep.subr.mxu0 %v380
    %2705 = vmatpush1.msra.mxu0 %v379
    %2706 = vmatprep.subr.mxu0 %v384
    %2707 = vmatpush1.msra.mxu0 %v383
    %2708 = vmatprep.subr.mxu0 %v388
    %2709 = vmatpush1.msra.mxu0 %v387
    %2710 = vmatprep.subr.mxu0 %v392
    %2711 = vmatpush1.msra.mxu0 %v391
    %2712 = vmatprep.subr.mxu0 %v396
    %2713 = vmatpush1.msra.mxu0 %v395
    %2714 = vmatprep.subr.mxu0 %v400
    %2715 = vmatpush1.msra.mxu0 %v399
    %2716 = vmatprep.subr.mxu0 %v404
    %2717 = vmatpush1.msra.mxu0 %v403
    %2718 = vmatprep.subr.mxu0 %v408
    %2719 = vmatpush1.msra.mxu0 %v407
    %2720 = vmatprep.subr.mxu0 %v412
    %2721 = vmatpush1.msra.mxu0 %v411
    %2722 = vmatprep.subr.mxu0 %v416
    %2723 = vmatpush1.msra.mxu0 %v415
    %2724 = vmatprep.subr.mxu0 %v420
    %2725 = vmatpush1.msra.mxu0 %v419
    %2726 = vmatprep.subr.mxu0 %v424
    %2727 = vmatpush1.msra.mxu0 %v423
    %2728 = vmatprep.subr.mxu0 %v428
    %2729 = vmatpush1.msra.mxu0 %v427
    %2730 = vmatprep.subr.mxu0 %v432
    %2731 = vmatpush1.msra.mxu0 %v431
    %2732 = vmatprep.subr.mxu0 %v436
    %2733 = vmatpush1.msra.mxu0 %v435
    %2734 = vmatprep.subr.mxu0 %v440
    %2735 = vmatpush1.msra.mxu0 %v439
    %2736 = vmatprep.subr.mxu0 0.0
    %2737 = vmatpush1.msra.mxu0 0.0
    %2738 = vmatprep.subr.mxu0 0.0
    %2739 = vmatpush1.msra.mxu0 0.0
    %2740 = vmatprep.subr.mxu0 0.0
    %2741 = vmatpush1.msra.mxu0 0.0
    %2742 = vmatprep.subr.mxu0 0.0
    %2743 = vmatpush1.msra.mxu0 0.0
    %2744 = vmatprep.subr.mxu0 0.0
    %2745 = vmatpush1.msra.mxu0 0.0
    %2746 = vmatprep.subr.mxu0 0.0
    %2747 = vmatpush1.msra.mxu0 0.0
    %2748 = vmatprep.subr.mxu0 0.0
    %2749 = vmatpush1.msra.mxu0 0.0
    %2750 = vmatprep.subr.mxu0 0.0
    %2751 = vmatpush1.msra.mxu0 0.0
    %2752 = vmatprep.subr.mxu0 0.0
    %2753 = vmatpush1.msra.mxu0 0.0
    %2754 = vmatprep.subr.mxu0 0.0
    %2755 = vmatpush1.msra.mxu0 0.0
    %2756 = vmatprep.subr.mxu0 0.0
    %2757 = vmatpush1.msra.mxu0 0.0
    %2758 = vmatprep.subr.mxu0 0.0
    %2759 = vmatpush1.msra.mxu0 0.0
    %2760 = vmatprep.subr.mxu0 0.0
    %2761 = vmatpush1.msra.mxu0 0.0
    %2762 = vmatprep.subr.mxu0 0.0
    %2763 = vmatpush1.msra.mxu0 0.0
    %2764 = vmatprep.subr.mxu0 0.0
    %2765 = vmatpush1.msra.mxu0 0.0
    %2766 = vmatprep.subr.mxu0 0.0
    %2767 = vmatpush1.msra.mxu0 0.0
    %2768 = vmatprep.mubr.f32.mxu0 0.0
    %2769 = vmatmul.mubr.f32.gmra.mrb[0].mxu0 %v2490
    %v2770 = vpop.f32.mrb[0].mxu0
    %v2771 = vadd.f32 %v2629, %v2770
    %v2772 = vpop.f32.mrb[0].mxu0
    %v2773 = vadd.f32 %v2631, %v2772
    %2774 = vdwg.mxu0
    %v2775 = vadd.f32 %v2700, %v794
    %v2776 = vadd.f32 %v2702, %v798
    %v2777 = vadd.f32 %v2771, %v802
    %v2778 = vadd.f32 %v2773, %v806
    %v2779 = vsub.f32 0.0, %v2775
    %v2780 = vmul.f32 %v2779, 1.442695
    %v2781 = vpow.pop %v2780
    %v2782 = vadd.f32 %v2781, 1.0
    %v2783 = vrcp.pop %v2782
    %v2784 = vsub.f32 0.0, %v2776
    %v2785 = vmul.f32 %v2784, 1.442695
    %v2786 = vpow.pop %v2785
    %v2787 = vadd.f32 %v2786, 1.0
    %v2788 = vrcp.pop %v2787
    %v2789 = vtanh.pop %v2777
    %v2790 = vsub.f32 0.0, %v2778
    %v2791 = vmul.f32 %v2790, 1.442695
    %v2792 = vpow.pop %v2791
    %v2793 = vadd.f32 %v2792, 1.0
    %v2794 = vrcp.pop %v2793
    %v2795 = vmul.f32 %v2788, %v2306
    %v2796 = vmul.f32 %v2783, %v2789
    %v2797 = vadd.f32 %v2795, %v2796
    %v2798 = vtanh.pop %v2797
    %v2799 = vmul.f32 %v2794, %v2798
    %s2800 = scalar_lea.vmem %s0, 40
    %v2801 = vld [vmem:[%s2800] sm:$0xff]
    %2803 = vset.pattern.permute.xlu0 0
    %2804 = vperm.xlu0 %2803, %v2801
    %v2805 = vpop.permute.xlu0 %2804
    %v2807 = vmul.f32 %v2805, %v99
    %v2808 = vmul.f32 %v2805, %v103
    %v2809 = vmul.f32 %v2805, %v107
    %v2810 = vmul.f32 %v2805, %v111
    %v2811 = vadd.f32 %v2807, %v125
    %v2812 = vadd.f32 %v2808, %v129
    %v2813 = vadd.f32 %v2809, %v133
    %v2814 = vadd.f32 %v2810, %v137
    %2815 = vmatprep.subr.mxu0 %v147
    %2816 = vmatpush1.msra.mxu0 %v146
    %2817 = vmatprep.subr.mxu0 %v151
    %2818 = vmatpush1.msra.mxu0 %v150
    %2819 = vmatprep.subr.mxu0 %v155
    %2820 = vmatpush1.msra.mxu0 %v154
    %2821 = vmatprep.subr.mxu0 %v159
    %2822 = vmatpush1.msra.mxu0 %v158
    %2823 = vmatprep.subr.mxu0 %v163
    %2824 = vmatpush1.msra.mxu0 %v162
    %2825 = vmatprep.subr.mxu0 %v167
    %2826 = vmatpush1.msra.mxu0 %v166
    %2827 = vmatprep.subr.mxu0 %v171
    %2828 = vmatpush1.msra.mxu0 %v170
    %2829 = vmatprep.subr.mxu0 %v175
    %2830 = vmatpush1.msra.mxu0 %v174
    %2831 = vmatprep.subr.mxu0 %v179
    %2832 = vmatpush1.msra.mxu0 %v178
    %2833 = vmatprep.subr.mxu0 %v183
    %2834 = vmatpush1.msra.mxu0 %v182
    %2835 = vmatprep.subr.mxu0 %v187
    %2836 = vmatpush1.msra.mxu0 %v186
    %2837 = vmatprep.subr.mxu0 %v191
    %2838 = vmatpush1.msra.mxu0 %v190
    %2839 = vmatprep.subr.mxu0 %v195
    %2840 = vmatpush1.msra.mxu0 %v194
    %2841 = vmatprep.subr.mxu0 %v199
    %2842 = vmatpush1.msra.mxu0 %v198
    %2843 = vmatprep.subr.mxu0 %v203
    %2844 = vmatpush1.msra.mxu0 %v202
    %2845 = vmatprep.subr.mxu0 %v207
    %2846 = vmatpush1.msra.mxu0 %v206
    %2847 = vmatprep.subr.mxu0 0.0
    %2848 = vmatpush1.msra.mxu0 0.0
    %2849 = vmatprep.subr.mxu0 0.0
    %2850 = vmatpush1.msra.mxu0 0.0
    %2851 = vmatprep.subr.mxu0 0.0
    %2852 = vmatpush1.msra.mxu0 0.0
    %2853 = vmatprep.subr.mxu0 0.0
    %2854 = vmatpush1.msra.mxu0 0.0
    %2855 = vmatprep.subr.mxu0 0.0
    %2856 = vmatpush1.msra.mxu0 0.0
    %2857 = vmatprep.subr.mxu0 0.0
    %2858 = vmatpush1.msra.mxu0 0.0
    %2859 = vmatprep.subr.mxu0 0.0
    %2860 = vmatpush1.msra.mxu0 0.0
    %2861 = vmatprep.subr.mxu0 0.0
    %2862 = vmatpush1.msra.mxu0 0.0
    %2863 = vmatprep.subr.mxu0 0.0
    %2864 = vmatpush1.msra.mxu0 0.0
    %2865 = vmatprep.subr.mxu0 0.0
    %2866 = vmatpush1.msra.mxu0 0.0
    %2867 = vmatprep.subr.mxu0 0.0
    %2868 = vmatpush1.msra.mxu0 0.0
    %2869 = vmatprep.subr.mxu0 0.0
    %2870 = vmatpush1.msra.mxu0 0.0
    %2871 = vmatprep.subr.mxu0 0.0
    %2872 = vmatpush1.msra.mxu0 0.0
    %2873 = vmatprep.subr.mxu0 0.0
    %2874 = vmatpush1.msra.mxu0 0.0
    %2875 = vmatprep.subr.mxu0 0.0
    %2876 = vmatpush1.msra.mxu0 0.0
    %2877 = vmatprep.subr.mxu0 0.0
    %2878 = vmatpush1.msra.mxu0 0.0
    %2879 = vmatprep.mubr.f32.mxu0 0.0
    %2880 = vmatmul.mubr.f32.gmra.mrb[0].mxu0 %v2490
    %v2881 = vpop.f32.mrb[0].mxu0
    %v2882 = vadd.f32 0.0, %v2881
    %v2883 = vpop.f32.mrb[0].mxu0
    %v2884 = vadd.f32 0.0, %v2883
    %2885 = vdwg.mxu0
    %2886 = vmatprep.subr.mxu0 %v149
    %2887 = vmatpush1.msra.mxu0 %v148
    %2888 = vmatprep.subr.mxu0 %v153
    %2889 = vmatpush1.msra.mxu0 %v152
    %2890 = vmatprep.subr.mxu0 %v157
    %2891 = vmatpush1.msra.mxu0 %v156
    %2892 = vmatprep.subr.mxu0 %v161
    %2893 = vmatpush1.msra.mxu0 %v160
    %2894 = vmatprep.subr.mxu0 %v165
    %2895 = vmatpush1.msra.mxu0 %v164
    %2896 = vmatprep.subr.mxu0 %v169
    %2897 = vmatpush1.msra.mxu0 %v168
    %2898 = vmatprep.subr.mxu0 %v173
    %2899 = vmatpush1.msra.mxu0 %v172
    %2900 = vmatprep.subr.mxu0 %v177
    %2901 = vmatpush1.msra.mxu0 %v176
    %2902 = vmatprep.subr.mxu0 %v181
    %2903 = vmatpush1.msra.mxu0 %v180
    %2904 = vmatprep.subr.mxu0 %v185
    %2905 = vmatpush1.msra.mxu0 %v184
    %2906 = vmatprep.subr.mxu0 %v189
    %2907 = vmatpush1.msra.mxu0 %v188
    %2908 = vmatprep.subr.mxu0 %v193
    %2909 = vmatpush1.msra.mxu0 %v192
    %2910 = vmatprep.subr.mxu0 %v197
    %2911 = vmatpush1.msra.mxu0 %v196
    %2912 = vmatprep.subr.mxu0 %v201
    %2913 = vmatpush1.msra.mxu0 %v200
    %2914 = vmatprep.subr.mxu0 %v205
    %2915 = vmatpush1.msra.mxu0 %v204
    %2916 = vmatprep.subr.mxu0 %v209
    %2917 = vmatpush1.msra.mxu0 %v208
    %2918 = vmatprep.subr.mxu0 0.0
    %2919 = vmatpush1.msra.mxu0 0.0
    %2920 = vmatprep.subr.mxu0 0.0
    %2921 = vmatpush1.msra.mxu0 0.0
    %2922 = vmatprep.subr.mxu0 0.0
    %2923 = vmatpush1.msra.mxu0 0.0
    %2924 = vmatprep.subr.mxu0 0.0
    %2925 = vmatpush1.msra.mxu0 0.0
    %2926 = vmatprep.subr.mxu0 0.0
    %2927 = vmatpush1.msra.mxu0 0.0
    %2928 = vmatprep.subr.mxu0 0.0
    %2929 = vmatpush1.msra.mxu0 0.0
    %2930 = vmatprep.subr.mxu0 0.0
    %2931 = vmatpush1.msra.mxu0 0.0
    %2932 = vmatprep.subr.mxu0 0.0
    %2933 = vmatpush1.msra.mxu0 0.0
    %2934 = vmatprep.subr.mxu0 0.0
    %2935 = vmatpush1.msra.mxu0 0.0
    %2936 = vmatprep.subr.mxu0 0.0
    %2937 = vmatpush1.msra.mxu0 0.0
    %2938 = vmatprep.subr.mxu0 0.0
    %2939 = vmatpush1.msra.mxu0 0.0
    %2940 = vmatprep.subr.mxu0 0.0
    %2941 = vmatpush1.msra.mxu0 0.0
    %2942 = vmatprep.subr.mxu0 0.0
    %2943 = vmatpush1.msra.mxu0 0.0
    %2944 = vmatprep.subr.mxu0 0.0
    %2945 = vmatpush1.msra.mxu0 0.0
    %2946 = vmatprep.subr.mxu0 0.0
    %2947 = vmatpush1.msra.mxu0 0.0
    %2948 = vmatprep.subr.mxu0 0.0
    %2949 = vmatpush1.msra.mxu0 0.0
    %2950 = vmatprep.mubr.f32.mxu0 0.0
    %2951 = vmatmul.mubr.f32.gmra.mrb[0].mxu0 %v2490
    %v2952 = vpop.f32.mrb[0].mxu0
    %v2953 = vadd.f32 0.0, %v2952
    %v2954 = vpop.f32.mrb[0].mxu0
    %v2955 = vadd.f32 0.0, %v2954
    %2956 = vdwg.mxu0
    %v2957 = vadd.f32 %v2811, %v2882
    %v2958 = vadd.f32 %v2812, %v2884
    %v2959 = vadd.f32 %v2813, %v2953
    %v2960 = vadd.f32 %v2814, %v2955
    %v2961 = vsub.f32 0.0, %v2957
    %v2962 = vmul.f32 %v2961, 1.442695
    %v2963 = vpow.pop %v2962
    %v2964 = vadd.f32 %v2963, 1.0
    %v2965 = vrcp.pop %v2964
    %v2966 = vsub.f32 0.0, %v2958
    %v2967 = vmul.f32 %v2966, 1.442695
    %v2968 = vpow.pop %v2967
    %v2969 = vadd.f32 %v2968, 1.0
    %v2970 = vrcp.pop %v2969
    %v2971 = vtanh.pop %v2959
    %v2972 = vsub.f32 0.0, %v2960
    %v2973 = vmul.f32 %v2972, 1.442695
    %v2974 = vpow.pop %v2973
    %v2975 = vadd.f32 %v2974, 1.0
    %v2976 = vrcp.pop %v2975
    %v2977 = vmul.f32 %v2970, %v2488
    %v2978 = vmul.f32 %v2965, %v2971
    %v2979 = vadd.f32 %v2977, %v2978
    %v2980 = vtanh.pop %v2979
    %v2981 = vmul.f32 %v2976, %v2980
    %2982 = vmatprep.subr.mxu0 %v442
    %2983 = vmatpush1.msra.mxu0 %v441
    %2984 = vmatprep.subr.mxu0 %v446
    %2985 = vmatpush1.msra.mxu0 %v445
    %2986 = vmatprep.subr.mxu0 %v450
    %2987 = vmatpush1.msra.mxu0 %v449
    %2988 = vmatprep.subr.mxu0 %v454
    %2989 = vmatpush1.msra.mxu0 %v453
    %2990 = vmatprep.subr.mxu0 %v458
    %2991 = vmatpush1.msra.mxu0 %v457
    %2992 = vmatprep.subr.mxu0 %v462
    %2993 = vmatpush1.msra.mxu0 %v461
    %2994 = vmatprep.subr.mxu0 %v466
    %2995 = vmatpush1.msra.mxu0 %v465
    %2996 = vmatprep.subr.mxu0 %v470
    %2997 = vmatpush1.msra.mxu0 %v469
    %2998 = vmatprep.subr.mxu0 %v474
    %2999 = vmatpush1.msra.mxu0 %v473
    %3000 = vmatprep.subr.mxu0 %v478
    %3001 = vmatpush1.msra.mxu0 %v477
    %3002 = vmatprep.subr.mxu0 %v482
    %3003 = vmatpush1.msra.mxu0 %v481
    %3004 = vmatprep.subr.mxu0 %v486
    %3005 = vmatpush1.msra.mxu0 %v485
    %3006 = vmatprep.subr.mxu0 %v490
    %3007 = vmatpush1.msra.mxu0 %v489
    %3008 = vmatprep.subr.mxu0 %v494
    %3009 = vmatpush1.msra.mxu0 %v493
    %3010 = vmatprep.subr.mxu0 %v498
    %3011 = vmatpush1.msra.mxu0 %v497
    %3012 = vmatprep.subr.mxu0 %v502
    %3013 = vmatpush1.msra.mxu0 %v501
    %3014 = vmatprep.subr.mxu0 0.0
    %3015 = vmatpush1.msra.mxu0 0.0
    %3016 = vmatprep.subr.mxu0 0.0
    %3017 = vmatpush1.msra.mxu0 0.0
    %3018 = vmatprep.subr.mxu0 0.0
    %3019 = vmatpush1.msra.mxu0 0.0
    %3020 = vmatprep.subr.mxu0 0.0
    %3021 = vmatpush1.msra.mxu0 0.0
    %3022 = vmatprep.subr.mxu0 0.0
    %3023 = vmatpush1.msra.mxu0 0.0
    %3024 = vmatprep.subr.mxu0 0.0
    %3025 = vmatpush1.msra.mxu0 0.0
    %3026 = vmatprep.subr.mxu0 0.0
    %3027 = vmatpush1.msra.mxu0 0.0
    %3028 = vmatprep.subr.mxu0 0.0
    %3029 = vmatpush1.msra.mxu0 0.0
    %3030 = vmatprep.subr.mxu0 0.0
    %3031 = vmatpush1.msra.mxu0 0.0
    %3032 = vmatprep.subr.mxu0 0.0
    %3033 = vmatpush1.msra.mxu0 0.0
    %3034 = vmatprep.subr.mxu0 0.0
    %3035 = vmatpush1.msra.mxu0 0.0
    %3036 = vmatprep.subr.mxu0 0.0
    %3037 = vmatpush1.msra.mxu0 0.0
    %3038 = vmatprep.subr.mxu0 0.0
    %3039 = vmatpush1.msra.mxu0 0.0
    %3040 = vmatprep.subr.mxu0 0.0
    %3041 = vmatpush1.msra.mxu0 0.0
    %3042 = vmatprep.subr.mxu0 0.0
    %3043 = vmatpush1.msra.mxu0 0.0
    %3044 = vmatprep.subr.mxu0 0.0
    %3045 = vmatpush1.msra.mxu0 0.0
    %3046 = vmatprep.mubr.f32.mxu0 0.0
    %3047 = vmatmul.mubr.f32.gmra.mrb[0].mxu0 %v2799
    %v3048 = vpop.f32.mrb[0].mxu0
    %v3049 = vadd.f32 0.0, %v3048
    %v3050 = vpop.f32.mrb[0].mxu0
    %v3051 = vadd.f32 0.0, %v3050
    %3052 = vdwg.mxu0
    %3053 = vmatprep.subr.mxu0 %v444
    %3054 = vmatpush1.msra.mxu0 %v443
    %3055 = vmatprep.subr.mxu0 %v448
    %3056 = vmatpush1.msra.mxu0 %v447
    %3057 = vmatprep.subr.mxu0 %v452
    %3058 = vmatpush1.msra.mxu0 %v451
    %3059 = vmatprep.subr.mxu0 %v456
    %3060 = vmatpush1.msra.mxu0 %v455
    %3061 = vmatprep.subr.mxu0 %v460
    %3062 = vmatpush1.msra.mxu0 %v459
    %3063 = vmatprep.subr.mxu0 %v464
    %3064 = vmatpush1.msra.mxu0 %v463
    %3065 = vmatprep.subr.mxu0 %v468
    %3066 = vmatpush1.msra.mxu0 %v467
    %3067 = vmatprep.subr.mxu0 %v472
    %3068 = vmatpush1.msra.mxu0 %v471
    %3069 = vmatprep.subr.mxu0 %v476
    %3070 = vmatpush1.msra.mxu0 %v475
    %3071 = vmatprep.subr.mxu0 %v480
    %3072 = vmatpush1.msra.mxu0 %v479
    %3073 = vmatprep.subr.mxu0 %v484
    %3074 = vmatpush1.msra.mxu0 %v483
    %3075 = vmatprep.subr.mxu0 %v488
    %3076 = vmatpush1.msra.mxu0 %v487
    %3077 = vmatprep.subr.mxu0 %v492
    %3078 = vmatpush1.msra.mxu0 %v491
    %3079 = vmatprep.subr.mxu0 %v496
    %3080 = vmatpush1.msra.mxu0 %v495
    %3081 = vmatprep.subr.mxu0 %v500
    %3082 = vmatpush1.msra.mxu0 %v499
    %3083 = vmatprep.subr.mxu0 %v504
    %3084 = vmatpush1.msra.mxu0 %v503
    %3085 = vmatprep.subr.mxu0 0.0
    %3086 = vmatpush1.msra.mxu0 0.0
    %3087 = vmatprep.subr.mxu0 0.0
    %3088 = vmatpush1.msra.mxu0 0.0
    %3089 = vmatprep.subr.mxu0 0.0
    %3090 = vmatpush1.msra.mxu0 0.0
    %3091 = vmatprep.subr.mxu0 0.0
    %3092 = vmatpush1.msra.mxu0 0.0
    %3093 = vmatprep.subr.mxu0 0.0
    %3094 = vmatpush1.msra.mxu0 0.0
    %3095 = vmatprep.subr.mxu0 0.0
    %3096 = vmatpush1.msra.mxu0 0.0
    %3097 = vmatprep.subr.mxu0 0.0
    %3098 = vmatpush1.msra.mxu0 0.0
    %3099 = vmatprep.subr.mxu0 0.0
    %3100 = vmatpush1.msra.mxu0 0.0
    %3101 = vmatprep.subr.mxu0 0.0
    %3102 = vmatpush1.msra.mxu0 0.0
    %3103 = vmatprep.subr.mxu0 0.0
    %3104 = vmatpush1.msra.mxu0 0.0
    %3105 = vmatprep.subr.mxu0 0.0
    %3106 = vmatpush1.msra.mxu0 0.0
    %3107 = vmatprep.subr.mxu0 0.0
    %3108 = vmatpush1.msra.mxu0 0.0
    %3109 = vmatprep.subr.mxu0 0.0
    %3110 = vmatpush1.msra.mxu0 0.0
    %3111 = vmatprep.subr.mxu0 0.0
    %3112 = vmatpush1.msra.mxu0 0.0
    %3113 = vmatprep.subr.mxu0 0.0
    %3114 = vmatpush1.msra.mxu0 0.0
    %3115 = vmatprep.subr.mxu0 0.0
    %3116 = vmatpush1.msra.mxu0 0.0
    %3117 = vmatprep.mubr.f32.mxu0 0.0
    %3118 = vmatmul.mubr.f32.gmra.mrb[0].mxu0 %v2799
    %v3119 = vpop.f32.mrb[0].mxu0
    %v3120 = vadd.f32 0.0, %v3119
    %v3121 = vpop.f32.mrb[0].mxu0
    %v3122 = vadd.f32 0.0, %v3121
    %3123 = vdwg.mxu0
    %3124 = vmatprep.subr.mxu0 %v378
    %3125 = vmatpush1.msra.mxu0 %v377
    %3126 = vmatprep.subr.mxu0 %v382
    %3127 = vmatpush1.msra.mxu0 %v381
    %3128 = vmatprep.subr.mxu0 %v386
    %3129 = vmatpush1.msra.mxu0 %v385
    %3130 = vmatprep.subr.mxu0 %v390
    %3131 = vmatpush1.msra.mxu0 %v389
    %3132 = vmatprep.subr.mxu0 %v394
    %3133 = vmatpush1.msra.mxu0 %v393
    %3134 = vmatprep.subr.mxu0 %v398
    %3135 = vmatpush1.msra.mxu0 %v397
    %3136 = vmatprep.subr.mxu0 %v402
    %3137 = vmatpush1.msra.mxu0 %v401
    %3138 = vmatprep.subr.mxu0 %v406
    %3139 = vmatpush1.msra.mxu0 %v405
    %3140 = vmatprep.subr.mxu0 %v410
    %3141 = vmatpush1.msra.mxu0 %v409
    %3142 = vmatprep.subr.mxu0 %v414
    %3143 = vmatpush1.msra.mxu0 %v413
    %3144 = vmatprep.subr.mxu0 %v418
    %3145 = vmatpush1.msra.mxu0 %v417
    %3146 = vmatprep.subr.mxu0 %v422
    %3147 = vmatpush1.msra.mxu0 %v421
    %3148 = vmatprep.subr.mxu0 %v426
    %3149 = vmatpush1.msra.mxu0 %v425
    %3150 = vmatprep.subr.mxu0 %v430
    %3151 = vmatpush1.msra.mxu0 %v429
    %3152 = vmatprep.subr.mxu0 %v434
    %3153 = vmatpush1.msra.mxu0 %v433
    %3154 = vmatprep.subr.mxu0 %v438
    %3155 = vmatpush1.msra.mxu0 %v437
    %3156 = vmatprep.subr.mxu0 0.0
    %3157 = vmatpush1.msra.mxu0 0.0
    %3158 = vmatprep.subr.mxu0 0.0
    %3159 = vmatpush1.msra.mxu0 0.0
    %3160 = vmatprep.subr.mxu0 0.0
    %3161 = vmatpush1.msra.mxu0 0.0
    %3162 = vmatprep.subr.mxu0 0.0
    %3163 = vmatpush1.msra.mxu0 0.0
    %3164 = vmatprep.subr.mxu0 0.0
    %3165 = vmatpush1.msra.mxu0 0.0
    %3166 = vmatprep.subr.mxu0 0.0
    %3167 = vmatpush1.msra.mxu0 0.0
    %3168 = vmatprep.subr.mxu0 0.0
    %3169 = vmatpush1.msra.mxu0 0.0
    %3170 = vmatprep.subr.mxu0 0.0
    %3171 = vmatpush1.msra.mxu0 0.0
    %3172 = vmatprep.subr.mxu0 0.0
    %3173 = vmatpush1.msra.mxu0 0.0
    %3174 = vmatprep.subr.mxu0 0.0
    %3175 = vmatpush1.msra.mxu0 0.0
    %3176 = vmatprep.subr.mxu0 0.0
    %3177 = vmatpush1.msra.mxu0 0.0
    %3178 = vmatprep.subr.mxu0 0.0
    %3179 = vmatpush1.msra.mxu0 0.0
    %3180 = vmatprep.subr.mxu0 0.0
    %3181 = vmatpush1.msra.mxu0 0.0
    %3182 = vmatprep.subr.mxu0 0.0
    %3183 = vmatpush1.msra.mxu0 0.0
    %3184 = vmatprep.subr.mxu0 0.0
    %3185 = vmatpush1.msra.mxu0 0.0
    %3186 = vmatprep.subr.mxu0 0.0
    %3187 = vmatpush1.msra.mxu0 0.0
    %3188 = vmatprep.mubr.f32.mxu0 0.0
    %3189 = vmatmul.mubr.f32.gmra.mrb[0].mxu0 %v2981
    %v3190 = vpop.f32.mrb[0].mxu0
    %v3191 = vadd.f32 %v3049, %v3190
    %v3192 = vpop.f32.mrb[0].mxu0
    %v3193 = vadd.f32 %v3051, %v3192
    %3194 = vdwg.mxu0
    %3195 = vmatprep.subr.mxu0 %v380
    %3196 = vmatpush1.msra.mxu0 %v379
    %3197 = vmatprep.subr.mxu0 %v384
    %3198 = vmatpush1.msra.mxu0 %v383
    %3199 = vmatprep.subr.mxu0 %v388
    %3200 = vmatpush1.msra.mxu0 %v387
    %3201 = vmatprep.subr.mxu0 %v392
    %3202 = vmatpush1.msra.mxu0 %v391
    %3203 = vmatprep.subr.mxu0 %v396
    %3204 = vmatpush1.msra.mxu0 %v395
    %3205 = vmatprep.subr.mxu0 %v400
    %3206 = vmatpush1.msra.mxu0 %v399
    %3207 = vmatprep.subr.mxu0 %v404
    %3208 = vmatpush1.msra.mxu0 %v403
    %3209 = vmatprep.subr.mxu0 %v408
    %3210 = vmatpush1.msra.mxu0 %v407
    %3211 = vmatprep.subr.mxu0 %v412
    %3212 = vmatpush1.msra.mxu0 %v411
    %3213 = vmatprep.subr.mxu0 %v416
    %3214 = vmatpush1.msra.mxu0 %v415
    %3215 = vmatprep.subr.mxu0 %v420
    %3216 = vmatpush1.msra.mxu0 %v419
    %3217 = vmatprep.subr.mxu0 %v424
    %3218 = vmatpush1.msra.mxu0 %v423
    %3219 = vmatprep.subr.mxu0 %v428
    %3220 = vmatpush1.msra.mxu0 %v427
    %3221 = vmatprep.subr.mxu0 %v432
    %3222 = vmatpush1.msra.mxu0 %v431
    %3223 = vmatprep.subr.mxu0 %v436
    %3224 = vmatpush1.msra.mxu0 %v435
    %3225 = vmatprep.subr.mxu0 %v440
    %3226 = vmatpush1.msra.mxu0 %v439
    %3227 = vmatprep.subr.mxu0 0.0
    %3228 = vmatpush1.msra.mxu0 0.0
    %3229 = vmatprep.subr.mxu0 0.0
    %3230 = vmatpush1.msra.mxu0 0.0
    %3231 = vmatprep.subr.mxu0 0.0
    %3232 = vmatpush1.msra.mxu0 0.0
    %3233 = vmatprep.subr.mxu0 0.0
    %3234 = vmatpush1.msra.mxu0 0.0
    %3235 = vmatprep.subr.mxu0 0.0
    %3236 = vmatpush1.msra.mxu0 0.0
    %3237 = vmatprep.subr.mxu0 0.0
    %3238 = vmatpush1.msra.mxu0 0.0
    %3239 = vmatprep.subr.mxu0 0.0
    %3240 = vmatpush1.msra.mxu0 0.0
    %3241 = vmatprep.subr.mxu0 0.0
    %3242 = vmatpush1.msra.mxu0 0.0
    %3243 = vmatprep.subr.mxu0 0.0
    %3244 = vmatpush1.msra.mxu0 0.0
    %3245 = vmatprep.subr.mxu0 0.0
    %3246 = vmatpush1.msra.mxu0 0.0
    %3247 = vmatprep.subr.mxu0 0.0
    %3248 = vmatpush1.msra.mxu0 0.0
    %3249 = vmatprep.subr.mxu0 0.0
    %3250 = vmatpush1.msra.mxu0 0.0
    %3251 = vmatprep.subr.mxu0 0.0
    %3252 = vmatpush1.msra.mxu0 0.0
    %3253 = vmatprep.subr.mxu0 0.0
    %3254 = vmatpush1.msra.mxu0 0.0
    %3255 = vmatprep.subr.mxu0 0.0
    %3256 = vmatpush1.msra.mxu0 0.0
    %3257 = vmatprep.subr.mxu0 0.0
    %3258 = vmatpush1.msra.mxu0 0.0
    %3259 = vmatprep.mubr.f32.mxu0 0.0
    %3260 = vmatmul.mubr.f32.gmra.mrb[0].mxu0 %v2981
    %v3261 = vpop.f32.mrb[0].mxu0
    %v3262 = vadd.f32 %v3120, %v3261
    %v3263 = vpop.f32.mrb[0].mxu0
    %v3264 = vadd.f32 %v3122, %v3263
    %3265 = vdwg.mxu0
    %v3266 = vadd.f32 %v3191, %v794
    %v3267 = vadd.f32 %v3193, %v798
    %v3268 = vadd.f32 %v3262, %v802
    %v3269 = vadd.f32 %v3264, %v806
    %v3270 = vsub.f32 0.0, %v3266
    %v3271 = vmul.f32 %v3270, 1.442695
    %v3272 = vpow.pop %v3271
    %v3273 = vadd.f32 %v3272, 1.0
    %v3274 = vrcp.pop %v3273
    %v3275 = vsub.f32 0.0, %v3267
    %v3276 = vmul.f32 %v3275, 1.442695
    %v3277 = vpow.pop %v3276
    %v3278 = vadd.f32 %v3277, 1.0
    %v3279 = vrcp.pop %v3278
    %v3280 = vtanh.pop %v3268
    %v3281 = vsub.f32 0.0, %v3269
    %v3282 = vmul.f32 %v3281, 1.442695
    %v3283 = vpow.pop %v3282
    %v3284 = vadd.f32 %v3283, 1.0
    %v3285 = vrcp.pop %v3284
    %v3286 = vmul.f32 %v3279, %v2797
    %v3287 = vmul.f32 %v3274, %v3280
    %v3288 = vadd.f32 %v3286, %v3287
    %v3289 = vtanh.pop %v3288
    %v3290 = vmul.f32 %v3285, %v3289
    %s3291 = scalar_lea.vmem %s0, 48
    %v3292 = vld [vmem:[%s3291] sm:$0xff]
    %3294 = vset.pattern.permute.xlu0 0
    %3295 = vperm.xlu0 %3294, %v3292
    %v3296 = vpop.permute.xlu0 %3295
    %v3298 = vmul.f32 %v3296, %v99
    %v3299 = vmul.f32 %v3296, %v103
    %v3300 = vmul.f32 %v3296, %v107
    %v3301 = vmul.f32 %v3296, %v111
    %v3302 = vadd.f32 %v3298, %v125
    %v3303 = vadd.f32 %v3299, %v129
    %v3304 = vadd.f32 %v3300, %v133
    %v3305 = vadd.f32 %v3301, %v137
    %3306 = vmatprep.subr.mxu0 %v147
    %3307 = vmatpush1.msra.mxu0 %v146
    %3308 = vmatprep.subr.mxu0 %v151
    %3309 = vmatpush1.msra.mxu0 %v150
    %3310 = vmatprep.subr.mxu0 %v155
    %3311 = vmatpush1.msra.mxu0 %v154
    %3312 = vmatprep.subr.mxu0 %v159
    %3313 = vmatpush1.msra.mxu0 %v158
    %3314 = vmatprep.subr.mxu0 %v163
    %3315 = vmatpush1.msra.mxu0 %v162
    %3316 = vmatprep.subr.mxu0 %v167
    %3317 = vmatpush1.msra.mxu0 %v166
    %3318 = vmatprep.subr.mxu0 %v171
    %3319 = vmatpush1.msra.mxu0 %v170
    %3320 = vmatprep.subr.mxu0 %v175
    %3321 = vmatpush1.msra.mxu0 %v174
    %3322 = vmatprep.subr.mxu0 %v179
    %3323 = vmatpush1.msra.mxu0 %v178
    %3324 = vmatprep.subr.mxu0 %v183
    %3325 = vmatpush1.msra.mxu0 %v182
    %3326 = vmatprep.subr.mxu0 %v187
    %3327 = vmatpush1.msra.mxu0 %v186
    %3328 = vmatprep.subr.mxu0 %v191
    %3329 = vmatpush1.msra.mxu0 %v190
    %3330 = vmatprep.subr.mxu0 %v195
    %3331 = vmatpush1.msra.mxu0 %v194
    %3332 = vmatprep.subr.mxu0 %v199
    %3333 = vmatpush1.msra.mxu0 %v198
    %3334 = vmatprep.subr.mxu0 %v203
    %3335 = vmatpush1.msra.mxu0 %v202
    %3336 = vmatprep.subr.mxu0 %v207
    %3337 = vmatpush1.msra.mxu0 %v206
    %3338 = vmatprep.subr.mxu0 0.0
    %3339 = vmatpush1.msra.mxu0 0.0
    %3340 = vmatprep.subr.mxu0 0.0
    %3341 = vmatpush1.msra.mxu0 0.0
    %3342 = vmatprep.subr.mxu0 0.0
    %3343 = vmatpush1.msra.mxu0 0.0
    %3344 = vmatprep.subr.mxu0 0.0
    %3345 = vmatpush1.msra.mxu0 0.0
    %3346 = vmatprep.subr.mxu0 0.0
    %3347 = vmatpush1.msra.mxu0 0.0
    %3348 = vmatprep.subr.mxu0 0.0
    %3349 = vmatpush1.msra.mxu0 0.0
    %3350 = vmatprep.subr.mxu0 0.0
    %3351 = vmatpush1.msra.mxu0 0.0
    %3352 = vmatprep.subr.mxu0 0.0
    %3353 = vmatpush1.msra.mxu0 0.0
    %3354 = vmatprep.subr.mxu0 0.0
    %3355 = vmatpush1.msra.mxu0 0.0
    %3356 = vmatprep.subr.mxu0 0.0
    %3357 = vmatpush1.msra.mxu0 0.0
    %3358 = vmatprep.subr.mxu0 0.0
    %3359 = vmatpush1.msra.mxu0 0.0
    %3360 = vmatprep.subr.mxu0 0.0
    %3361 = vmatpush1.msra.mxu0 0.0
    %3362 = vmatprep.subr.mxu0 0.0
    %3363 = vmatpush1.msra.mxu0 0.0
    %3364 = vmatprep.subr.mxu0 0.0
    %3365 = vmatpush1.msra.mxu0 0.0
    %3366 = vmatprep.subr.mxu0 0.0
    %3367 = vmatpush1.msra.mxu0 0.0
    %3368 = vmatprep.subr.mxu0 0.0
    %3369 = vmatpush1.msra.mxu0 0.0
    %3370 = vmatprep.mubr.f32.mxu0 0.0
    %3371 = vmatmul.mubr.f32.gmra.mrb[0].mxu0 %v2981
    %v3372 = vpop.f32.mrb[0].mxu0
    %v3373 = vadd.f32 0.0, %v3372
    %v3374 = vpop.f32.mrb[0].mxu0
    %v3375 = vadd.f32 0.0, %v3374
    %3376 = vdwg.mxu0
    %3377 = vmatprep.subr.mxu0 %v149
    %3378 = vmatpush1.msra.mxu0 %v148
    %3379 = vmatprep.subr.mxu0 %v153
    %3380 = vmatpush1.msra.mxu0 %v152
    %3381 = vmatprep.subr.mxu0 %v157
    %3382 = vmatpush1.msra.mxu0 %v156
    %3383 = vmatprep.subr.mxu0 %v161
    %3384 = vmatpush1.msra.mxu0 %v160
    %3385 = vmatprep.subr.mxu0 %v165
    %3386 = vmatpush1.msra.mxu0 %v164
    %3387 = vmatprep.subr.mxu0 %v169
    %3388 = vmatpush1.msra.mxu0 %v168
    %3389 = vmatprep.subr.mxu0 %v173
    %3390 = vmatpush1.msra.mxu0 %v172
    %3391 = vmatprep.subr.mxu0 %v177
    %3392 = vmatpush1.msra.mxu0 %v176
    %3393 = vmatprep.subr.mxu0 %v181
    %3394 = vmatpush1.msra.mxu0 %v180
    %3395 = vmatprep.subr.mxu0 %v185
    %3396 = vmatpush1.msra.mxu0 %v184
    %3397 = vmatprep.subr.mxu0 %v189
    %3398 = vmatpush1.msra.mxu0 %v188
    %3399 = vmatprep.subr.mxu0 %v193
    %3400 = vmatpush1.msra.mxu0 %v192
    %3401 = vmatprep.subr.mxu0 %v197
    %3402 = vmatpush1.msra.mxu0 %v196
    %3403 = vmatprep.subr.mxu0 %v201
    %3404 = vmatpush1.msra.mxu0 %v200
    %3405 = vmatprep.subr.mxu0 %v205
    %3406 = vmatpush1.msra.mxu0 %v204
    %3407 = vmatprep.subr.mxu0 %v209
    %3408 = vmatpush1.msra.mxu0 %v208
    %3409 = vmatprep.subr.mxu0 0.0
    %3410 = vmatpush1.msra.mxu0 0.0
    %3411 = vmatprep.subr.mxu0 0.0
    %3412 = vmatpush1.msra.mxu0 0.0
    %3413 = vmatprep.subr.mxu0 0.0
    %3414 = vmatpush1.msra.mxu0 0.0
    %3415 = vmatprep.subr.mxu0 0.0
    %3416 = vmatpush1.msra.mxu0 0.0
    %3417 = vmatprep.subr.mxu0 0.0
    %3418 = vmatpush1.msra.mxu0 0.0
    %3419 = vmatprep.subr.mxu0 0.0
    %3420 = vmatpush1.msra.mxu0 0.0
    %3421 = vmatprep.subr.mxu0 0.0
    %3422 = vmatpush1.msra.mxu0 0.0
    %3423 = vmatprep.subr.mxu0 0.0
    %3424 = vmatpush1.msra.mxu0 0.0
    %3425 = vmatprep.subr.mxu0 0.0
    %3426 = vmatpush1.msra.mxu0 0.0
    %3427 = vmatprep.subr.mxu0 0.0
    %3428 = vmatpush1.msra.mxu0 0.0
    %3429 = vmatprep.subr.mxu0 0.0
    %3430 = vmatpush1.msra.mxu0 0.0
    %3431 = vmatprep.subr.mxu0 0.0
    %3432 = vmatpush1.msra.mxu0 0.0
    %3433 = vmatprep.subr.mxu0 0.0
    %3434 = vmatpush1.msra.mxu0 0.0
    %3435 = vmatprep.subr.mxu0 0.0
    %3436 = vmatpush1.msra.mxu0 0.0
    %3437 = vmatprep.subr.mxu0 0.0
    %3438 = vmatpush1.msra.mxu0 0.0
    %3439 = vmatprep.subr.mxu0 0.0
    %3440 = vmatpush1.msra.mxu0 0.0
    %3441 = vmatprep.mubr.f32.mxu0 0.0
    %3442 = vmatmul.mubr.f32.gmra.mrb[0].mxu0 %v2981
    %v3443 = vpop.f32.mrb[0].mxu0
    %v3444 = vadd.f32 0.0, %v3443
    %v3445 = vpop.f32.mrb[0].mxu0
    %v3446 = vadd.f32 0.0, %v3445
    %3447 = vdwg.mxu0
    %v3448 = vadd.f32 %v3302, %v3373
    %v3449 = vadd.f32 %v3303, %v3375
    %v3450 = vadd.f32 %v3304, %v3444
    %v3451 = vadd.f32 %v3305, %v3446
    %v3452 = vsub.f32 0.0, %v3448
    %v3453 = vmul.f32 %v3452, 1.442695
    %v3454 = vpow.pop %v3453
    %v3455 = vadd.f32 %v3454, 1.0
    %v3456 = vrcp.pop %v3455
    %v3457 = vsub.f32 0.0, %v3449
    %v3458 = vmul.f32 %v3457, 1.442695
    %v3459 = vpow.pop %v3458
    %v3460 = vadd.f32 %v3459, 1.0
    %v3461 = vrcp.pop %v3460
    %v3462 = vtanh.pop %v3450
    %v3463 = vsub.f32 0.0, %v3451
    %v3464 = vmul.f32 %v3463, 1.442695
    %v3465 = vpow.pop %v3464
    %v3466 = vadd.f32 %v3465, 1.0
    %v3467 = vrcp.pop %v3466
    %v3468 = vmul.f32 %v3461, %v2979
    %v3469 = vmul.f32 %v3456, %v3462
    %v3470 = vadd.f32 %v3468, %v3469
    %v3471 = vtanh.pop %v3470
    %v3472 = vmul.f32 %v3467, %v3471
    %3473 = vmatprep.subr.mxu0 %v442
    %3474 = vmatpush1.msra.mxu0 %v441
    %3475 = vmatprep.subr.mxu0 %v446
    %3476 = vmatpush1.msra.mxu0 %v445
    %3477 = vmatprep.subr.mxu0 %v450
    %3478 = vmatpush1.msra.mxu0 %v449
    %3479 = vmatprep.subr.mxu0 %v454
    %3480 = vmatpush1.msra.mxu0 %v453
    %3481 = vmatprep.subr.mxu0 %v458
    %3482 = vmatpush1.msra.mxu0 %v457
    %3483 = vmatprep.subr.mxu0 %v462
    %3484 = vmatpush1.msra.mxu0 %v461
    %3485 = vmatprep.subr.mxu0 %v466
    %3486 = vmatpush1.msra.mxu0 %v465
    %3487 = vmatprep.subr.mxu0 %v470
    %3488 = vmatpush1.msra.mxu0 %v469
    %3489 = vmatprep.subr.mxu0 %v474
    %3490 = vmatpush1.msra.mxu0 %v473
    %3491 = vmatprep.subr.mxu0 %v478
    %3492 = vmatpush1.msra.mxu0 %v477
    %3493 = vmatprep.subr.mxu0 %v482
    %3494 = vmatpush1.msra.mxu0 %v481
    %3495 = vmatprep.subr.mxu0 %v486
    %3496 = vmatpush1.msra.mxu0 %v485
    %3497 = vmatprep.subr.mxu0 %v490
    %3498 = vmatpush1.msra.mxu0 %v489
    %3499 = vmatprep.subr.mxu0 %v494
    %3500 = vmatpush1.msra.mxu0 %v493
    %3501 = vmatprep.subr.mxu0 %v498
    %3502 = vmatpush1.msra.mxu0 %v497
    %3503 = vmatprep.subr.mxu0 %v502
    %3504 = vmatpush1.msra.mxu0 %v501
    %3505 = vmatprep.subr.mxu0 0.0
    %3506 = vmatpush1.msra.mxu0 0.0
    %3507 = vmatprep.subr.mxu0 0.0
    %3508 = vmatpush1.msra.mxu0 0.0
    %3509 = vmatprep.subr.mxu0 0.0
    %3510 = vmatpush1.msra.mxu0 0.0
    %3511 = vmatprep.subr.mxu0 0.0
    %3512 = vmatpush1.msra.mxu0 0.0
    %3513 = vmatprep.subr.mxu0 0.0
    %3514 = vmatpush1.msra.mxu0 0.0
    %3515 = vmatprep.subr.mxu0 0.0
    %3516 = vmatpush1.msra.mxu0 0.0
    %3517 = vmatprep.subr.mxu0 0.0
    %3518 = vmatpush1.msra.mxu0 0.0
    %3519 = vmatprep.subr.mxu0 0.0
    %3520 = vmatpush1.msra.mxu0 0.0
    %3521 = vmatprep.subr.mxu0 0.0
    %3522 = vmatpush1.msra.mxu0 0.0
    %3523 = vmatprep.subr.mxu0 0.0
    %3524 = vmatpush1.msra.mxu0 0.0
    %3525 = vmatprep.subr.mxu0 0.0
    %3526 = vmatpush1.msra.mxu0 0.0
    %3527 = vmatprep.subr.mxu0 0.0
    %3528 = vmatpush1.msra.mxu0 0.0
    %3529 = vmatprep.subr.mxu0 0.0
    %3530 = vmatpush1.msra.mxu0 0.0
    %3531 = vmatprep.subr.mxu0 0.0
    %3532 = vmatpush1.msra.mxu0 0.0
    %3533 = vmatprep.subr.mxu0 0.0
    %3534 = vmatpush1.msra.mxu0 0.0
    %3535 = vmatprep.subr.mxu0 0.0
    %3536 = vmatpush1.msra.mxu0 0.0
    %3537 = vmatprep.mubr.f32.mxu0 0.0
    %3538 = vmatmul.mubr.f32.gmra.mrb[0].mxu0 %v3290
    %v3539 = vpop.f32.mrb[0].mxu0
    %v3540 = vadd.f32 0.0, %v3539
    %v3541 = vpop.f32.mrb[0].mxu0
    %v3542 = vadd.f32 0.0, %v3541
    %3543 = vdwg.mxu0
    %3544 = vmatprep.subr.mxu0 %v444
    %3545 = vmatpush1.msra.mxu0 %v443
    %3546 = vmatprep.subr.mxu0 %v448
    %3547 = vmatpush1.msra.mxu0 %v447
    %3548 = vmatprep.subr.mxu0 %v452
    %3549 = vmatpush1.msra.mxu0 %v451
    %3550 = vmatprep.subr.mxu0 %v456
    %3551 = vmatpush1.msra.mxu0 %v455
    %3552 = vmatprep.subr.mxu0 %v460
    %3553 = vmatpush1.msra.mxu0 %v459
    %3554 = vmatprep.subr.mxu0 %v464
    %3555 = vmatpush1.msra.mxu0 %v463
    %3556 = vmatprep.subr.mxu0 %v468
    %3557 = vmatpush1.msra.mxu0 %v467
    %3558 = vmatprep.subr.mxu0 %v472
    %3559 = vmatpush1.msra.mxu0 %v471
    %3560 = vmatprep.subr.mxu0 %v476
    %3561 = vmatpush1.msra.mxu0 %v475
    %3562 = vmatprep.subr.mxu0 %v480
    %3563 = vmatpush1.msra.mxu0 %v479
    %3564 = vmatprep.subr.mxu0 %v484
    %3565 = vmatpush1.msra.mxu0 %v483
    %3566 = vmatprep.subr.mxu0 %v488
    %3567 = vmatpush1.msra.mxu0 %v487
    %3568 = vmatprep.subr.mxu0 %v492
    %3569 = vmatpush1.msra.mxu0 %v491
    %3570 = vmatprep.subr.mxu0 %v496
    %3571 = vmatpush1.msra.mxu0 %v495
    %3572 = vmatprep.subr.mxu0 %v500
    %3573 = vmatpush1.msra.mxu0 %v499
    %3574 = vmatprep.subr.mxu0 %v504
    %3575 = vmatpush1.msra.mxu0 %v503
    %3576 = vmatprep.subr.mxu0 0.0
    %3577 = vmatpush1.msra.mxu0 0.0
    %3578 = vmatprep.subr.mxu0 0.0
    %3579 = vmatpush1.msra.mxu0 0.0
    %3580 = vmatprep.subr.mxu0 0.0
    %3581 = vmatpush1.msra.mxu0 0.0
    %3582 = vmatprep.subr.mxu0 0.0
    %3583 = vmatpush1.msra.mxu0 0.0
    %3584 = vmatprep.subr.mxu0 0.0
    %3585 = vmatpush1.msra.mxu0 0.0
    %3586 = vmatprep.subr.mxu0 0.0
    %3587 = vmatpush1.msra.mxu0 0.0
    %3588 = vmatprep.subr.mxu0 0.0
    %3589 = vmatpush1.msra.mxu0 0.0
    %3590 = vmatprep.subr.mxu0 0.0
    %3591 = vmatpush1.msra.mxu0 0.0
    %3592 = vmatprep.subr.mxu0 0.0
    %3593 = vmatpush1.msra.mxu0 0.0
    %3594 = vmatprep.subr.mxu0 0.0
    %3595 = vmatpush1.msra.mxu0 0.0
    %3596 = vmatprep.subr.mxu0 0.0
    %3597 = vmatpush1.msra.mxu0 0.0
    %3598 = vmatprep.subr.mxu0 0.0
    %3599 = vmatpush1.msra.mxu0 0.0
    %3600 = vmatprep.subr.mxu0 0.0
    %3601 = vmatpush1.msra.mxu0 0.0
    %3602 = vmatprep.subr.mxu0 0.0
    %3603 = vmatpush1.msra.mxu0 0.0
    %3604 = vmatprep.subr.mxu0 0.0
    %3605 = vmatpush1.msra.mxu0 0.0
    %3606 = vmatprep.subr.mxu0 0.0
    %3607 = vmatpush1.msra.mxu0 0.0
    %3608 = vmatprep.mubr.f32.mxu0 0.0
    %3609 = vmatmul.mubr.f32.gmra.mrb[0].mxu0 %v3290
    %v3610 = vpop.f32.mrb[0].mxu0
    %v3611 = vadd.f32 0.0, %v3610
    %v3612 = vpop.f32.mrb[0].mxu0
    %v3613 = vadd.f32 0.0, %v3612
    %3614 = vdwg.mxu0
    %3615 = vmatprep.subr.mxu0 %v378
    %3616 = vmatpush1.msra.mxu0 %v377
    %3617 = vmatprep.subr.mxu0 %v382
    %3618 = vmatpush1.msra.mxu0 %v381
    %3619 = vmatprep.subr.mxu0 %v386
    %3620 = vmatpush1.msra.mxu0 %v385
    %3621 = vmatprep.subr.mxu0 %v390
    %3622 = vmatpush1.msra.mxu0 %v389
    %3623 = vmatprep.subr.mxu0 %v394
    %3624 = vmatpush1.msra.mxu0 %v393
    %3625 = vmatprep.subr.mxu0 %v398
    %3626 = vmatpush1.msra.mxu0 %v397
    %3627 = vmatprep.subr.mxu0 %v402
    %3628 = vmatpush1.msra.mxu0 %v401
    %3629 = vmatprep.subr.mxu0 %v406
    %3630 = vmatpush1.msra.mxu0 %v405
    %3631 = vmatprep.subr.mxu0 %v410
    %3632 = vmatpush1.msra.mxu0 %v409
    %3633 = vmatprep.subr.mxu0 %v414
    %3634 = vmatpush1.msra.mxu0 %v413
    %3635 = vmatprep.subr.mxu0 %v418
    %3636 = vmatpush1.msra.mxu0 %v417
    %3637 = vmatprep.subr.mxu0 %v422
    %3638 = vmatpush1.msra.mxu0 %v421
    %3639 = vmatprep.subr.mxu0 %v426
    %3640 = vmatpush1.msra.mxu0 %v425
    %3641 = vmatprep.subr.mxu0 %v430
    %3642 = vmatpush1.msra.mxu0 %v429
    %3643 = vmatprep.subr.mxu0 %v434
    %3644 = vmatpush1.msra.mxu0 %v433
    %3645 = vmatprep.subr.mxu0 %v438
    %3646 = vmatpush1.msra.mxu0 %v437
    %3647 = vmatprep.subr.mxu0 0.0
    %3648 = vmatpush1.msra.mxu0 0.0
    %3649 = vmatprep.subr.mxu0 0.0
    %3650 = vmatpush1.msra.mxu0 0.0
    %3651 = vmatprep.subr.mxu0 0.0
    %3652 = vmatpush1.msra.mxu0 0.0
    %3653 = vmatprep.subr.mxu0 0.0
    %3654 = vmatpush1.msra.mxu0 0.0
    %3655 = vmatprep.subr.mxu0 0.0
    %3656 = vmatpush1.msra.mxu0 0.0
    %3657 = vmatprep.subr.mxu0 0.0
    %3658 = vmatpush1.msra.mxu0 0.0
    %3659 = vmatprep.subr.mxu0 0.0
    %3660 = vmatpush1.msra.mxu0 0.0
    %3661 = vmatprep.subr.mxu0 0.0
    %3662 = vmatpush1.msra.mxu0 0.0
    %3663 = vmatprep.subr.mxu0 0.0
    %3664 = vmatpush1.msra.mxu0 0.0
    %3665 = vmatprep.subr.mxu0 0.0
    %3666 = vmatpush1.msra.mxu0 0.0
    %3667 = vmatprep.subr.mxu0 0.0
    %3668 = vmatpush1.msra.mxu0 0.0
    %3669 = vmatprep.subr.mxu0 0.0
    %3670 = vmatpush1.msra.mxu0 0.0
    %3671 = vmatprep.subr.mxu0 0.0
    %3672 = vmatpush1.msra.mxu0 0.0
    %3673 = vmatprep.subr.mxu0 0.0
    %3674 = vmatpush1.msra.mxu0 0.0
    %3675 = vmatprep.subr.mxu0 0.0
    %3676 = vmatpush1.msra.mxu0 0.0
    %3677 = vmatprep.subr.mxu0 0.0
    %3678 = vmatpush1.msra.mxu0 0.0
    %3679 = vmatprep.mubr.f32.mxu0 0.0
    %3680 = vmatmul.mubr.f32.gmra.mrb[0].mxu0 %v3472
    %v3681 = vpop.f32.mrb[0].mxu0
    %v3682 = vadd.f32 %v3540, %v3681
    %v3683 = vpop.f32.mrb[0].mxu0
    %v3684 = vadd.f32 %v3542, %v3683
    %3685 = vdwg.mxu0
    %3686 = vmatprep.subr.mxu0 %v380
    %3687 = vmatpush1.msra.mxu0 %v379
    %3688 = vmatprep.subr.mxu0 %v384
    %3689 = vmatpush1.msra.mxu0 %v383
    %3690 = vmatprep.subr.mxu0 %v388
    %3691 = vmatpush1.msra.mxu0 %v387
    %3692 = vmatprep.subr.mxu0 %v392
    %3693 = vmatpush1.msra.mxu0 %v391
    %3694 = vmatprep.subr.mxu0 %v396
    %3695 = vmatpush1.msra.mxu0 %v395
    %3696 = vmatprep.subr.mxu0 %v400
    %3697 = vmatpush1.msra.mxu0 %v399
    %3698 = vmatprep.subr.mxu0 %v404
    %3699 = vmatpush1.msra.mxu0 %v403
    %3700 = vmatprep.subr.mxu0 %v408
    %3701 = vmatpush1.msra.mxu0 %v407
    %3702 = vmatprep.subr.mxu0 %v412
    %3703 = vmatpush1.msra.mxu0 %v411
    %3704 = vmatprep.subr.mxu0 %v416
    %3705 = vmatpush1.msra.mxu0 %v415
    %3706 = vmatprep.subr.mxu0 %v420
    %3707 = vmatpush1.msra.mxu0 %v419
    %3708 = vmatprep.subr.mxu0 %v424
    %3709 = vmatpush1.msra.mxu0 %v423
    %3710 = vmatprep.subr.mxu0 %v428
    %3711 = vmatpush1.msra.mxu0 %v427
    %3712 = vmatprep.subr.mxu0 %v432
    %3713 = vmatpush1.msra.mxu0 %v431
    %3714 = vmatprep.subr.mxu0 %v436
    %3715 = vmatpush1.msra.mxu0 %v435
    %3716 = vmatprep.subr.mxu0 %v440
    %3717 = vmatpush1.msra.mxu0 %v439
    %3718 = vmatprep.subr.mxu0 0.0
    %3719 = vmatpush1.msra.mxu0 0.0
    %3720 = vmatprep.subr.mxu0 0.0
    %3721 = vmatpush1.msra.mxu0 0.0
    %3722 = vmatprep.subr.mxu0 0.0
    %3723 = vmatpush1.msra.mxu0 0.0
    %3724 = vmatprep.subr.mxu0 0.0
    %3725 = vmatpush1.msra.mxu0 0.0
    %3726 = vmatprep.subr.mxu0 0.0
    %3727 = vmatpush1.msra.mxu0 0.0
    %3728 = vmatprep.subr.mxu0 0.0
    %3729 = vmatpush1.msra.mxu0 0.0
    %3730 = vmatprep.subr.mxu0 0.0
    %3731 = vmatpush1.msra.mxu0 0.0
    %3732 = vmatprep.subr.mxu0 0.0
    %3733 = vmatpush1.msra.mxu0 0.0
    %3734 = vmatprep.subr.mxu0 0.0
    %3735 = vmatpush1.msra.mxu0 0.0
    %3736 = vmatprep.subr.mxu0 0.0
    %3737 = vmatpush1.msra.mxu0 0.0
    %3738 = vmatprep.subr.mxu0 0.0
    %3739 = vmatpush1.msra.mxu0 0.0
    %3740 = vmatprep.subr.mxu0 0.0
    %3741 = vmatpush1.msra.mxu0 0.0
    %3742 = vmatprep.subr.mxu0 0.0
    %3743 = vmatpush1.msra.mxu0 0.0
    %3744 = vmatprep.subr.mxu0 0.0
    %3745 = vmatpush1.msra.mxu0 0.0
    %3746 = vmatprep.subr.mxu0 0.0
    %3747 = vmatpush1.msra.mxu0 0.0
    %3748 = vmatprep.subr.mxu0 0.0
    %3749 = vmatpush1.msra.mxu0 0.0
    %3750 = vmatprep.mubr.f32.mxu0 0.0
    %3751 = vmatmul.mubr.f32.gmra.mrb[0].mxu0 %v3472
    %v3752 = vpop.f32.mrb[0].mxu0
    %v3753 = vadd.f32 %v3611, %v3752
    %v3754 = vpop.f32.mrb[0].mxu0
    %v3755 = vadd.f32 %v3613, %v3754
    %3756 = vdwg.mxu0
    %v3757 = vadd.f32 %v3682, %v794
    %v3758 = vadd.f32 %v3684, %v798
    %v3759 = vadd.f32 %v3753, %v802
    %v3760 = vadd.f32 %v3755, %v806
    %v3761 = vsub.f32 0.0, %v3757
    %v3762 = vmul.f32 %v3761, 1.442695
    %v3763 = vpow.pop %v3762
    %v3764 = vadd.f32 %v3763, 1.0
    %v3765 = vrcp.pop %v3764
    %v3766 = vsub.f32 0.0, %v3758
    %v3767 = vmul.f32 %v3766, 1.442695
    %v3768 = vpow.pop %v3767
    %v3769 = vadd.f32 %v3768, 1.0
    %v3770 = vrcp.pop %v3769
    %v3771 = vtanh.pop %v3759
    %v3772 = vsub.f32 0.0, %v3760
    %v3773 = vmul.f32 %v3772, 1.442695
    %v3774 = vpow.pop %v3773
    %v3775 = vadd.f32 %v3774, 1.0
    %v3776 = vrcp.pop %v3775
    %v3777 = vmul.f32 %v3770, %v3288
    %v3778 = vmul.f32 %v3765, %v3771
    %v3779 = vadd.f32 %v3777, %v3778
    %v3780 = vtanh.pop %v3779
    %v3781 = vmul.f32 %v3776, %v3780
    %s3782 = scalar_lea.vmem %s0, 56
    %v3783 = vld [vmem:[%s3782] sm:$0xff]
    %3785 = vset.pattern.permute.xlu0 0
    %3786 = vperm.xlu0 %3785, %v3783
    %v3787 = vpop.permute.xlu0 %3786
    %v3789 = vmul.f32 %v3787, %v99
    %v3790 = vmul.f32 %v3787, %v103
    %v3791 = vmul.f32 %v3787, %v107
    %v3792 = vmul.f32 %v3787, %v111
    %v3793 = vadd.f32 %v3789, %v125
    %v3794 = vadd.f32 %v3790, %v129
    %v3795 = vadd.f32 %v3791, %v133
    %v3796 = vadd.f32 %v3792, %v137
    %3797 = vmatprep.subr.mxu0 %v147
    %3798 = vmatpush1.msra.mxu0 %v146
    %3799 = vmatprep.subr.mxu0 %v151
    %3800 = vmatpush1.msra.mxu0 %v150
    %3801 = vmatprep.subr.mxu0 %v155
    %3802 = vmatpush1.msra.mxu0 %v154
    %3803 = vmatprep.subr.mxu0 %v159
    %3804 = vmatpush1.msra.mxu0 %v158
    %3805 = vmatprep.subr.mxu0 %v163
    %3806 = vmatpush1.msra.mxu0 %v162
    %3807 = vmatprep.subr.mxu0 %v167
    %3808 = vmatpush1.msra.mxu0 %v166
    %3809 = vmatprep.subr.mxu0 %v171
    %3810 = vmatpush1.msra.mxu0 %v170
    %3811 = vmatprep.subr.mxu0 %v175
    %3812 = vmatpush1.msra.mxu0 %v174
    %3813 = vmatprep.subr.mxu0 %v179
    %3814 = vmatpush1.msra.mxu0 %v178
    %3815 = vmatprep.subr.mxu0 %v183
    %3816 = vmatpush1.msra.mxu0 %v182
    %3817 = vmatprep.subr.mxu0 %v187
    %3818 = vmatpush1.msra.mxu0 %v186
    %3819 = vmatprep.subr.mxu0 %v191
    %3820 = vmatpush1.msra.mxu0 %v190
    %3821 = vmatprep.subr.mxu0 %v195
    %3822 = vmatpush1.msra.mxu0 %v194
    %3823 = vmatprep.subr.mxu0 %v199
    %3824 = vmatpush1.msra.mxu0 %v198
    %3825 = vmatprep.subr.mxu0 %v203
    %3826 = vmatpush1.msra.mxu0 %v202
    %3827 = vmatprep.subr.mxu0 %v207
    %3828 = vmatpush1.msra.mxu0 %v206
    %3829 = vmatprep.subr.mxu0 0.0
    %3830 = vmatpush1.msra.mxu0 0.0
    %3831 = vmatprep.subr.mxu0 0.0
    %3832 = vmatpush1.msra.mxu0 0.0
    %3833 = vmatprep.subr.mxu0 0.0
    %3834 = vmatpush1.msra.mxu0 0.0
    %3835 = vmatprep.subr.mxu0 0.0
    %3836 = vmatpush1.msra.mxu0 0.0
    %3837 = vmatprep.subr.mxu0 0.0
    %3838 = vmatpush1.msra.mxu0 0.0
    %3839 = vmatprep.subr.mxu0 0.0
    %3840 = vmatpush1.msra.mxu0 0.0
    %3841 = vmatprep.subr.mxu0 0.0
    %3842 = vmatpush1.msra.mxu0 0.0
    %3843 = vmatprep.subr.mxu0 0.0
    %3844 = vmatpush1.msra.mxu0 0.0
    %3845 = vmatprep.subr.mxu0 0.0
    %3846 = vmatpush1.msra.mxu0 0.0
    %3847 = vmatprep.subr.mxu0 0.0
    %3848 = vmatpush1.msra.mxu0 0.0
    %3849 = vmatprep.subr.mxu0 0.0
    %3850 = vmatpush1.msra.mxu0 0.0
    %3851 = vmatprep.subr.mxu0 0.0
    %3852 = vmatpush1.msra.mxu0 0.0
    %3853 = vmatprep.subr.mxu0 0.0
    %3854 = vmatpush1.msra.mxu0 0.0
    %3855 = vmatprep.subr.mxu0 0.0
    %3856 = vmatpush1.msra.mxu0 0.0
    %3857 = vmatprep.subr.mxu0 0.0
    %3858 = vmatpush1.msra.mxu0 0.0
    %3859 = vmatprep.subr.mxu0 0.0
    %3860 = vmatpush1.msra.mxu0 0.0
    %3861 = vmatprep.mubr.f32.mxu0 0.0
    %3862 = vmatmul.mubr.f32.gmra.mrb[0].mxu0 %v3472
    %v3863 = vpop.f32.mrb[0].mxu0
    %v3864 = vadd.f32 0.0, %v3863
    %v3865 = vpop.f32.mrb[0].mxu0
    %v3866 = vadd.f32 0.0, %v3865
    %3867 = vdwg.mxu0
    %3868 = vmatprep.subr.mxu0 %v149
    %3869 = vmatpush1.msra.mxu0 %v148
    %3870 = vmatprep.subr.mxu0 %v153
    %3871 = vmatpush1.msra.mxu0 %v152
    %3872 = vmatprep.subr.mxu0 %v157
    %3873 = vmatpush1.msra.mxu0 %v156
    %3874 = vmatprep.subr.mxu0 %v161
    %3875 = vmatpush1.msra.mxu0 %v160
    %3876 = vmatprep.subr.mxu0 %v165
    %3877 = vmatpush1.msra.mxu0 %v164
    %3878 = vmatprep.subr.mxu0 %v169
    %3879 = vmatpush1.msra.mxu0 %v168
    %3880 = vmatprep.subr.mxu0 %v173
    %3881 = vmatpush1.msra.mxu0 %v172
    %3882 = vmatprep.subr.mxu0 %v177
    %3883 = vmatpush1.msra.mxu0 %v176
    %3884 = vmatprep.subr.mxu0 %v181
    %3885 = vmatpush1.msra.mxu0 %v180
    %3886 = vmatprep.subr.mxu0 %v185
    %3887 = vmatpush1.msra.mxu0 %v184
    %3888 = vmatprep.subr.mxu0 %v189
    %3889 = vmatpush1.msra.mxu0 %v188
    %3890 = vmatprep.subr.mxu0 %v193
    %3891 = vmatpush1.msra.mxu0 %v192
    %3892 = vmatprep.subr.mxu0 %v197
    %3893 = vmatpush1.msra.mxu0 %v196
    %3894 = vmatprep.subr.mxu0 %v201
    %3895 = vmatpush1.msra.mxu0 %v200
    %3896 = vmatprep.subr.mxu0 %v205
    %3897 = vmatpush1.msra.mxu0 %v204
    %3898 = vmatprep.subr.mxu0 %v209
    %3899 = vmatpush1.msra.mxu0 %v208
    %3900 = vmatprep.subr.mxu0 0.0
    %3901 = vmatpush1.msra.mxu0 0.0
    %3902 = vmatprep.subr.mxu0 0.0
    %3903 = vmatpush1.msra.mxu0 0.0
    %3904 = vmatprep.subr.mxu0 0.0
    %3905 = vmatpush1.msra.mxu0 0.0
    %3906 = vmatprep.subr.mxu0 0.0
    %3907 = vmatpush1.msra.mxu0 0.0
    %3908 = vmatprep.subr.mxu0 0.0
    %3909 = vmatpush1.msra.mxu0 0.0
    %3910 = vmatprep.subr.mxu0 0.0
    %3911 = vmatpush1.msra.mxu0 0.0
    %3912 = vmatprep.subr.mxu0 0.0
    %3913 = vmatpush1.msra.mxu0 0.0
    %3914 = vmatprep.subr.mxu0 0.0
    %3915 = vmatpush1.msra.mxu0 0.0
    %3916 = vmatprep.subr.mxu0 0.0
    %3917 = vmatpush1.msra.mxu0 0.0
    %3918 = vmatprep.subr.mxu0 0.0
    %3919 = vmatpush1.msra.mxu0 0.0
    %3920 = vmatprep.subr.mxu0 0.0
    %3921 = vmatpush1.msra.mxu0 0.0
    %3922 = vmatprep.subr.mxu0 0.0
    %3923 = vmatpush1.msra.mxu0 0.0
    %3924 = vmatprep.subr.mxu0 0.0
    %3925 = vmatpush1.msra.mxu0 0.0
    %3926 = vmatprep.subr.mxu0 0.0
    %3927 = vmatpush1.msra.mxu0 0.0
    %3928 = vmatprep.subr.mxu0 0.0
    %3929 = vmatpush1.msra.mxu0 0.0
    %3930 = vmatprep.subr.mxu0 0.0
    %3931 = vmatpush1.msra.mxu0 0.0
    %3932 = vmatprep.mubr.f32.mxu0 0.0
    %3933 = vmatmul.mubr.f32.gmra.mrb[0].mxu0 %v3472
    %v3934 = vpop.f32.mrb[0].mxu0
    %v3935 = vadd.f32 0.0, %v3934
    %v3936 = vpop.f32.mrb[0].mxu0
    %v3937 = vadd.f32 0.0, %v3936
    %3938 = vdwg.mxu0
    %v3939 = vadd.f32 %v3793, %v3864
    %v3940 = vadd.f32 %v3794, %v3866
    %v3941 = vadd.f32 %v3795, %v3935
    %v3942 = vadd.f32 %v3796, %v3937
    %v3943 = vsub.f32 0.0, %v3939
    %v3944 = vmul.f32 %v3943, 1.442695
    %v3945 = vpow.pop %v3944
    %v3946 = vadd.f32 %v3945, 1.0
    %v3947 = vrcp.pop %v3946
    %v3948 = vsub.f32 0.0, %v3940
    %v3949 = vmul.f32 %v3948, 1.442695
    %v3950 = vpow.pop %v3949
    %v3951 = vadd.f32 %v3950, 1.0
    %v3952 = vrcp.pop %v3951
    %v3953 = vtanh.pop %v3941
    %v3954 = vsub.f32 0.0, %v3942
    %v3955 = vmul.f32 %v3954, 1.442695
    %v3956 = vpow.pop %v3955
    %v3957 = vadd.f32 %v3956, 1.0
    %v3958 = vrcp.pop %v3957
    %v3959 = vmul.f32 %v3952, %v3470
    %v3960 = vmul.f32 %v3947, %v3953
    %v3961 = vadd.f32 %v3959, %v3960
    %v3962 = vtanh.pop %v3961
    %v3963 = vmul.f32 %v3958, %v3962
    %3964 = vmatprep.subr.mxu0 %v442
    %3965 = vmatpush1.msra.mxu0 %v441
    %3966 = vmatprep.subr.mxu0 %v446
    %3967 = vmatpush1.msra.mxu0 %v445
    %3968 = vmatprep.subr.mxu0 %v450
    %3969 = vmatpush1.msra.mxu0 %v449
    %3970 = vmatprep.subr.mxu0 %v454
    %3971 = vmatpush1.msra.mxu0 %v453
    %3972 = vmatprep.subr.mxu0 %v458
    %3973 = vmatpush1.msra.mxu0 %v457
    %3974 = vmatprep.subr.mxu0 %v462
    %3975 = vmatpush1.msra.mxu0 %v461
    %3976 = vmatprep.subr.mxu0 %v466
    %3977 = vmatpush1.msra.mxu0 %v465
    %3978 = vmatprep.subr.mxu0 %v470
    %3979 = vmatpush1.msra.mxu0 %v469
    %3980 = vmatprep.subr.mxu0 %v474
    %3981 = vmatpush1.msra.mxu0 %v473
    %3982 = vmatprep.subr.mxu0 %v478
    %3983 = vmatpush1.msra.mxu0 %v477
    %3984 = vmatprep.subr.mxu0 %v482
    %3985 = vmatpush1.msra.mxu0 %v481
    %3986 = vmatprep.subr.mxu0 %v486
    %3987 = vmatpush1.msra.mxu0 %v485
    %3988 = vmatprep.subr.mxu0 %v490
    %3989 = vmatpush1.msra.mxu0 %v489
    %3990 = vmatprep.subr.mxu0 %v494
    %3991 = vmatpush1.msra.mxu0 %v493
    %3992 = vmatprep.subr.mxu0 %v498
    %3993 = vmatpush1.msra.mxu0 %v497
    %3994 = vmatprep.subr.mxu0 %v502
    %3995 = vmatpush1.msra.mxu0 %v501
    %3996 = vmatprep.subr.mxu0 0.0
    %3997 = vmatpush1.msra.mxu0 0.0
    %3998 = vmatprep.subr.mxu0 0.0
    %3999 = vmatpush1.msra.mxu0 0.0
    %4000 = vmatprep.subr.mxu0 0.0
    %4001 = vmatpush1.msra.mxu0 0.0
    %4002 = vmatprep.subr.mxu0 0.0
    %4003 = vmatpush1.msra.mxu0 0.0
    %4004 = vmatprep.subr.mxu0 0.0
    %4005 = vmatpush1.msra.mxu0 0.0
    %4006 = vmatprep.subr.mxu0 0.0
    %4007 = vmatpush1.msra.mxu0 0.0
    %4008 = vmatprep.subr.mxu0 0.0
    %4009 = vmatpush1.msra.mxu0 0.0
    %4010 = vmatprep.subr.mxu0 0.0
    %4011 = vmatpush1.msra.mxu0 0.0
    %4012 = vmatprep.subr.mxu0 0.0
    %4013 = vmatpush1.msra.mxu0 0.0
    %4014 = vmatprep.subr.mxu0 0.0
    %4015 = vmatpush1.msra.mxu0 0.0
    %4016 = vmatprep.subr.mxu0 0.0
    %4017 = vmatpush1.msra.mxu0 0.0
    %4018 = vmatprep.subr.mxu0 0.0
    %4019 = vmatpush1.msra.mxu0 0.0
    %4020 = vmatprep.subr.mxu0 0.0
    %4021 = vmatpush1.msra.mxu0 0.0
    %4022 = vmatprep.subr.mxu0 0.0
    %4023 = vmatpush1.msra.mxu0 0.0
    %4024 = vmatprep.subr.mxu0 0.0
    %4025 = vmatpush1.msra.mxu0 0.0
    %4026 = vmatprep.subr.mxu0 0.0
    %4027 = vmatpush1.msra.mxu0 0.0
    %4028 = vmatprep.mubr.f32.mxu0 0.0
    %4029 = vmatmul.mubr.f32.gmra.mrb[0].mxu0 %v3781
    %v4030 = vpop.f32.mrb[0].mxu0
    %v4031 = vadd.f32 0.0, %v4030
    %v4032 = vpop.f32.mrb[0].mxu0
    %v4033 = vadd.f32 0.0, %v4032
    %4034 = vdwg.mxu0
    %4035 = vmatprep.subr.mxu0 %v444
    %4036 = vmatpush1.msra.mxu0 %v443
    %4037 = vmatprep.subr.mxu0 %v448
    %4038 = vmatpush1.msra.mxu0 %v447
    %4039 = vmatprep.subr.mxu0 %v452
    %4040 = vmatpush1.msra.mxu0 %v451
    %4041 = vmatprep.subr.mxu0 %v456
    %4042 = vmatpush1.msra.mxu0 %v455
    %4043 = vmatprep.subr.mxu0 %v460
    %4044 = vmatpush1.msra.mxu0 %v459
    %4045 = vmatprep.subr.mxu0 %v464
    %4046 = vmatpush1.msra.mxu0 %v463
    %4047 = vmatprep.subr.mxu0 %v468
    %4048 = vmatpush1.msra.mxu0 %v467
    %4049 = vmatprep.subr.mxu0 %v472
    %4050 = vmatpush1.msra.mxu0 %v471
    %4051 = vmatprep.subr.mxu0 %v476
    %4052 = vmatpush1.msra.mxu0 %v475
    %4053 = vmatprep.subr.mxu0 %v480
    %4054 = vmatpush1.msra.mxu0 %v479
    %4055 = vmatprep.subr.mxu0 %v484
    %4056 = vmatpush1.msra.mxu0 %v483
    %4057 = vmatprep.subr.mxu0 %v488
    %4058 = vmatpush1.msra.mxu0 %v487
    %4059 = vmatprep.subr.mxu0 %v492
    %4060 = vmatpush1.msra.mxu0 %v491
    %4061 = vmatprep.subr.mxu0 %v496
    %4062 = vmatpush1.msra.mxu0 %v495
    %4063 = vmatprep.subr.mxu0 %v500
    %4064 = vmatpush1.msra.mxu0 %v499
    %4065 = vmatprep.subr.mxu0 %v504
    %4066 = vmatpush1.msra.mxu0 %v503
    %4067 = vmatprep.subr.mxu0 0.0
    %4068 = vmatpush1.msra.mxu0 0.0
    %4069 = vmatprep.subr.mxu0 0.0
    %4070 = vmatpush1.msra.mxu0 0.0
    %4071 = vmatprep.subr.mxu0 0.0
    %4072 = vmatpush1.msra.mxu0 0.0
    %4073 = vmatprep.subr.mxu0 0.0
    %4074 = vmatpush1.msra.mxu0 0.0
    %4075 = vmatprep.subr.mxu0 0.0
    %4076 = vmatpush1.msra.mxu0 0.0
    %4077 = vmatprep.subr.mxu0 0.0
    %4078 = vmatpush1.msra.mxu0 0.0
    %4079 = vmatprep.subr.mxu0 0.0
    %4080 = vmatpush1.msra.mxu0 0.0
    %4081 = vmatprep.subr.mxu0 0.0
    %4082 = vmatpush1.msra.mxu0 0.0
    %4083 = vmatprep.subr.mxu0 0.0
    %4084 = vmatpush1.msra.mxu0 0.0
    %4085 = vmatprep.subr.mxu0 0.0
    %4086 = vmatpush1.msra.mxu0 0.0
    %4087 = vmatprep.subr.mxu0 0.0
    %4088 = vmatpush1.msra.mxu0 0.0
    %4089 = vmatprep.subr.mxu0 0.0
    %4090 = vmatpush1.msra.mxu0 0.0
    %4091 = vmatprep.subr.mxu0 0.0
    %4092 = vmatpush1.msra.mxu0 0.0
    %4093 = vmatprep.subr.mxu0 0.0
    %4094 = vmatpush1.msra.mxu0 0.0
    %4095 = vmatprep.subr.mxu0 0.0
    %4096 = vmatpush1.msra.mxu0 0.0
    %4097 = vmatprep.subr.mxu0 0.0
    %4098 = vmatpush1.msra.mxu0 0.0
    %4099 = vmatprep.mubr.f32.mxu0 0.0
    %4100 = vmatmul.mubr.f32.gmra.mrb[0].mxu0 %v3781
    %v4101 = vpop.f32.mrb[0].mxu0
    %v4102 = vadd.f32 0.0, %v4101
    %v4103 = vpop.f32.mrb[0].mxu0
    %v4104 = vadd.f32 0.0, %v4103
    %4105 = vdwg.mxu0
    %4106 = vmatprep.subr.mxu0 %v378
    %4107 = vmatpush1.msra.mxu0 %v377
    %4108 = vmatprep.subr.mxu0 %v382
    %4109 = vmatpush1.msra.mxu0 %v381
    %4110 = vmatprep.subr.mxu0 %v386
    %4111 = vmatpush1.msra.mxu0 %v385
    %4112 = vmatprep.subr.mxu0 %v390
    %4113 = vmatpush1.msra.mxu0 %v389
    %4114 = vmatprep.subr.mxu0 %v394
    %4115 = vmatpush1.msra.mxu0 %v393
    %4116 = vmatprep.subr.mxu0 %v398
    %4117 = vmatpush1.msra.mxu0 %v397
    %4118 = vmatprep.subr.mxu0 %v402
    %4119 = vmatpush1.msra.mxu0 %v401
    %4120 = vmatprep.subr.mxu0 %v406
    %4121 = vmatpush1.msra.mxu0 %v405
    %4122 = vmatprep.subr.mxu0 %v410
    %4123 = vmatpush1.msra.mxu0 %v409
    %4124 = vmatprep.subr.mxu0 %v414
    %4125 = vmatpush1.msra.mxu0 %v413
    %4126 = vmatprep.subr.mxu0 %v418
    %4127 = vmatpush1.msra.mxu0 %v417
    %4128 = vmatprep.subr.mxu0 %v422
    %4129 = vmatpush1.msra.mxu0 %v421
    %4130 = vmatprep.subr.mxu0 %v426
    %4131 = vmatpush1.msra.mxu0 %v425
    %4132 = vmatprep.subr.mxu0 %v430
    %4133 = vmatpush1.msra.mxu0 %v429
    %4134 = vmatprep.subr.mxu0 %v434
    %4135 = vmatpush1.msra.mxu0 %v433
    %4136 = vmatprep.subr.mxu0 %v438
    %4137 = vmatpush1.msra.mxu0 %v437
    %4138 = vmatprep.subr.mxu0 0.0
    %4139 = vmatpush1.msra.mxu0 0.0
    %4140 = vmatprep.subr.mxu0 0.0
    %4141 = vmatpush1.msra.mxu0 0.0
    %4142 = vmatprep.subr.mxu0 0.0
    %4143 = vmatpush1.msra.mxu0 0.0
    %4144 = vmatprep.subr.mxu0 0.0
    %4145 = vmatpush1.msra.mxu0 0.0
    %4146 = vmatprep.subr.mxu0 0.0
    %4147 = vmatpush1.msra.mxu0 0.0
    %4148 = vmatprep.subr.mxu0 0.0
    %4149 = vmatpush1.msra.mxu0 0.0
    %4150 = vmatprep.subr.mxu0 0.0
    %4151 = vmatpush1.msra.mxu0 0.0
    %4152 = vmatprep.subr.mxu0 0.0
    %4153 = vmatpush1.msra.mxu0 0.0
    %4154 = vmatprep.subr.mxu0 0.0
    %4155 = vmatpush1.msra.mxu0 0.0
    %4156 = vmatprep.subr.mxu0 0.0
    %4157 = vmatpush1.msra.mxu0 0.0
    %4158 = vmatprep.subr.mxu0 0.0
    %4159 = vmatpush1.msra.mxu0 0.0
    %4160 = vmatprep.subr.mxu0 0.0
    %4161 = vmatpush1.msra.mxu0 0.0
    %4162 = vmatprep.subr.mxu0 0.0
    %4163 = vmatpush1.msra.mxu0 0.0
    %4164 = vmatprep.subr.mxu0 0.0
    %4165 = vmatpush1.msra.mxu0 0.0
    %4166 = vmatprep.subr.mxu0 0.0
    %4167 = vmatpush1.msra.mxu0 0.0
    %4168 = vmatprep.subr.mxu0 0.0
    %4169 = vmatpush1.msra.mxu0 0.0
    %4170 = vmatprep.mubr.f32.mxu0 0.0
    %4171 = vmatmul.mubr.f32.gmra.mrb[0].mxu0 %v3963
    %v4172 = vpop.f32.mrb[0].mxu0
    %v4173 = vadd.f32 %v4031, %v4172
    %v4174 = vpop.f32.mrb[0].mxu0
    %v4175 = vadd.f32 %v4033, %v4174
    %4176 = vdwg.mxu0
    %4177 = vmatprep.subr.mxu0 %v380
    %4178 = vmatpush1.msra.mxu0 %v379
    %4179 = vmatprep.subr.mxu0 %v384
    %4180 = vmatpush1.msra.mxu0 %v383
    %4181 = vmatprep.subr.mxu0 %v388
    %4182 = vmatpush1.msra.mxu0 %v387
    %4183 = vmatprep.subr.mxu0 %v392
    %4184 = vmatpush1.msra.mxu0 %v391
    %4185 = vmatprep.subr.mxu0 %v396
    %4186 = vmatpush1.msra.mxu0 %v395
    %4187 = vmatprep.subr.mxu0 %v400
    %4188 = vmatpush1.msra.mxu0 %v399
    %4189 = vmatprep.subr.mxu0 %v404
    %4190 = vmatpush1.msra.mxu0 %v403
    %4191 = vmatprep.subr.mxu0 %v408
    %4192 = vmatpush1.msra.mxu0 %v407
    %4193 = vmatprep.subr.mxu0 %v412
    %4194 = vmatpush1.msra.mxu0 %v411
    %4195 = vmatprep.subr.mxu0 %v416
    %4196 = vmatpush1.msra.mxu0 %v415
    %4197 = vmatprep.subr.mxu0 %v420
    %4198 = vmatpush1.msra.mxu0 %v419
    %4199 = vmatprep.subr.mxu0 %v424
    %4200 = vmatpush1.msra.mxu0 %v423
    %4201 = vmatprep.subr.mxu0 %v428
    %4202 = vmatpush1.msra.mxu0 %v427
    %4203 = vmatprep.subr.mxu0 %v432
    %4204 = vmatpush1.msra.mxu0 %v431
    %4205 = vmatprep.subr.mxu0 %v436
    %4206 = vmatpush1.msra.mxu0 %v435
    %4207 = vmatprep.subr.mxu0 %v440
    %4208 = vmatpush1.msra.mxu0 %v439
    %4209 = vmatprep.subr.mxu0 0.0
    %4210 = vmatpush1.msra.mxu0 0.0
    %4211 = vmatprep.subr.mxu0 0.0
    %4212 = vmatpush1.msra.mxu0 0.0
    %4213 = vmatprep.subr.mxu0 0.0
    %4214 = vmatpush1.msra.mxu0 0.0
    %4215 = vmatprep.subr.mxu0 0.0
    %4216 = vmatpush1.msra.mxu0 0.0
    %4217 = vmatprep.subr.mxu0 0.0
    %4218 = vmatpush1.msra.mxu0 0.0
    %4219 = vmatprep.subr.mxu0 0.0
    %4220 = vmatpush1.msra.mxu0 0.0
    %4221 = vmatprep.subr.mxu0 0.0
    %4222 = vmatpush1.msra.mxu0 0.0
    %4223 = vmatprep.subr.mxu0 0.0
    %4224 = vmatpush1.msra.mxu0 0.0
    %4225 = vmatprep.subr.mxu0 0.0
    %4226 = vmatpush1.msra.mxu0 0.0
    %4227 = vmatprep.subr.mxu0 0.0
    %4228 = vmatpush1.msra.mxu0 0.0
    %4229 = vmatprep.subr.mxu0 0.0
    %4230 = vmatpush1.msra.mxu0 0.0
    %4231 = vmatprep.subr.mxu0 0.0
    %4232 = vmatpush1.msra.mxu0 0.0
    %4233 = vmatprep.subr.mxu0 0.0
    %4234 = vmatpush1.msra.mxu0 0.0
    %4235 = vmatprep.subr.mxu0 0.0
    %4236 = vmatpush1.msra.mxu0 0.0
    %4237 = vmatprep.subr.mxu0 0.0
    %4238 = vmatpush1.msra.mxu0 0.0
    %4239 = vmatprep.subr.mxu0 0.0
    %4240 = vmatpush1.msra.mxu0 0.0
    %4241 = vmatprep.mubr.f32.mxu0 0.0
    %4242 = vmatmul.mubr.f32.gmra.mrb[0].mxu0 %v3963
    %v4243 = vpop.f32.mrb[0].mxu0
    %v4244 = vadd.f32 %v4102, %v4243
    %v4245 = vpop.f32.mrb[0].mxu0
    %v4246 = vadd.f32 %v4104, %v4245
    %4247 = vdwg.mxu0
    %v4248 = vadd.f32 %v4173, %v794
    %v4249 = vadd.f32 %v4175, %v798
    %v4250 = vadd.f32 %v4244, %v802
    %v4251 = vadd.f32 %v4246, %v806
    %v4252 = vsub.f32 0.0, %v4248
    %v4253 = vmul.f32 %v4252, 1.442695
    %v4254 = vpow.pop %v4253
    %v4255 = vadd.f32 %v4254, 1.0
    %v4256 = vrcp.pop %v4255
    %v4257 = vsub.f32 0.0, %v4249
    %v4258 = vmul.f32 %v4257, 1.442695
    %v4259 = vpow.pop %v4258
    %v4260 = vadd.f32 %v4259, 1.0
    %v4261 = vrcp.pop %v4260
    %v4262 = vtanh.pop %v4250
    %v4263 = vsub.f32 0.0, %v4251
    %v4264 = vmul.f32 %v4263, 1.442695
    %v4265 = vpow.pop %v4264
    %v4266 = vadd.f32 %v4265, 1.0
    %v4267 = vrcp.pop %v4266
    %v4268 = vmul.f32 %v4261, %v3779
    %v4269 = vmul.f32 %v4256, %v4262
    %v4270 = vadd.f32 %v4268, %v4269
    %v4271 = vtanh.pop %v4270
    %v4272 = vmul.f32 %v4267, %v4271
    %v4273 = vld [vmem:[#allocation8] sm:$0xff]
    %v4274 = vld [vmem:[#allocation8 + $0x8] sm:$0xff]
    %v4275 = vld [vmem:[#allocation8 + $0x10] sm:$0xff]
    %v4276 = vld [vmem:[#allocation8 + $0x18] sm:$0xff]
    %v4277 = vld [vmem:[#allocation8 + $0x20] sm:$0xff]
    %v4278 = vld [vmem:[#allocation8 + $0x28] sm:$0xff]
    %v4279 = vld [vmem:[#allocation8 + $0x30] sm:$0xff]
    %v4280 = vld [vmem:[#allocation8 + $0x38] sm:$0xff]
    %v4281 = vld [vmem:[#allocation8 + $0x40] sm:$0xff]
    %v4282 = vld [vmem:[#allocation8 + $0x48] sm:$0xff]
    %v4283 = vld [vmem:[#allocation8 + $0x50] sm:$0xff]
    %v4284 = vld [vmem:[#allocation8 + $0x58] sm:$0xff]
    %v4285 = vld [vmem:[#allocation8 + $0x60] sm:$0xff]
    %v4286 = vld [vmem:[#allocation8 + $0x68] sm:$0xff]
    %v4287 = vld [vmem:[#allocation8 + $0x70] sm:$0xff]
    %v4288 = vld [vmem:[#allocation8 + $0x78] sm:$0xff]
    %v4289 = vld [vmem:[%s8] sm:$0x1]
    %v4291 = vlaneseq
    %v4292 = vshrl.u32 %v4291, 7
    %v4293 = vsub.s32 0, %v4292
    %v4294 = vrot.slane %v4289, %v4293
    %4296 = vmatprep.subr.mxu0 0.0
    %4297 = vmatpush1.msra.mxu0 %v4273
    %4298 = vmatprep.subr.mxu0 0.0
    %4299 = vmatpush1.msra.mxu0 %v4274
    %4300 = vmatprep.subr.mxu0 0.0
    %4301 = vmatpush1.msra.mxu0 %v4275
    %4302 = vmatprep.subr.mxu0 0.0
    %4303 = vmatpush1.msra.mxu0 %v4276
    %4304 = vmatprep.subr.mxu0 0.0
    %4305 = vmatpush1.msra.mxu0 %v4277
    %4306 = vmatprep.subr.mxu0 0.0
    %4307 = vmatpush1.msra.mxu0 %v4278
    %4308 = vmatprep.subr.mxu0 0.0
    %4309 = vmatpush1.msra.mxu0 %v4279
    %4310 = vmatprep.subr.mxu0 0.0
    %4311 = vmatpush1.msra.mxu0 %v4280
    %4312 = vmatprep.subr.mxu0 0.0
    %4313 = vmatpush1.msra.mxu0 %v4281
    %4314 = vmatprep.subr.mxu0 0.0
    %4315 = vmatpush1.msra.mxu0 %v4282
    %4316 = vmatprep.subr.mxu0 0.0
    %4317 = vmatpush1.msra.mxu0 %v4283
    %4318 = vmatprep.subr.mxu0 0.0
    %4319 = vmatpush1.msra.mxu0 %v4284
    %4320 = vmatprep.subr.mxu0 0.0
    %4321 = vmatpush1.msra.mxu0 %v4285
    %4322 = vmatprep.subr.mxu0 0.0
    %4323 = vmatpush1.msra.mxu0 %v4286
    %4324 = vmatprep.subr.mxu0 0.0
    %4325 = vmatpush1.msra.mxu0 %v4287
    %4326 = vmatprep.subr.mxu0 0.0
    %4327 = vmatpush1.msra.mxu0 %v4288
    %4328 = vmatprep.subr.mxu0 0.0
    %4329 = vmatpush1.msra.mxu0 0.0
    %4330 = vmatprep.subr.mxu0 0.0
    %4331 = vmatpush1.msra.mxu0 0.0
    %4332 = vmatprep.subr.mxu0 0.0
    %4333 = vmatpush1.msra.mxu0 0.0
    %4334 = vmatprep.subr.mxu0 0.0
    %4335 = vmatpush1.msra.mxu0 0.0
    %4336 = vmatprep.subr.mxu0 0.0
    %4337 = vmatpush1.msra.mxu0 0.0
    %4338 = vmatprep.subr.mxu0 0.0
    %4339 = vmatpush1.msra.mxu0 0.0
    %4340 = vmatprep.subr.mxu0 0.0
    %4341 = vmatpush1.msra.mxu0 0.0
    %4342 = vmatprep.subr.mxu0 0.0
    %4343 = vmatpush1.msra.mxu0 0.0
    %4344 = vmatprep.subr.mxu0 0.0
    %4345 = vmatpush1.msra.mxu0 0.0
    %4346 = vmatprep.subr.mxu0 0.0
    %4347 = vmatpush1.msra.mxu0 0.0
    %4348 = vmatprep.subr.mxu0 0.0
    %4349 = vmatpush1.msra.mxu0 0.0
    %4350 = vmatprep.subr.mxu0 0.0
    %4351 = vmatpush1.msra.mxu0 0.0
    %4352 = vmatprep.subr.mxu0 0.0
    %4353 = vmatpush1.msra.mxu0 0.0
    %4354 = vmatprep.subr.mxu0 0.0
    %4355 = vmatpush1.msra.mxu0 0.0
    %4356 = vmatprep.subr.mxu0 0.0
    %4357 = vmatpush1.msra.mxu0 0.0
    %4358 = vmatprep.subr.mxu0 0.0
    %4359 = vmatpush1.msra.mxu0 0.0
    %4360 = vmatprep.mubr.f32.mxu0 0.0
    %4361 = vmatmul.mubr.f32.gmra.mrb[0].mxu0 %v4272
    %v4362 = vpop.f32.mrb[0].mxu0
    %v4363 = vadd.f32 %v4294, %v4362
    %v4364 = vpop.f32.mrb[0].mxu0
    %4365 = vdwg.mxu0
    %4366 = vst [vmem:[#allocation10] sm:$0xff] %v4363
    // Predicated region
    $region54: #{tpu_custom_call.1} parent=1 // pred_check
      _
    $region55: #{tpu_custom_call.1} parent=1 // pred_check_branch
      %4368 = sbr.rel (0) target = $region57
    $region56: #{tpu_custom_call.1} parent=1 // pred_region
      %s4370 = ssub.s32 128, 128
      %4371 = vsyncadd [#allocation4], %s4370
      %s4373 = sshll.u32 [#allocation10], 4
      %s4374 = int_to_ptr.vmem [resolvable:$true] %s4373
      %4376 = dma.vmem_to_hbm [thread:$0]  %s4374, 128, %s9, [#allocation4]
    $region57: #{tpu_custom_call.1} parent=1 // pred_fallthru
      _
    // Predicated region
    $region58: #{tpu_custom_call.1} parent=1 // pred_check
      _
    $region59: #{tpu_custom_call.1} parent=1 // pred_check_branch
      %4378 = sbr.rel (0) target = $region61
    $region60: #{tpu_custom_call.1} parent=1 // pred_region
      %4379 = dma.done [#allocation4], 128
    $region61: #{tpu_custom_call.1} parent=1 // pred_fallthru
      _
    %4380 = vsyncpa [#allocation3], 1
    %4381 = vsyncpa [#allocation6], 1
    %4382 = vsyncpa [#allocation9], 1
    %4383 = vsyncpa [#allocation4], 1

</llo_original>
